<compile_context>
chip_gen: v7x
topology: tpu7x:2x2x1
jax: 0.10.0
libtpu: 0.0.40
codegen_flags: <defaults>
</compile_context>

<pallas_src>
import functools

import jax
import jax.numpy as jnp
from jax.experimental import pallas as pl
from jax.experimental.pallas import tpu as pltpu

SUBLANE = 8


def _round_up(n, m):
    return ((n + m - 1) // m) * m


# ---------------------------------------------------------------------------
# Kernel: one grid step processes a (tb,) block of independent cell rows.
# ---------------------------------------------------------------------------
def lstm_cell_kernel(x_ref, s_ref, chb_ref, wx_ref, wh_ref, b_ref, wfh_ref,
                     c_ref, h_ref, *, K, M):
    """
    x_ref   : (tb, in_dim)   compute dtype (bf16 in production)
    s_ref   : (tb, M)        pre-summed children[k][0]
    chb_ref : (K, tb, M)     children[k][1]
    wx_ref  : (in_dim, 4*M)  [W_ioux | W_fx]   columns packed i|o|u|f
    wh_ref  : (M, 4*M)       [W_iouh | 0    ]
    b_ref   : (1, 4*M)       [b_ioux | b_fx ]  (f32, added post-MXU)
    wfh_ref : (M, M)         W_fh
    c_ref, h_ref : (tb, M)   f32 outputs
    """
    # Fused gate pre-activations; f32 accumulation on the MXU.
    g = (jnp.dot(x_ref[...], wx_ref[...], preferred_element_type=jnp.float32)
         + jnp.dot(s_ref[...], wh_ref[...], preferred_element_type=jnp.float32)
         + b_ref[...])                                     # (tb, 4*M) f32

    i = jax.nn.sigmoid(g[:, 0 * M:1 * M])
    o = jax.nn.sigmoid(g[:, 1 * M:2 * M])
    u = jnp.tanh(g[:, 2 * M:3 * M])
    fx = g[:, 3 * M:4 * M]

    c = i * u
    wfh = wfh_ref[...]
    for k in range(K):                                     # K small & static -> unrolled
        fh_k = jnp.dot(chb_ref[k], wfh, preferred_element_type=jnp.float32)
        # Multiplicative gating sigmoid(fx * fh), exactly as in the PyTorch module.
        c = c + jax.nn.sigmoid(fx * fh_k)

    h = o * jnp.tanh(c)
    c_ref[...] = c.astype(c_ref.dtype)
    h_ref[...] = h.astype(h_ref.dtype)


# ---------------------------------------------------------------------------
# One-time weight packing (outside the kernel).  Params are in torch layout:
# nn.Linear weight is (out_features, in_features), y = x @ W.T + b.
# ---------------------------------------------------------------------------
def pack_params(params, compute_dtype=jnp.bfloat16):
    """Gate columns packed compactly at offsets 0/M/2M/3M (i|o|u|f).

    For production mem_dim on v7x (64 MiB per-TC VMEM): keep weights bf16 and, if
    (in_dim+M, 4*M) is still too large, add a grid axis tiling the 4*M columns
    (and pipeline_mode=pl.Buffered(1) on the grid-invariant weight specs).
    """
    M = params["w_fh"].shape[0]
    wx = jnp.concatenate([params["w_ioux"].T, params["w_fx"].T], axis=1)        # (in_dim, 4M)
    wh = jnp.concatenate([params["w_iouh"].T,
                          jnp.zeros((M, M), params["w_iouh"].dtype)], axis=1)   # (M, 4M)
    b = jnp.concatenate([params["b_ioux"], params["b_fx"]])[None, :]            # (1, 4M)
    wfh = params["w_fh"].T                                                      # (M, M)
    return {"wx": wx.astype(compute_dtype),
            "wh": wh.astype(compute_dtype),
            "b": b.astype(jnp.float32),        # bias added after the f32 accumulation
            "wfh": wfh.astype(compute_dtype)}


# ---------------------------------------------------------------------------
# Wrapper: batches N independent LSTMCell applications into one gridded call.
# ---------------------------------------------------------------------------
def lstm_cell_forward(x, children_a, children_b, packed, *, tb=256):
    """x: (N, in_dim); children_a/children_b: (K, N, mem_dim) = children[k][0]/[1]."""
    N, in_dim = x.shape
    K, _, M = children_b.shape
    assert K >= 1  # TODO(synk): leaf nodes (K == 0) need a no-children kernel variant.
    assert tb % SUBLANE == 0
    compute_dtype = packed["wx"].dtype

    # Prep pass: cast + child pre-sum + row pad (feature dims stay unpadded).
    # XLA fuses this into one cheap pass over the inputs.
    Np = _round_up(N, tb)
    pad_r = ((0, Np - N), (0, 0))
    xp = jnp.pad(x, pad_r).astype(compute_dtype)                               # (Np, in_dim)
    sp = jnp.pad(jnp.sum(children_a, axis=0), pad_r).astype(compute_dtype)     # (Np, M)
    cbp = jnp.pad(children_b, ((0, 0),) + pad_r).astype(compute_dtype)         # (K, Np, M)

    kern = functools.partial(lstm_cell_kernel, K=K, M=M)
    row_spec = lambda d: pl.BlockSpec((tb, d), lambda b: (b, 0))
    # Constant block index -> weights DMA'd once, resident in VMEM for all grid steps.
    const_spec = lambda shape: pl.BlockSpec(shape, lambda b: (0,) * len(shape))

    c_p, h_p = pl.pallas_call(
        kern,
        grid_spec=pltpu.PrefetchScalarGridSpec(
            num_scalar_prefetch=0,
            grid=(Np // tb,),
            in_specs=[
                row_spec(in_dim),                               # x block
                row_spec(M),                                    # pre-summed children "a"
                pl.BlockSpec((K, tb, M), lambda b: (0, b, 0)),  # children "b" (fh path)
                const_spec((in_dim, 4 * M)),                    # [W_ioux | W_fx]
                const_spec((M, 4 * M)),                         # [W_iouh | 0   ]
                const_spec((1, 4 * M)),                         # [b_ioux | b_fx]
                const_spec((M, M)),                             # W_fh
            ],
            out_specs=(row_spec(M), row_spec(M)),
        ),
        out_shape=(jax.ShapeDtypeStruct((Np, M), jnp.float32),
                   jax.ShapeDtypeStruct((Np, M), jnp.float32)),
        compiler_params=pltpu.CompilerParams(
            # Independent row blocks: shards across v7x's 2 TensorCores (no-op v5e/v6e).
            dimension_semantics=("parallel",),
            vmem_limit_bytes=32 * 1024 * 1024),
    )(xp, sp, cbp, packed["wx"], packed["wh"], packed["b"], packed["wfh"])

    # Rows [N:Np] hold padding garbage; never feed unsliced outputs onward.
    return c_p[:N], h_p[:N]


# ---------------------------------------------------------------------------
# Pure-JAX mirror of the PyTorch module's forward (torch-layout params).
# ---------------------------------------------------------------------------
def reference_forward(x, children_a, children_b, p):
    M = p["w_fh"].shape[0]
    iou = x @ p["w_ioux"].T + p["b_ioux"]
    if children_a.shape[0] > 0:
        iou = iou + jnp.sum(children_a, axis=0) @ p["w_iouh"].T
    i = jax.nn.sigmoid(iou[:, :M])
    o = jax.nn.sigmoid(iou[:, M:2 * M])
    u = jnp.tanh(iou[:, 2 * M:])
    c = i * u
    fx = x @ p["w_fx"].T + p["b_fx"]
    for k in range(children_b.shape[0]):
        c = c + jax.nn.sigmoid(fx * (children_b[k] @ p["w_fh"].T))
    h = o * jnp.tanh(c)
    return c, h


def init_params(key, in_dim, mem_dim):
    """torch nn.Linear layout (out_features, in_features), U(-1/sqrt(fan_in)) init."""
    ks = jax.random.split(key, 6)

    def u(k, shape, fan_in):
        bound = 1.0 / jnp.sqrt(jnp.float32(fan_in))
        return jax.random.uniform(k, shape, jnp.float32, -bound, bound)

    return {
        "w_ioux": u(ks[0], (3 * mem_dim, in_dim), in_dim),
        "b_ioux": u(ks[1], (3 * mem_dim,), in_dim),
        "w_iouh": u(ks[2], (3 * mem_dim, mem_dim), mem_dim),   # bias=False
        "w_fx":   u(ks[3], (mem_dim, in_dim), in_dim),
        "b_fx":   u(ks[4], (mem_dim,), in_dim),
        "w_fh":   u(ks[5], (mem_dim, mem_dim), mem_dim),       # bias=False
    }


if __name__ == "__main__":
    # N independent LSTMCell applications (e.g. one tree level), K children each.
    N, IN_DIM, MEM_DIM, K = 1000, 16, 32, 2

    key = jax.random.PRNGKey(0)
    kx, ka, kb, kp = jax.random.split(key, 4)
    x = jax.random.normal(kx, (N, IN_DIM), jnp.float32)
    children_a = jax.random.normal(ka, (K, N, MEM_DIM), jnp.float32)   # children[k][0]
    children_b = jax.random.normal(kb, (K, N, MEM_DIM), jnp.float32)   # children[k][1]
    params = init_params(kp, IN_DIM, MEM_DIM)

    fwd = jax.jit(lstm_cell_forward)
    c_ref, h_ref = reference_forward(x, children_a, children_b, params)

    # 1) f32 matmul-input path: tight numerical check against the pure-JAX reference.
    packed_f32 = pack_params(params, compute_dtype=jnp.float32)
    c32, h32 = jax.block_until_ready(fwd(x, children_a, children_b, packed_f32))
    assert jnp.allclose(c32, c_ref, atol=1e-4, rtol=1e-4), "c mismatch (f32 path)"
    assert jnp.allclose(h32, h_ref, atol=1e-4, rtol=1e-4), "h mismatch (f32 path)"

    # 2) bf16 matmul-input path (production config: half the HBM traffic, 2x MXU rate);
    #    f32 accumulation + f32 gate math, so only ~1e-2 noise vs the f32 reference.
    packed_bf16 = pack_params(params, compute_dtype=jnp.bfloat16)
    c, h = jax.block_until_ready(fwd(x, children_a, children_b, packed_bf16))
    assert jnp.allclose(c, c_ref, atol=5e-2, rtol=5e-2), "c mismatch (bf16 path)"
    assert jnp.allclose(h, h_ref, atol=5e-2, rtol=5e-2), "h mismatch (bf16 path)"

    print("KERNEL_OK")
</pallas_src>

<mosaic_0001>
module attributes {stable_mosaic.version = 11 : i64} {
  func.func @lstm_cell_kernel(%arg0: i32, %arg1: memref<256x16xf32, #tpu.memory_space<vmem>>, %arg2: memref<256x32xf32, #tpu.memory_space<vmem>>, %arg3: memref<2x256x32xf32, #tpu.memory_space<vmem>>, %arg4: memref<16x128xf32, #tpu.memory_space<vmem>>, %arg5: memref<32x128xf32, #tpu.memory_space<vmem>>, %arg6: memref<1x128xf32, #tpu.memory_space<vmem>>, %arg7: memref<32x32xf32, #tpu.memory_space<vmem>>, %arg8: memref<256x32xf32, #tpu.memory_space<vmem>>, %arg9: memref<256x32xf32, #tpu.memory_space<vmem>>) attributes {dimension_semantics = [#tpu.dimension_semantics<parallel>], iteration_bounds = array<i64: 4>, scalar_prefetch = 0 : i64, scratch_operands = 0 : i64, tpu.core_type = #tpu.core_type<tc>, window_params = [{transform_indices = @transform_0, window_bounds = array<i64: 256, 16>}, {transform_indices = @transform_1, window_bounds = array<i64: 256, 32>}, {transform_indices = @transform_2, window_bounds = array<i64: 2, 256, 32>}, {pipeline_mode = #tpu.pipeline_mode<synchronous>, transform_indices = @transform_3, window_bounds = array<i64: 16, 128>}, {pipeline_mode = #tpu.pipeline_mode<synchronous>, transform_indices = @transform_4, window_bounds = array<i64: 32, 128>}, {pipeline_mode = #tpu.pipeline_mode<synchronous>, transform_indices = @transform_5, window_bounds = array<i64: 1, 128>}, {pipeline_mode = #tpu.pipeline_mode<synchronous>, transform_indices = @transform_6, window_bounds = array<i64: 32, 32>}, {transform_indices = @transform_7, window_bounds = array<i64: 256, 32>}, {transform_indices = @transform_8, window_bounds = array<i64: 256, 32>}]} {
    %c0 = arith.constant 0 : index
    %c0_0 = arith.constant 0 : index
    %0 = vector.load %arg1[%c0, %c0_0] : memref<256x16xf32, #tpu.memory_space<vmem>>, vector<256x16xf32>
    %c0_1 = arith.constant 0 : index
    %c0_2 = arith.constant 0 : index
    %1 = vector.load %arg4[%c0_1, %c0_2] : memref<16x128xf32, #tpu.memory_space<vmem>>, vector<16x128xf32>
    %cst = arith.constant dense<0.000000e+00> : vector<256x128xf32>
    %2 = tpu.matmul %0, %1, %cst {dimension_numbers = #tpu.dot_dimension_numbers<[1], [0], [0], [1], [0, 0, 1, 1], [], []>} : vector<256x16xf32>, vector<16x128xf32>, vector<256x128xf32> -> vector<256x128xf32>
    %c0_3 = arith.constant 0 : index
    %c0_4 = arith.constant 0 : index
    %3 = vector.load %arg2[%c0_3, %c0_4] : memref<256x32xf32, #tpu.memory_space<vmem>>, vector<256x32xf32>
    %c0_5 = arith.constant 0 : index
    %c0_6 = arith.constant 0 : index
    %4 = vector.load %arg5[%c0_5, %c0_6] : memref<32x128xf32, #tpu.memory_space<vmem>>, vector<32x128xf32>
    %cst_7 = arith.constant dense<0.000000e+00> : vector<256x128xf32>
    %5 = tpu.matmul %3, %4, %cst_7 {dimension_numbers = #tpu.dot_dimension_numbers<[1], [0], [0], [1], [0, 0, 1, 1], [], []>} : vector<256x32xf32>, vector<32x128xf32>, vector<256x128xf32> -> vector<256x128xf32>
    %6 = arith.addf %2, %5 : vector<256x128xf32>
    %c0_8 = arith.constant 0 : index
    %c0_9 = arith.constant 0 : index
    %7 = vector.load %arg6[%c0_8, %c0_9] : memref<1x128xf32, #tpu.memory_space<vmem>>, vector<1x128xf32>
    %8 = vector.broadcast %7 : vector<1x128xf32> to vector<256x128xf32>
    %9 = arith.addf %6, %8 : vector<256x128xf32>
    %10 = vector.extract_strided_slice %9 {offsets = [0, 0], sizes = [256, 32], strides = [1, 1]} : vector<256x128xf32> to vector<256x32xf32>
    %11 = arith.negf %10 : vector<256x32xf32>
    %12 = math.exp %11 : vector<256x32xf32>
    %cst_10 = arith.constant 1.000000e+00 : f32
    %13 = vector.broadcast %cst_10 : f32 to vector<256x32xf32>
    %14 = arith.addf %13, %12 : vector<256x32xf32>
    %15 = arith.divf %13, %14 : vector<256x32xf32>
    %16 = vector.extract_strided_slice %9 {offsets = [0, 32], sizes = [256, 32], strides = [1, 1]} : vector<256x128xf32> to vector<256x32xf32>
    %17 = arith.negf %16 : vector<256x32xf32>
    %18 = math.exp %17 : vector<256x32xf32>
    %cst_11 = arith.constant 1.000000e+00 : f32
    %19 = vector.broadcast %cst_11 : f32 to vector<256x32xf32>
    %20 = arith.addf %19, %18 : vector<256x32xf32>
    %21 = arith.divf %19, %20 : vector<256x32xf32>
    %22 = vector.extract_strided_slice %9 {offsets = [0, 64], sizes = [256, 32], strides = [1, 1]} : vector<256x128xf32> to vector<256x32xf32>
    %23 = math.tanh %22 : vector<256x32xf32>
    %24 = vector.extract_strided_slice %9 {offsets = [0, 96], sizes = [256, 32], strides = [1, 1]} : vector<256x128xf32> to vector<256x32xf32>
    %25 = arith.mulf %15, %23 : vector<256x32xf32>
    %c0_12 = arith.constant 0 : index
    %c0_13 = arith.constant 0 : index
    %26 = vector.load %arg7[%c0_12, %c0_13] : memref<32x32xf32, #tpu.memory_space<vmem>>, vector<32x32xf32>
    %c0_14 = arith.constant 0 : index
    %c0_15 = arith.constant 0 : index
    %c0_16 = arith.constant 0 : index
    %27 = vector.load %arg3[%c0_14, %c0_15, %c0_16] : memref<2x256x32xf32, #tpu.memory_space<vmem>>, vector<1x256x32xf32>
    %28 = vector.shape_cast %27 : vector<1x256x32xf32> to vector<256x32xf32>
    %cst_17 = arith.constant dense<0.000000e+00> : vector<256x32xf32>
    %29 = tpu.matmul %28, %26, %cst_17 {dimension_numbers = #tpu.dot_dimension_numbers<[1], [0], [0], [1], [0, 0, 1, 1], [], []>} : vector<256x32xf32>, vector<32x32xf32>, vector<256x32xf32> -> vector<256x32xf32>
    %30 = arith.mulf %24, %29 : vector<256x32xf32>
    %31 = arith.negf %30 : vector<256x32xf32>
    %32 = math.exp %31 : vector<256x32xf32>
    %cst_18 = arith.constant 1.000000e+00 : f32
    %33 = vector.broadcast %cst_18 : f32 to vector<256x32xf32>
    %34 = arith.addf %33, %32 : vector<256x32xf32>
    %35 = arith.divf %33, %34 : vector<256x32xf32>
    %36 = arith.addf %25, %35 : vector<256x32xf32>
    %c1 = arith.constant 1 : index
    %c0_19 = arith.constant 0 : index
    %c0_20 = arith.constant 0 : index
    %37 = vector.load %arg3[%c1, %c0_19, %c0_20] : memref<2x256x32xf32, #tpu.memory_space<vmem>>, vector<1x256x32xf32>
    %38 = vector.shape_cast %37 : vector<1x256x32xf32> to vector<256x32xf32>
    %cst_21 = arith.constant dense<0.000000e+00> : vector<256x32xf32>
    %39 = tpu.matmul %38, %26, %cst_21 {dimension_numbers = #tpu.dot_dimension_numbers<[1], [0], [0], [1], [0, 0, 1, 1], [], []>} : vector<256x32xf32>, vector<32x32xf32>, vector<256x32xf32> -> vector<256x32xf32>
    %40 = arith.mulf %24, %39 : vector<256x32xf32>
    %41 = arith.negf %40 : vector<256x32xf32>
    %42 = math.exp %41 : vector<256x32xf32>
    %cst_22 = arith.constant 1.000000e+00 : f32
    %43 = vector.broadcast %cst_22 : f32 to vector<256x32xf32>
    %44 = arith.addf %43, %42 : vector<256x32xf32>
    %45 = arith.divf %43, %44 : vector<256x32xf32>
    %46 = arith.addf %36, %45 : vector<256x32xf32>
    %47 = math.tanh %46 : vector<256x32xf32>
    %48 = arith.mulf %21, %47 : vector<256x32xf32>
    %c0_23 = arith.constant 0 : index
    %c0_24 = arith.constant 0 : index
    %49 = vector.load %arg8[%c0_23, %c0_24] : memref<256x32xf32, #tpu.memory_space<vmem>>, vector<256x32xf32>
    tpu.vector_store %arg8[%c0_23, %c0_24], %46 {strides = array<i32>} : memref<256x32xf32, #tpu.memory_space<vmem>>, vector<256x32xf32>,
    %c0_25 = arith.constant 0 : index
    %c0_26 = arith.constant 0 : index
    %50 = vector.load %arg9[%c0_25, %c0_26] : memref<256x32xf32, #tpu.memory_space<vmem>>, vector<256x32xf32>
    tpu.vector_store %arg9[%c0_25, %c0_26], %48 {strides = array<i32>} : memref<256x32xf32, #tpu.memory_space<vmem>>, vector<256x32xf32>,
    return
  }
  func.func @transform_0(%arg0: i32) -> (i32, i32) {
    %c0_i32 = arith.constant 0 : i32
    %c0_i32_0 = arith.constant 0 : i32
    return %arg0, %c0_i32 : i32, i32
  }
  func.func @transform_1(%arg0: i32) -> (i32, i32) {
    %c0_i32 = arith.constant 0 : i32
    %c0_i32_0 = arith.constant 0 : i32
    return %arg0, %c0_i32 : i32, i32
  }
  func.func @transform_2(%arg0: i32) -> (i32, i32, i32) {
    %c0_i32 = arith.constant 0 : i32
    %c0_i32_0 = arith.constant 0 : i32
    %c0_i32_1 = arith.constant 0 : i32
    return %c0_i32, %arg0, %c0_i32_0 : i32, i32, i32
  }
  func.func @transform_3(%arg0: i32) -> (i32, i32) {
    %c0_i32 = arith.constant 0 : i32
    %c0_i32_0 = arith.constant 0 : i32
    %c0_i32_1 = arith.constant 0 : i32
    return %c0_i32, %c0_i32_0 : i32, i32
  }
  func.func @transform_4(%arg0: i32) -> (i32, i32) {
    %c0_i32 = arith.constant 0 : i32
    %c0_i32_0 = arith.constant 0 : i32
    %c0_i32_1 = arith.constant 0 : i32
    return %c0_i32, %c0_i32_0 : i32, i32
  }
  func.func @transform_5(%arg0: i32) -> (i32, i32) {
    %c0_i32 = arith.constant 0 : i32
    %c0_i32_0 = arith.constant 0 : i32
    %c0_i32_1 = arith.constant 0 : i32
    return %c0_i32, %c0_i32_0 : i32, i32
  }
  func.func @transform_6(%arg0: i32) -> (i32, i32) {
    %c0_i32 = arith.constant 0 : i32
    %c0_i32_0 = arith.constant 0 : i32
    %c0_i32_1 = arith.constant 0 : i32
    return %c0_i32, %c0_i32_0 : i32, i32
  }
  func.func @transform_7(%arg0: i32) -> (i32, i32) {
    %c0_i32 = arith.constant 0 : i32
    %c0_i32_0 = arith.constant 0 : i32
    return %arg0, %c0_i32 : i32, i32
  }
  func.func @transform_8(%arg0: i32) -> (i32, i32) {
    %c0_i32 = arith.constant 0 : i32
    %c0_i32_0 = arith.constant 0 : i32
    return %arg0, %c0_i32 : i32, i32
  }
}

</mosaic_0001>

<llo_original>
// kernel: lstm_cell_forward.1
$region0: #{lstm_cell_forward.1}
  #allocation0 [shape = 'u32[]', space=smem, size = 0x4, offset = 0x4, fixed_abs, tag = 'smem constant byte address 0x4 - core index']
  #allocation1 [shape = 'u32[144,128]{1,0:T(1,128)}', space=vmem, size = 0x12000, scoped, tag = 'internal scratch']
  %s0 = inlined_call_operand.vmem [shape: f32[1024,16], index: 0, kind: input, shape index: {}]
  %s1 = inlined_call_operand.vmem [shape: f32[1024,32], index: 1, kind: input, shape index: {}]
  %s2 = inlined_call_operand.vmem [shape: f32[2,1024,32], index: 2, kind: input, shape index: {}]
  %s3 = inlined_call_operand.vmem [shape: f32[16,128], index: 3, kind: input, shape index: {}]
  %s4 = inlined_call_operand.vmem [shape: f32[32,128], index: 4, kind: input, shape index: {}]
  %s5 = inlined_call_operand.vmem [shape: f32[1,128], index: 5, kind: input, shape index: {}]
  %s6 = inlined_call_operand.vmem [shape: f32[32,32], index: 6, kind: input, shape index: {}]
  %s7 = inlined_call_operand.vmem [shape: f32[1024,32], index: 7, kind: output, shape index: {0}]
  %s8 = inlined_call_operand.vmem [shape: f32[1024,32], index: 8, kind: output, shape index: {1}]
  %9 = xla_tuple %s7, %s8
  %s10 = sld [smem:[#allocation0]]
  $region107: #{lstm_cell_forward.1} parent=0
    _
  %s12 = ssub.s32 1, %s10
  %s13 = scalar_select 0, %s12, %s10
  $region1: #{lstm_cell_forward.1} parent=0
    #allocation2 [shape = 'u8[524288]{0}', space=vmem, size = 0x80000, scoped, tag = 'input window, operand 2']
    loop: start=0, step=1, limit=6
    $region2: #{lstm_cell_forward.1} parent=1 // loop_pre_header
      _
    $region3: #{lstm_cell_forward.1} parent=1 // loop_header
      %s15 = sphi 0, %s19
      %p16 = scmp.ge.s32.totalorder %s15, 6
      %s25 = sphi 0, %s27
      %s28 = sphi 0, %s25
      %s29 = sphi 0, %s28
      %s45 = sphi 0, %s29
      %s51 = sphi 0, %s53
      %s54 = sphi 0, %s51
      %s55 = sphi 0, %s54
      %s71 = sphi 0, %s55
      %s77 = sphi 0, %s79
      %s80 = sphi 0, %s77
      %s81 = sphi 0, %s80
      %s97 = sphi 0, %s81
      %s101 = sphi 0, %s101
      %s103 = sphi 0, %s101
      %s104 = sphi 0, %s103
      %s118 = sphi 0, %s104
      %s122 = sphi 0, %s122
      %s124 = sphi 0, %s122
      %s125 = sphi 0, %s124
      %s139 = sphi 0, %s125
      %s143 = sphi 0, %s143
      %s145 = sphi 0, %s143
      %s146 = sphi 0, %s145
      %s160 = sphi 0, %s146
      %s164 = sphi 0, %s164
      %s166 = sphi 0, %s164
      %s167 = sphi 0, %s166
      %s181 = sphi 0, %s167
      %s187 = sphi 0, %s189
      %s190 = sphi 0, %s187
      %s191 = sphi 0, %s190
      %s207 = sphi 0, %s191
      %s213 = sphi 0, %s215
      %s216 = sphi 0, %s213
      %s217 = sphi 0, %s216
      %s233 = sphi 0, %s217
    $region4: #{lstm_cell_forward.1} parent=1 // loop_header_branch
      %18 = sbr.rel (%p16) target = $region8
    $region5: #{lstm_cell_forward.1} parent=1 // loop_body
      %s20 = ssub.s32 %s15, 1
      %s21 = ssub.s32 %s15, 2
      %s22 = sadd.s32 %s15, 1
      %s23 = ssub.s32 %s15, %s22
      %p24 = scmp.eq.s32.totalorder %s23, 0
      %s26 = sadd.s32 %s25, 1
      %s27 = scalar_select %p24, %s25, %s26
      %p30 = pneg %p24
      %p31 = scmp.eq.s32.totalorder %s15, 3
      %p32 = por %p30, %p31
      %p33 = scmp.ne.s32.totalorder %s25, %s28
      %p34 = scmp.eq.s32.totalorder %s15, 0
      %p35 = por %p33, %p34
      %p36 = scmp.ne.s32.totalorder %s25, %s28
      %p37 = scmp.eq.s32.totalorder %s20, 3
      %p38 = por %p36, %p37
      %p39 = scmp.ne.s32.totalorder %s28, %s29
      %p40 = scmp.eq.s32.totalorder %s20, 0
      %p41 = por %p39, %p40
      %p42 = scmp.ne.s32.totalorder %s28, %s29
      %p43 = scmp.eq.s32.totalorder %s21, 3
      %p44 = por %p42, %p43
      %p46 = scmp.ne.s32.totalorder %s29, %s45
      %p47 = scmp.eq.s32.totalorder %s21, 0
      %p48 = por %p46, %p47
      %s49 = ssub.s32 %s15, %s22
      %p50 = scmp.eq.s32.totalorder %s49, 0
      %s52 = sadd.s32 %s51, 1
      %s53 = scalar_select %p50, %s51, %s52
      %p56 = pneg %p50
      %p57 = scmp.eq.s32.totalorder %s15, 3
      %p58 = por %p56, %p57
      %p59 = scmp.ne.s32.totalorder %s51, %s54
      %p60 = scmp.eq.s32.totalorder %s15, 0
      %p61 = por %p59, %p60
      %p62 = scmp.ne.s32.totalorder %s51, %s54
      %p63 = scmp.eq.s32.totalorder %s20, 3
      %p64 = por %p62, %p63
      %p65 = scmp.ne.s32.totalorder %s54, %s55
      %p66 = scmp.eq.s32.totalorder %s20, 0
      %p67 = por %p65, %p66
      %p68 = scmp.ne.s32.totalorder %s54, %s55
      %p69 = scmp.eq.s32.totalorder %s21, 3
      %p70 = por %p68, %p69
      %p72 = scmp.ne.s32.totalorder %s55, %s71
      %p73 = scmp.eq.s32.totalorder %s21, 0
      %p74 = por %p72, %p73
      %s75 = ssub.s32 %s15, %s22
      %p76 = scmp.eq.s32.totalorder %s75, 0
      %s78 = sadd.s32 %s77, 1
      %s79 = scalar_select %p76, %s77, %s78
      %p82 = pneg %p76
      %p83 = scmp.eq.s32.totalorder %s15, 3
      %p84 = por %p82, %p83
      %p85 = scmp.ne.s32.totalorder %s77, %s80
      %p86 = scmp.eq.s32.totalorder %s15, 0
      %p87 = por %p85, %p86
      %p88 = scmp.ne.s32.totalorder %s77, %s80
      %p89 = scmp.eq.s32.totalorder %s20, 3
      %p90 = por %p88, %p89
      %p91 = scmp.ne.s32.totalorder %s80, %s81
      %p92 = scmp.eq.s32.totalorder %s20, 0
      %p93 = por %p91, %p92
      %p94 = scmp.ne.s32.totalorder %s80, %s81
      %p95 = scmp.eq.s32.totalorder %s21, 3
      %p96 = por %p94, %p95
      %p98 = scmp.ne.s32.totalorder %s81, %s97
      %p99 = scmp.eq.s32.totalorder %s21, 0
      %p100 = por %p98, %p99
      %s102 = sadd.s32 %s101, 1
      %p105 = scmp.eq.s32.totalorder %s15, 3
      %p106 = scmp.ne.s32.totalorder %s101, %s103
      %p107 = scmp.eq.s32.totalorder %s15, 0
      %p108 = por %p106, %p107
      %p109 = scmp.ne.s32.totalorder %s101, %s103
      %p110 = scmp.eq.s32.totalorder %s20, 3
      %p111 = por %p109, %p110
      %p112 = scmp.ne.s32.totalorder %s103, %s104
      %p113 = scmp.eq.s32.totalorder %s20, 0
      %p114 = por %p112, %p113
      %p115 = scmp.ne.s32.totalorder %s103, %s104
      %p116 = scmp.eq.s32.totalorder %s21, 3
      %p117 = por %p115, %p116
      %p119 = scmp.ne.s32.totalorder %s104, %s118
      %p120 = scmp.eq.s32.totalorder %s21, 0
      %p121 = por %p119, %p120
      %s123 = sadd.s32 %s122, 1
      %p126 = scmp.eq.s32.totalorder %s15, 3
      %p127 = scmp.ne.s32.totalorder %s122, %s124
      %p128 = scmp.eq.s32.totalorder %s15, 0
      %p129 = por %p127, %p128
      %p130 = scmp.ne.s32.totalorder %s122, %s124
      %p131 = scmp.eq.s32.totalorder %s20, 3
      %p132 = por %p130, %p131
      %p133 = scmp.ne.s32.totalorder %s124, %s125
      %p134 = scmp.eq.s32.totalorder %s20, 0
      %p135 = por %p133, %p134
      %p136 = scmp.ne.s32.totalorder %s124, %s125
      %p137 = scmp.eq.s32.totalorder %s21, 3
      %p138 = por %p136, %p137
      %p140 = scmp.ne.s32.totalorder %s125, %s139
      %p141 = scmp.eq.s32.totalorder %s21, 0
      %p142 = por %p140, %p141
      %s144 = sadd.s32 %s143, 1
      %p147 = scmp.eq.s32.totalorder %s15, 3
      %p148 = scmp.ne.s32.totalorder %s143, %s145
      %p149 = scmp.eq.s32.totalorder %s15, 0
      %p150 = por %p148, %p149
      %p151 = scmp.ne.s32.totalorder %s143, %s145
      %p152 = scmp.eq.s32.totalorder %s20, 3
      %p153 = por %p151, %p152
      %p154 = scmp.ne.s32.totalorder %s145, %s146
      %p155 = scmp.eq.s32.totalorder %s20, 0
      %p156 = por %p154, %p155
      %p157 = scmp.ne.s32.totalorder %s145, %s146
      %p158 = scmp.eq.s32.totalorder %s21, 3
      %p159 = por %p157, %p158
      %p161 = scmp.ne.s32.totalorder %s146, %s160
      %p162 = scmp.eq.s32.totalorder %s21, 0
      %p163 = por %p161, %p162
      %s165 = sadd.s32 %s164, 1
      %p168 = scmp.eq.s32.totalorder %s15, 3
      %p169 = scmp.ne.s32.totalorder %s164, %s166
      %p170 = scmp.eq.s32.totalorder %s15, 0
      %p171 = por %p169, %p170
      %p172 = scmp.ne.s32.totalorder %s164, %s166
      %p173 = scmp.eq.s32.totalorder %s20, 3
      %p174 = por %p172, %p173
      %p175 = scmp.ne.s32.totalorder %s166, %s167
      %p176 = scmp.eq.s32.totalorder %s20, 0
      %p177 = por %p175, %p176
      %p178 = scmp.ne.s32.totalorder %s166, %s167
      %p179 = scmp.eq.s32.totalorder %s21, 3
      %p180 = por %p178, %p179
      %p182 = scmp.ne.s32.totalorder %s167, %s181
      %p183 = scmp.eq.s32.totalorder %s21, 0
      %p184 = por %p182, %p183
      %s185 = ssub.s32 %s15, %s22
      %p186 = scmp.eq.s32.totalorder %s185, 0
      %s188 = sadd.s32 %s187, 1
      %s189 = scalar_select %p186, %s187, %s188
      %p192 = pneg %p186
      %p193 = scmp.eq.s32.totalorder %s15, 3
      %p194 = por %p192, %p193
      %p195 = scmp.ne.s32.totalorder %s187, %s190
      %p196 = scmp.eq.s32.totalorder %s15, 0
      %p197 = por %p195, %p196
      %p198 = scmp.ne.s32.totalorder %s187, %s190
      %p199 = scmp.eq.s32.totalorder %s20, 3
      %p200 = por %p198, %p199
      %p201 = scmp.ne.s32.totalorder %s190, %s191
      %p202 = scmp.eq.s32.totalorder %s20, 0
      %p203 = por %p201, %p202
      %p204 = scmp.ne.s32.totalorder %s190, %s191
      %p205 = scmp.eq.s32.totalorder %s21, 3
      %p206 = por %p204, %p205
      %p208 = scmp.ne.s32.totalorder %s191, %s207
      %p209 = scmp.eq.s32.totalorder %s21, 0
      %p210 = por %p208, %p209
      %s211 = ssub.s32 %s15, %s22
      %p212 = scmp.eq.s32.totalorder %s211, 0
      %s214 = sadd.s32 %s213, 1
      %s215 = scalar_select %p212, %s213, %s214
      %p218 = pneg %p212
      %p219 = scmp.eq.s32.totalorder %s15, 3
      %p220 = por %p218, %p219
      %p221 = scmp.ne.s32.totalorder %s213, %s216
      %p222 = scmp.eq.s32.totalorder %s15, 0
      %p223 = por %p221, %p222
      %p224 = scmp.ne.s32.totalorder %s213, %s216
      %p225 = scmp.eq.s32.totalorder %s20, 3
      %p226 = por %p224, %p225
      %p227 = scmp.ne.s32.totalorder %s216, %s217
      %p228 = scmp.eq.s32.totalorder %s20, 0
      %p229 = por %p227, %p228
      %p230 = scmp.ne.s32.totalorder %s216, %s217
      %p231 = scmp.eq.s32.totalorder %s21, 3
      %p232 = por %p230, %p231
      %p234 = scmp.ne.s32.totalorder %s217, %s233
      %p235 = scmp.eq.s32.totalorder %s21, 0
      %p236 = por %p234, %p235
      %p237 = scmp.le.s32.totalorder 1, %s15
      %p238 = scmp.lt.s32.totalorder %s15, 5
      %p239 = pnand %p237, %p238
      %p240 = pneg %p239
      // Predicated region
      $region9: #{lstm_cell_forward.1} parent=5 // pred_check
        _
      $region10: #{lstm_cell_forward.1} parent=5 // pred_check_branch
        %242 = sbr.rel (%p239) target = $region12
      $region11: #{lstm_cell_forward.1} parent=5 // pred_region
        %s243 = ssub.s32 %s15, 1
        // Predicated region
        $region13: #{lstm_cell_forward.1} parent=11 // pred_check
          %p244 = pneg %p114
        $region14: #{lstm_cell_forward.1} parent=11 // pred_check_branch
          %246 = sbr.rel (%p244) target = $region16
        $region15: #{lstm_cell_forward.1} parent=11 // pred_region
          _
        $region16: #{lstm_cell_forward.1} parent=11 // pred_fallthru
          _
        // Predicated region
        $region17: #{lstm_cell_forward.1} parent=11 // pred_check
          %p247 = pneg %p135
        $region18: #{lstm_cell_forward.1} parent=11 // pred_check_branch
          %249 = sbr.rel (%p247) target = $region20
        $region19: #{lstm_cell_forward.1} parent=11 // pred_region
          _
        $region20: #{lstm_cell_forward.1} parent=11 // pred_fallthru
          _
        // Predicated region
        $region21: #{lstm_cell_forward.1} parent=11 // pred_check
          %p250 = pneg %p156
        $region22: #{lstm_cell_forward.1} parent=11 // pred_check_branch
          %252 = sbr.rel (%p250) target = $region24
        $region23: #{lstm_cell_forward.1} parent=11 // pred_region
          _
        $region24: #{lstm_cell_forward.1} parent=11 // pred_fallthru
          _
        // Predicated region
        $region25: #{lstm_cell_forward.1} parent=11 // pred_check
          %p253 = pneg %p177
        $region26: #{lstm_cell_forward.1} parent=11 // pred_check_branch
          %255 = sbr.rel (%p253) target = $region28
        $region27: #{lstm_cell_forward.1} parent=11 // pred_region
          _
        $region28: #{lstm_cell_forward.1} parent=11 // pred_fallthru
          _
      $region12: #{lstm_cell_forward.1} parent=5 // pred_fallthru
        _
      %p256 = scmp.lt.s32.totalorder %s15, 4
      // Predicated region
      $region29: #{lstm_cell_forward.1} parent=5 // pred_check
        %p257 = pneg %p256
      $region30: #{lstm_cell_forward.1} parent=5 // pred_check_branch
        %259 = sbr.rel (%p257) target = $region32
      $region31: #{lstm_cell_forward.1} parent=5 // pred_region
        // Predicated region
        $region33: #{lstm_cell_forward.1} parent=31 // pred_check
          %p260 = pneg %p35
        $region34: #{lstm_cell_forward.1} parent=31 // pred_check_branch
          %262 = sbr.rel (%p260) target = $region36
        $region35: #{lstm_cell_forward.1} parent=31 // pred_region
          %s263 = smul.u32 32, %s15
          %p264 = scmp.lt.s32.totalorder %s263, 127
          %s265 = scalar_select %p264, %s263, 127
          %s266 = smul.addr %s265, 8
          %s267 = scalar_lea.vmem %s0, %s266
          %s268 = smul.u32 32, %s15
        $region36: #{lstm_cell_forward.1} parent=31 // pred_fallthru
          _
        // Predicated region
        $region37: #{lstm_cell_forward.1} parent=31 // pred_check
          %p269 = pneg %p61
        $region38: #{lstm_cell_forward.1} parent=31 // pred_check_branch
          %271 = sbr.rel (%p269) target = $region40
        $region39: #{lstm_cell_forward.1} parent=31 // pred_region
          %s272 = smul.u32 32, %s15
          %p273 = scmp.lt.s32.totalorder %s272, 127
          %s274 = scalar_select %p273, %s272, 127
          %s275 = smul.addr %s274, 8
          %s276 = scalar_lea.vmem %s1, %s275
          %s277 = smul.u32 32, %s15
        $region40: #{lstm_cell_forward.1} parent=31 // pred_fallthru
          _
        // Predicated region
        $region41: #{lstm_cell_forward.1} parent=31 // pred_check
          %p278 = pneg %p87
        $region42: #{lstm_cell_forward.1} parent=31 // pred_check_branch
          %280 = sbr.rel (%p278) target = $region44
        $region43: #{lstm_cell_forward.1} parent=31 // pred_region
          %s281 = sand.u32 %s77, 1
          %s282 = sand.u32 %s77, 1
          %s283 = smul.addr %s282, 512
          %s284 = scalar_lea.vmem [#allocation2], %s283
          %s285 = smul.u32 32, %s15
          %s286 = smul.addr %s285, 8
          %s287 = scalar_lea.vmem %s2, %s286
          // Predicated region
          $region45: #{lstm_cell_forward.1} parent=43 // pred_check
            _
          $region46: #{lstm_cell_forward.1} parent=43 // pred_check_branch
            %289 = sbr.rel (0) target = $region48
          $region47: #{lstm_cell_forward.1} parent=43 // pred_region
            // Predicated region
            $region49: #{lstm_cell_forward.1} parent=47 // pred_check
              _
            $region50: #{lstm_cell_forward.1} parent=47 // pred_check_branch
              %291 = sbr.rel (0) target = $region52
            $region51: #{lstm_cell_forward.1} parent=47 // pred_region
              // Predicated region
              $region64: #{lstm_cell_forward.1} parent=51 // pred_check
                _
              $region65: #{lstm_cell_forward.1} parent=51 // pred_check_branch
                %432 = sbr.rel (0) target = $region67
              $region66: #{lstm_cell_forward.1} parent=51 // pred_region
                loop: start=0, step=1, limit=1
                $region68: #{lstm_cell_forward.1} parent=66 // loop_pre_header
                  _
                $region69: #{lstm_cell_forward.1} parent=66 // loop_header
                  %s434 = sphi 0, %s438
                  %p435 = scmp.ge.s32.totalorder %s434, 1
                  %s439 = sphi %s287, %s287
                  %s440 = sphi %s284, %s284
                $region70: #{lstm_cell_forward.1} parent=66 // loop_header_branch
                  %437 = sbr.rel (%p435) target = $region74
                $region71: #{lstm_cell_forward.1} parent=66 // loop_body
                  %v441 = vld [vmem:[%s439] sm:$0xff]
                  %442 = vst [vmem:[%s440] sm:$0xff] %v441
                  %v443 = vld [vmem:[%s439 + $0x8] sm:$0xff]
                  %444 = vst [vmem:[%s440 + $0x8] sm:$0xff] %v443
                  %v445 = vld [vmem:[%s439 + $0x10] sm:$0xff]
                  %446 = vst [vmem:[%s440 + $0x10] sm:$0xff] %v445
                  %v447 = vld [vmem:[%s439 + $0x18] sm:$0xff]
                  %448 = vst [vmem:[%s440 + $0x18] sm:$0xff] %v447
                  %v449 = vld [vmem:[%s439 + $0x20] sm:$0xff]
                  %450 = vst [vmem:[%s440 + $0x20] sm:$0xff] %v449
                  %v451 = vld [vmem:[%s439 + $0x28] sm:$0xff]
                  %452 = vst [vmem:[%s440 + $0x28] sm:$0xff] %v451
                  %v453 = vld [vmem:[%s439 + $0x30] sm:$0xff]
                  %454 = vst [vmem:[%s440 + $0x30] sm:$0xff] %v453
                  %v455 = vld [vmem:[%s439 + $0x38] sm:$0xff]
                  %456 = vst [vmem:[%s440 + $0x38] sm:$0xff] %v455
                  %v457 = vld [vmem:[%s439 + $0x40] sm:$0xff]
                  %458 = vst [vmem:[%s440 + $0x40] sm:$0xff] %v457
                  %v459 = vld [vmem:[%s439 + $0x48] sm:$0xff]
                  %460 = vst [vmem:[%s440 + $0x48] sm:$0xff] %v459
                  %v461 = vld [vmem:[%s439 + $0x50] sm:$0xff]
                  %462 = vst [vmem:[%s440 + $0x50] sm:$0xff] %v461
                  %v463 = vld [vmem:[%s439 + $0x58] sm:$0xff]
                  %464 = vst [vmem:[%s440 + $0x58] sm:$0xff] %v463
                  %v465 = vld [vmem:[%s439 + $0x60] sm:$0xff]
                  %466 = vst [vmem:[%s440 + $0x60] sm:$0xff] %v465
                  %v467 = vld [vmem:[%s439 + $0x68] sm:$0xff]
                  %468 = vst [vmem:[%s440 + $0x68] sm:$0xff] %v467
                  %v469 = vld [vmem:[%s439 + $0x70] sm:$0xff]
                  %470 = vst [vmem:[%s440 + $0x70] sm:$0xff] %v469
                  %v471 = vld [vmem:[%s439 + $0x78] sm:$0xff]
                  %472 = vst [vmem:[%s440 + $0x78] sm:$0xff] %v471
                  %v473 = vld [vmem:[%s439 + $0x80] sm:$0xff]
                  %474 = vst [vmem:[%s440 + $0x80] sm:$0xff] %v473
                  %v475 = vld [vmem:[%s439 + $0x88] sm:$0xff]
                  %476 = vst [vmem:[%s440 + $0x88] sm:$0xff] %v475
                  %v477 = vld [vmem:[%s439 + $0x90] sm:$0xff]
                  %478 = vst [vmem:[%s440 + $0x90] sm:$0xff] %v477
                  %v479 = vld [vmem:[%s439 + $0x98] sm:$0xff]
                  %480 = vst [vmem:[%s440 + $0x98] sm:$0xff] %v479
                  %v481 = vld [vmem:[%s439 + $0xa0] sm:$0xff]
                  %482 = vst [vmem:[%s440 + $0xa0] sm:$0xff] %v481
                  %v483 = vld [vmem:[%s439 + $0xa8] sm:$0xff]
                  %484 = vst [vmem:[%s440 + $0xa8] sm:$0xff] %v483
                  %v485 = vld [vmem:[%s439 + $0xb0] sm:$0xff]
                  %486 = vst [vmem:[%s440 + $0xb0] sm:$0xff] %v485
                  %v487 = vld [vmem:[%s439 + $0xb8] sm:$0xff]
                  %488 = vst [vmem:[%s440 + $0xb8] sm:$0xff] %v487
                  %v489 = vld [vmem:[%s439 + $0xc0] sm:$0xff]
                  %490 = vst [vmem:[%s440 + $0xc0] sm:$0xff] %v489
                  %v491 = vld [vmem:[%s439 + $0xc8] sm:$0xff]
                  %492 = vst [vmem:[%s440 + $0xc8] sm:$0xff] %v491
                  %v493 = vld [vmem:[%s439 + $0xd0] sm:$0xff]
                  %494 = vst [vmem:[%s440 + $0xd0] sm:$0xff] %v493
                  %v495 = vld [vmem:[%s439 + $0xd8] sm:$0xff]
                  %496 = vst [vmem:[%s440 + $0xd8] sm:$0xff] %v495
                  %v497 = vld [vmem:[%s439 + $0xe0] sm:$0xff]
                  %498 = vst [vmem:[%s440 + $0xe0] sm:$0xff] %v497
                  %v499 = vld [vmem:[%s439 + $0xe8] sm:$0xff]
                  %500 = vst [vmem:[%s440 + $0xe8] sm:$0xff] %v499
                  %v501 = vld [vmem:[%s439 + $0xf0] sm:$0xff]
                  %502 = vst [vmem:[%s440 + $0xf0] sm:$0xff] %v501
                  %v503 = vld [vmem:[%s439 + $0xf8] sm:$0xff]
                  %504 = vst [vmem:[%s440 + $0xf8] sm:$0xff] %v503
                  %v505 = vld [vmem:[%s439 + $0x400] sm:$0xff]
                  %506 = vst [vmem:[%s440 + $0x100] sm:$0xff] %v505
                  %v507 = vld [vmem:[%s439 + $0x408] sm:$0xff]
                  %508 = vst [vmem:[%s440 + $0x108] sm:$0xff] %v507
                  %v509 = vld [vmem:[%s439 + $0x410] sm:$0xff]
                  %510 = vst [vmem:[%s440 + $0x110] sm:$0xff] %v509
                  %v511 = vld [vmem:[%s439 + $0x418] sm:$0xff]
                  %512 = vst [vmem:[%s440 + $0x118] sm:$0xff] %v511
                  %v513 = vld [vmem:[%s439 + $0x420] sm:$0xff]
                  %514 = vst [vmem:[%s440 + $0x120] sm:$0xff] %v513
                  %v515 = vld [vmem:[%s439 + $0x428] sm:$0xff]
                  %516 = vst [vmem:[%s440 + $0x128] sm:$0xff] %v515
                  %v517 = vld [vmem:[%s439 + $0x430] sm:$0xff]
                  %518 = vst [vmem:[%s440 + $0x130] sm:$0xff] %v517
                  %v519 = vld [vmem:[%s439 + $0x438] sm:$0xff]
                  %520 = vst [vmem:[%s440 + $0x138] sm:$0xff] %v519
                  %v521 = vld [vmem:[%s439 + $0x440] sm:$0xff]
                  %522 = vst [vmem:[%s440 + $0x140] sm:$0xff] %v521
                  %v523 = vld [vmem:[%s439 + $0x448] sm:$0xff]
                  %524 = vst [vmem:[%s440 + $0x148] sm:$0xff] %v523
                  %v525 = vld [vmem:[%s439 + $0x450] sm:$0xff]
                  %526 = vst [vmem:[%s440 + $0x150] sm:$0xff] %v525
                  %v527 = vld [vmem:[%s439 + $0x458] sm:$0xff]
                  %528 = vst [vmem:[%s440 + $0x158] sm:$0xff] %v527
                  %v529 = vld [vmem:[%s439 + $0x460] sm:$0xff]
                  %530 = vst [vmem:[%s440 + $0x160] sm:$0xff] %v529
                  %v531 = vld [vmem:[%s439 + $0x468] sm:$0xff]
                  %532 = vst [vmem:[%s440 + $0x168] sm:$0xff] %v531
                  %v533 = vld [vmem:[%s439 + $0x470] sm:$0xff]
                  %534 = vst [vmem:[%s440 + $0x170] sm:$0xff] %v533
                  %v535 = vld [vmem:[%s439 + $0x478] sm:$0xff]
                  %536 = vst [vmem:[%s440 + $0x178] sm:$0xff] %v535
                  %v537 = vld [vmem:[%s439 + $0x480] sm:$0xff]
                  %538 = vst [vmem:[%s440 + $0x180] sm:$0xff] %v537
                  %v539 = vld [vmem:[%s439 + $0x488] sm:$0xff]
                  %540 = vst [vmem:[%s440 + $0x188] sm:$0xff] %v539
                  %v541 = vld [vmem:[%s439 + $0x490] sm:$0xff]
                  %542 = vst [vmem:[%s440 + $0x190] sm:$0xff] %v541
                  %v543 = vld [vmem:[%s439 + $0x498] sm:$0xff]
                  %544 = vst [vmem:[%s440 + $0x198] sm:$0xff] %v543
                  %v545 = vld [vmem:[%s439 + $0x4a0] sm:$0xff]
                  %546 = vst [vmem:[%s440 + $0x1a0] sm:$0xff] %v545
                  %v547 = vld [vmem:[%s439 + $0x4a8] sm:$0xff]
                  %548 = vst [vmem:[%s440 + $0x1a8] sm:$0xff] %v547
                  %v549 = vld [vmem:[%s439 + $0x4b0] sm:$0xff]
                  %550 = vst [vmem:[%s440 + $0x1b0] sm:$0xff] %v549
                  %v551 = vld [vmem:[%s439 + $0x4b8] sm:$0xff]
                  %552 = vst [vmem:[%s440 + $0x1b8] sm:$0xff] %v551
                  %v553 = vld [vmem:[%s439 + $0x4c0] sm:$0xff]
                  %554 = vst [vmem:[%s440 + $0x1c0] sm:$0xff] %v553
                  %v555 = vld [vmem:[%s439 + $0x4c8] sm:$0xff]
                  %556 = vst [vmem:[%s440 + $0x1c8] sm:$0xff] %v555
                  %v557 = vld [vmem:[%s439 + $0x4d0] sm:$0xff]
                  %558 = vst [vmem:[%s440 + $0x1d0] sm:$0xff] %v557
                  %v559 = vld [vmem:[%s439 + $0x4d8] sm:$0xff]
                  %560 = vst [vmem:[%s440 + $0x1d8] sm:$0xff] %v559
                  %v561 = vld [vmem:[%s439 + $0x4e0] sm:$0xff]
                  %562 = vst [vmem:[%s440 + $0x1e0] sm:$0xff] %v561
                  %v563 = vld [vmem:[%s439 + $0x4e8] sm:$0xff]
                  %564 = vst [vmem:[%s440 + $0x1e8] sm:$0xff] %v563
                  %v565 = vld [vmem:[%s439 + $0x4f0] sm:$0xff]
                  %566 = vst [vmem:[%s440 + $0x1f0] sm:$0xff] %v565
                  %v567 = vld [vmem:[%s439 + $0x4f8] sm:$0xff]
                  %568 = vst [vmem:[%s440 + $0x1f8] sm:$0xff] %v567
                $region72: #{lstm_cell_forward.1} parent=66 // loop_footer
                  %s438 = sadd.s32 1, %s434
                $region73: #{lstm_cell_forward.1} parent=66 // loop_footer_branch
                  %433 = sbr.rel target = $region69
                $region74: #{lstm_cell_forward.1} parent=66 // loop_exit
                  _
              $region67: #{lstm_cell_forward.1} parent=51 // pred_fallthru
                _
              // Predicated region
              $region75: #{lstm_cell_forward.1} parent=51 // pred_check
                _
              $region76: #{lstm_cell_forward.1} parent=51 // pred_check_branch
                %570 = sbr.rel target = $region78
              $region77: #{lstm_cell_forward.1} parent=51 // pred_region
                _
              $region78: #{lstm_cell_forward.1} parent=51 // pred_fallthru
                _
            $region52: #{lstm_cell_forward.1} parent=47 // pred_fallthru
              _
            // Predicated region
            $region53: #{lstm_cell_forward.1} parent=47 // pred_check
              _
            $region54: #{lstm_cell_forward.1} parent=47 // pred_check_branch
              %293 = sbr.rel target = $region56
            $region55: #{lstm_cell_forward.1} parent=47 // pred_region
              loop: start=0, step=1, limit=1
              $region57: #{lstm_cell_forward.1} parent=55 // loop_pre_header
                _
              $region58: #{lstm_cell_forward.1} parent=55 // loop_header
                %s296 = sphi 0, %s300
                %p297 = scmp.ge.s32.totalorder %s296, 1
                %s301 = sphi %s287, %s287
                %s302 = sphi %s284, %s284
              $region59: #{lstm_cell_forward.1} parent=55 // loop_header_branch
                %299 = sbr.rel (%p297) target = $region63
              $region60: #{lstm_cell_forward.1} parent=55 // loop_body
                %v303 = vld [vmem:[%s301] sm:$0xff]
                %304 = vst [vmem:[%s302] sm:$0xff] %v303
                %v305 = vld [vmem:[%s301 + $0x8] sm:$0xff]
                %306 = vst [vmem:[%s302 + $0x8] sm:$0xff] %v305
                %v307 = vld [vmem:[%s301 + $0x10] sm:$0xff]
                %308 = vst [vmem:[%s302 + $0x10] sm:$0xff] %v307
                %v309 = vld [vmem:[%s301 + $0x18] sm:$0xff]
                %310 = vst [vmem:[%s302 + $0x18] sm:$0xff] %v309
                %v311 = vld [vmem:[%s301 + $0x20] sm:$0xff]
                %312 = vst [vmem:[%s302 + $0x20] sm:$0xff] %v311
                %v313 = vld [vmem:[%s301 + $0x28] sm:$0xff]
                %314 = vst [vmem:[%s302 + $0x28] sm:$0xff] %v313
                %v315 = vld [vmem:[%s301 + $0x30] sm:$0xff]
                %316 = vst [vmem:[%s302 + $0x30] sm:$0xff] %v315
                %v317 = vld [vmem:[%s301 + $0x38] sm:$0xff]
                %318 = vst [vmem:[%s302 + $0x38] sm:$0xff] %v317
                %v319 = vld [vmem:[%s301 + $0x40] sm:$0xff]
                %320 = vst [vmem:[%s302 + $0x40] sm:$0xff] %v319
                %v321 = vld [vmem:[%s301 + $0x48] sm:$0xff]
                %322 = vst [vmem:[%s302 + $0x48] sm:$0xff] %v321
                %v323 = vld [vmem:[%s301 + $0x50] sm:$0xff]
                %324 = vst [vmem:[%s302 + $0x50] sm:$0xff] %v323
                %v325 = vld [vmem:[%s301 + $0x58] sm:$0xff]
                %326 = vst [vmem:[%s302 + $0x58] sm:$0xff] %v325
                %v327 = vld [vmem:[%s301 + $0x60] sm:$0xff]
                %328 = vst [vmem:[%s302 + $0x60] sm:$0xff] %v327
                %v329 = vld [vmem:[%s301 + $0x68] sm:$0xff]
                %330 = vst [vmem:[%s302 + $0x68] sm:$0xff] %v329
                %v331 = vld [vmem:[%s301 + $0x70] sm:$0xff]
                %332 = vst [vmem:[%s302 + $0x70] sm:$0xff] %v331
                %v333 = vld [vmem:[%s301 + $0x78] sm:$0xff]
                %334 = vst [vmem:[%s302 + $0x78] sm:$0xff] %v333
                %v335 = vld [vmem:[%s301 + $0x80] sm:$0xff]
                %336 = vst [vmem:[%s302 + $0x80] sm:$0xff] %v335
                %v337 = vld [vmem:[%s301 + $0x88] sm:$0xff]
                %338 = vst [vmem:[%s302 + $0x88] sm:$0xff] %v337
                %v339 = vld [vmem:[%s301 + $0x90] sm:$0xff]
                %340 = vst [vmem:[%s302 + $0x90] sm:$0xff] %v339
                %v341 = vld [vmem:[%s301 + $0x98] sm:$0xff]
                %342 = vst [vmem:[%s302 + $0x98] sm:$0xff] %v341
                %v343 = vld [vmem:[%s301 + $0xa0] sm:$0xff]
                %344 = vst [vmem:[%s302 + $0xa0] sm:$0xff] %v343
                %v345 = vld [vmem:[%s301 + $0xa8] sm:$0xff]
                %346 = vst [vmem:[%s302 + $0xa8] sm:$0xff] %v345
                %v347 = vld [vmem:[%s301 + $0xb0] sm:$0xff]
                %348 = vst [vmem:[%s302 + $0xb0] sm:$0xff] %v347
                %v349 = vld [vmem:[%s301 + $0xb8] sm:$0xff]
                %350 = vst [vmem:[%s302 + $0xb8] sm:$0xff] %v349
                %v351 = vld [vmem:[%s301 + $0xc0] sm:$0xff]
                %352 = vst [vmem:[%s302 + $0xc0] sm:$0xff] %v351
                %v353 = vld [vmem:[%s301 + $0xc8] sm:$0xff]
                %354 = vst [vmem:[%s302 + $0xc8] sm:$0xff] %v353
                %v355 = vld [vmem:[%s301 + $0xd0] sm:$0xff]
                %356 = vst [vmem:[%s302 + $0xd0] sm:$0xff] %v355
                %v357 = vld [vmem:[%s301 + $0xd8] sm:$0xff]
                %358 = vst [vmem:[%s302 + $0xd8] sm:$0xff] %v357
                %v359 = vld [vmem:[%s301 + $0xe0] sm:$0xff]
                %360 = vst [vmem:[%s302 + $0xe0] sm:$0xff] %v359
                %v361 = vld [vmem:[%s301 + $0xe8] sm:$0xff]
                %362 = vst [vmem:[%s302 + $0xe8] sm:$0xff] %v361
                %v363 = vld [vmem:[%s301 + $0xf0] sm:$0xff]
                %364 = vst [vmem:[%s302 + $0xf0] sm:$0xff] %v363
                %v365 = vld [vmem:[%s301 + $0xf8] sm:$0xff]
                %366 = vst [vmem:[%s302 + $0xf8] sm:$0xff] %v365
                %v367 = vld [vmem:[%s301 + $0x400] sm:$0xff]
                %368 = vst [vmem:[%s302 + $0x100] sm:$0xff] %v367
                %v369 = vld [vmem:[%s301 + $0x408] sm:$0xff]
                %370 = vst [vmem:[%s302 + $0x108] sm:$0xff] %v369
                %v371 = vld [vmem:[%s301 + $0x410] sm:$0xff]
                %372 = vst [vmem:[%s302 + $0x110] sm:$0xff] %v371
                %v373 = vld [vmem:[%s301 + $0x418] sm:$0xff]
                %374 = vst [vmem:[%s302 + $0x118] sm:$0xff] %v373
                %v375 = vld [vmem:[%s301 + $0x420] sm:$0xff]
                %376 = vst [vmem:[%s302 + $0x120] sm:$0xff] %v375
                %v377 = vld [vmem:[%s301 + $0x428] sm:$0xff]
                %378 = vst [vmem:[%s302 + $0x128] sm:$0xff] %v377
                %v379 = vld [vmem:[%s301 + $0x430] sm:$0xff]
                %380 = vst [vmem:[%s302 + $0x130] sm:$0xff] %v379
                %v381 = vld [vmem:[%s301 + $0x438] sm:$0xff]
                %382 = vst [vmem:[%s302 + $0x138] sm:$0xff] %v381
                %v383 = vld [vmem:[%s301 + $0x440] sm:$0xff]
                %384 = vst [vmem:[%s302 + $0x140] sm:$0xff] %v383
                %v385 = vld [vmem:[%s301 + $0x448] sm:$0xff]
                %386 = vst [vmem:[%s302 + $0x148] sm:$0xff] %v385
                %v387 = vld [vmem:[%s301 + $0x450] sm:$0xff]
                %388 = vst [vmem:[%s302 + $0x150] sm:$0xff] %v387
                %v389 = vld [vmem:[%s301 + $0x458] sm:$0xff]
                %390 = vst [vmem:[%s302 + $0x158] sm:$0xff] %v389
                %v391 = vld [vmem:[%s301 + $0x460] sm:$0xff]
                %392 = vst [vmem:[%s302 + $0x160] sm:$0xff] %v391
                %v393 = vld [vmem:[%s301 + $0x468] sm:$0xff]
                %394 = vst [vmem:[%s302 + $0x168] sm:$0xff] %v393
                %v395 = vld [vmem:[%s301 + $0x470] sm:$0xff]
                %396 = vst [vmem:[%s302 + $0x170] sm:$0xff] %v395
                %v397 = vld [vmem:[%s301 + $0x478] sm:$0xff]
                %398 = vst [vmem:[%s302 + $0x178] sm:$0xff] %v397
                %v399 = vld [vmem:[%s301 + $0x480] sm:$0xff]
                %400 = vst [vmem:[%s302 + $0x180] sm:$0xff] %v399
                %v401 = vld [vmem:[%s301 + $0x488] sm:$0xff]
                %402 = vst [vmem:[%s302 + $0x188] sm:$0xff] %v401
                %v403 = vld [vmem:[%s301 + $0x490] sm:$0xff]
                %404 = vst [vmem:[%s302 + $0x190] sm:$0xff] %v403
                %v405 = vld [vmem:[%s301 + $0x498] sm:$0xff]
                %406 = vst [vmem:[%s302 + $0x198] sm:$0xff] %v405
                %v407 = vld [vmem:[%s301 + $0x4a0] sm:$0xff]
                %408 = vst [vmem:[%s302 + $0x1a0] sm:$0xff] %v407
                %v409 = vld [vmem:[%s301 + $0x4a8] sm:$0xff]
                %410 = vst [vmem:[%s302 + $0x1a8] sm:$0xff] %v409
                %v411 = vld [vmem:[%s301 + $0x4b0] sm:$0xff]
                %412 = vst [vmem:[%s302 + $0x1b0] sm:$0xff] %v411
                %v413 = vld [vmem:[%s301 + $0x4b8] sm:$0xff]
                %414 = vst [vmem:[%s302 + $0x1b8] sm:$0xff] %v413
                %v415 = vld [vmem:[%s301 + $0x4c0] sm:$0xff]
                %416 = vst [vmem:[%s302 + $0x1c0] sm:$0xff] %v415
                %v417 = vld [vmem:[%s301 + $0x4c8] sm:$0xff]
                %418 = vst [vmem:[%s302 + $0x1c8] sm:$0xff] %v417
                %v419 = vld [vmem:[%s301 + $0x4d0] sm:$0xff]
                %420 = vst [vmem:[%s302 + $0x1d0] sm:$0xff] %v419
                %v421 = vld [vmem:[%s301 + $0x4d8] sm:$0xff]
                %422 = vst [vmem:[%s302 + $0x1d8] sm:$0xff] %v421
                %v423 = vld [vmem:[%s301 + $0x4e0] sm:$0xff]
                %424 = vst [vmem:[%s302 + $0x1e0] sm:$0xff] %v423
                %v425 = vld [vmem:[%s301 + $0x4e8] sm:$0xff]
                %426 = vst [vmem:[%s302 + $0x1e8] sm:$0xff] %v425
                %v427 = vld [vmem:[%s301 + $0x4f0] sm:$0xff]
                %428 = vst [vmem:[%s302 + $0x1f0] sm:$0xff] %v427
                %v429 = vld [vmem:[%s301 + $0x4f8] sm:$0xff]
                %430 = vst [vmem:[%s302 + $0x1f8] sm:$0xff] %v429
              $region61: #{lstm_cell_forward.1} parent=55 // loop_footer
                %s300 = sadd.s32 1, %s296
              $region62: #{lstm_cell_forward.1} parent=55 // loop_footer_branch
                %295 = sbr.rel target = $region58
              $region63: #{lstm_cell_forward.1} parent=55 // loop_exit
                _
            $region56: #{lstm_cell_forward.1} parent=47 // pred_fallthru
              _
          $region48: #{lstm_cell_forward.1} parent=43 // pred_fallthru
            _
          %571 = vnop
        $region44: #{lstm_cell_forward.1} parent=31 // pred_fallthru
          _
      $region32: #{lstm_cell_forward.1} parent=5 // pred_fallthru
        _
      %p572 = scmp.le.s32.totalorder 1, %s15
      %p573 = scmp.lt.s32.totalorder %s15, 5
      %p574 = pnand %p572, %p573
      %p575 = pneg %p574
      // Predicated region
      $region79: #{lstm_cell_forward.1} parent=5 // pred_check
        _
      $region80: #{lstm_cell_forward.1} parent=5 // pred_check_branch
        %577 = sbr.rel (%p574) target = $region82
      $region81: #{lstm_cell_forward.1} parent=5 // pred_region
        %s578 = ssub.s32 %s15, 1
        %s579 = sand.u32 %s80, 1
        %s580 = sand.u32 %s80, 1
        %s581 = smul.addr %s580, 512
        %s582 = scalar_lea.vmem [#allocation2], %s581
        // Predicated region
        $region83: #{lstm_cell_forward.1} parent=81 // pred_check
          %p583 = pneg %p93
        $region84: #{lstm_cell_forward.1} parent=81 // pred_check_branch
          %585 = sbr.rel (%p583) target = $region86
        $region85: #{lstm_cell_forward.1} parent=81 // pred_region
          _
        $region86: #{lstm_cell_forward.1} parent=81 // pred_fallthru
          _
        %s586 = smul.u32 32, %s20
        %p587 = scmp.lt.s32.totalorder %s586, 127
        %s588 = scalar_select %p587, %s586, 127
        %s589 = smul.addr %s588, 8
        %s590 = scalar_lea.vmem %s0, %s589
        %p591 = pneg %p41
        %p592 = pneg %p38
        %s593 = smul.u32 32, %s20
        %p594 = scmp.lt.s32.totalorder %s593, 127
        %s595 = scalar_select %p594, %s593, 127
        %s596 = smul.addr %s595, 8
        %s597 = scalar_lea.vmem %s1, %s596
        %p598 = pneg %p67
        %p599 = pneg %p64
        %s600 = sand.u32 %s80, 1
        %s601 = sand.u32 %s80, 1
        %s602 = smul.addr %s601, 512
        %s603 = scalar_lea.vmem [#allocation2], %s602
        %p604 = pneg %p93
        %p605 = pneg %p90
        %p606 = pneg %p114
        %p607 = pneg %p111
        %p608 = pneg %p135
        %p609 = pneg %p132
        %p610 = pneg %p156
        %p611 = pneg %p153
        %p612 = pneg %p177
        %p613 = pneg %p174
        %p614 = pneg %p203
        %p615 = pneg %p200
        %s616 = smul.u32 32, %s20
        %p617 = scmp.lt.s32.totalorder %s616, 127
        %s618 = scalar_select %p617, %s616, 127
        %s619 = smul.addr %s618, 8
        %s620 = scalar_lea.vmem %s7, %s619
        %p621 = pneg %p229
        %p622 = pneg %p226
        %s623 = smul.u32 32, %s20
        %p624 = scmp.lt.s32.totalorder %s623, 127
        %s625 = scalar_select %p624, %s623, 127
        %s626 = smul.addr %s625, 8
        %s627 = scalar_lea.vmem %s8, %s626
        %s628 = smul.u32 32, %s20
        %p629 = scmp.lt.s32.totalorder %s628, 127
        %s630 = scalar_select %p629, %s628, 127
        %s631 = smul.addr %s630, 8
        %s632 = scalar_lea.vmem %s0, %s631
        %s633 = smul.u32 32, %s20
        %s634 = smul.u32 32, %s20
        %p635 = scmp.lt.s32.totalorder %s634, 127
        %s636 = scalar_select %p635, %s634, 127
        %s637 = smul.addr %s636, 8
        %s638 = scalar_lea.vmem %s1, %s637
        %s639 = smul.u32 32, %s20
        %s640 = smul.u32 32, %s20
        %s641 = smul.u32 32, %s20
        %p642 = scmp.lt.s32.totalorder %s641, 127
        %s643 = scalar_select %p642, %s641, 127
        %s644 = smul.addr %s643, 8
        %s645 = scalar_lea.vmem %s7, %s644
        %s646 = smul.u32 32, %s20
        %s647 = smul.u32 32, %s20
        %p648 = scmp.lt.s32.totalorder %s647, 127
        %s649 = scalar_select %p648, %s647, 127
        %s650 = smul.addr %s649, 8
        %s651 = scalar_lea.vmem %s8, %s650
        %s652 = smul.u32 32, %s20
        %v653 = vld [vmem:[%s632] sm:$0xff]
        %v654 = vld [vmem:[%s632 + $0x8] sm:$0xff]
        %v655 = vld [vmem:[%s632 + $0x10] sm:$0xff]
        %v656 = vld [vmem:[%s632 + $0x18] sm:$0xff]
        %v657 = vld [vmem:[%s632 + $0x20] sm:$0xff]
        %v658 = vld [vmem:[%s632 + $0x28] sm:$0xff]
        %v659 = vld [vmem:[%s632 + $0x30] sm:$0xff]
        %v660 = vld [vmem:[%s632 + $0x38] sm:$0xff]
        %v661 = vld [vmem:[%s632 + $0x40] sm:$0xff]
        %v662 = vld [vmem:[%s632 + $0x48] sm:$0xff]
        %v663 = vld [vmem:[%s632 + $0x50] sm:$0xff]
        %v664 = vld [vmem:[%s632 + $0x58] sm:$0xff]
        %v665 = vld [vmem:[%s632 + $0x60] sm:$0xff]
        %v666 = vld [vmem:[%s632 + $0x68] sm:$0xff]
        %v667 = vld [vmem:[%s632 + $0x70] sm:$0xff]
        %v668 = vld [vmem:[%s632 + $0x78] sm:$0xff]
        %v669 = vld [vmem:[%s632 + $0x80] sm:$0xff]
        %v670 = vld [vmem:[%s632 + $0x88] sm:$0xff]
        %v671 = vld [vmem:[%s632 + $0x90] sm:$0xff]
        %v672 = vld [vmem:[%s632 + $0x98] sm:$0xff]
        %v673 = vld [vmem:[%s632 + $0xa0] sm:$0xff]
        %v674 = vld [vmem:[%s632 + $0xa8] sm:$0xff]
        %v675 = vld [vmem:[%s632 + $0xb0] sm:$0xff]
        %v676 = vld [vmem:[%s632 + $0xb8] sm:$0xff]
        %v677 = vld [vmem:[%s632 + $0xc0] sm:$0xff]
        %v678 = vld [vmem:[%s632 + $0xc8] sm:$0xff]
        %v679 = vld [vmem:[%s632 + $0xd0] sm:$0xff]
        %v680 = vld [vmem:[%s632 + $0xd8] sm:$0xff]
        %v681 = vld [vmem:[%s632 + $0xe0] sm:$0xff]
        %v682 = vld [vmem:[%s632 + $0xe8] sm:$0xff]
        %v683 = vld [vmem:[%s632 + $0xf0] sm:$0xff]
        %v684 = vld [vmem:[%s632 + $0xf8] sm:$0xff]
        %v685 = vld [vmem:[%s3] sm:$0xff]
        %v686 = vld [vmem:[%s3 + $0x8] sm:$0xff]
        %v687 = vld [vmem:[%s638] sm:$0xff]
        %v688 = vld [vmem:[%s638 + $0x8] sm:$0xff]
        %v689 = vld [vmem:[%s638 + $0x10] sm:$0xff]
        %v690 = vld [vmem:[%s638 + $0x18] sm:$0xff]
        %v691 = vld [vmem:[%s638 + $0x20] sm:$0xff]
        %v692 = vld [vmem:[%s638 + $0x28] sm:$0xff]
        %v693 = vld [vmem:[%s638 + $0x30] sm:$0xff]
        %v694 = vld [vmem:[%s638 + $0x38] sm:$0xff]
        %v695 = vld [vmem:[%s638 + $0x40] sm:$0xff]
        %v696 = vld [vmem:[%s638 + $0x48] sm:$0xff]
        %v697 = vld [vmem:[%s638 + $0x50] sm:$0xff]
        %v698 = vld [vmem:[%s638 + $0x58] sm:$0xff]
        %v699 = vld [vmem:[%s638 + $0x60] sm:$0xff]
        %v700 = vld [vmem:[%s638 + $0x68] sm:$0xff]
        %v701 = vld [vmem:[%s638 + $0x70] sm:$0xff]
        %v702 = vld [vmem:[%s638 + $0x78] sm:$0xff]
        %v703 = vld [vmem:[%s638 + $0x80] sm:$0xff]
        %v704 = vld [vmem:[%s638 + $0x88] sm:$0xff]
        %v705 = vld [vmem:[%s638 + $0x90] sm:$0xff]
        %v706 = vld [vmem:[%s638 + $0x98] sm:$0xff]
        %v707 = vld [vmem:[%s638 + $0xa0] sm:$0xff]
        %v708 = vld [vmem:[%s638 + $0xa8] sm:$0xff]
        %v709 = vld [vmem:[%s638 + $0xb0] sm:$0xff]
        %v710 = vld [vmem:[%s638 + $0xb8] sm:$0xff]
        %v711 = vld [vmem:[%s638 + $0xc0] sm:$0xff]
        %v712 = vld [vmem:[%s638 + $0xc8] sm:$0xff]
        %v713 = vld [vmem:[%s638 + $0xd0] sm:$0xff]
        %v714 = vld [vmem:[%s638 + $0xd8] sm:$0xff]
        %v715 = vld [vmem:[%s638 + $0xe0] sm:$0xff]
        %v716 = vld [vmem:[%s638 + $0xe8] sm:$0xff]
        %v717 = vld [vmem:[%s638 + $0xf0] sm:$0xff]
        %v718 = vld [vmem:[%s638 + $0xf8] sm:$0xff]
        %v719 = vld [vmem:[%s4] sm:$0xff]
        %v720 = vld [vmem:[%s4 + $0x8] sm:$0xff]
        %v721 = vld [vmem:[%s4 + $0x10] sm:$0xff]
        %v722 = vld [vmem:[%s4 + $0x18] sm:$0xff]
        %vm723 = vcmask 261120
        %v725 = vsel %vm723, %v687, 0
        %v728 = vsel %vm723, %v688, 0
        %v731 = vsel %vm723, %v689, 0
        %v734 = vsel %vm723, %v690, 0
        %v737 = vsel %vm723, %v691, 0
        %v740 = vsel %vm723, %v692, 0
        %v743 = vsel %vm723, %v693, 0
        %v746 = vsel %vm723, %v694, 0
        %v749 = vsel %vm723, %v695, 0
        %v752 = vsel %vm723, %v696, 0
        %v755 = vsel %vm723, %v697, 0
        %v758 = vsel %vm723, %v698, 0
        %v761 = vsel %vm723, %v699, 0
        %v764 = vsel %vm723, %v700, 0
        %v767 = vsel %vm723, %v701, 0
        %v770 = vsel %vm723, %v702, 0
        %v773 = vsel %vm723, %v703, 0
        %v776 = vsel %vm723, %v704, 0
        %v779 = vsel %vm723, %v705, 0
        %v782 = vsel %vm723, %v706, 0
        %v785 = vsel %vm723, %v707, 0
        %v788 = vsel %vm723, %v708, 0
        %v791 = vsel %vm723, %v709, 0
        %v794 = vsel %vm723, %v710, 0
        %v797 = vsel %vm723, %v711, 0
        %v800 = vsel %vm723, %v712, 0
        %v803 = vsel %vm723, %v713, 0
        %v806 = vsel %vm723, %v714, 0
        %v809 = vsel %vm723, %v715, 0
        %v812 = vsel %vm723, %v716, 0
        %v815 = vsel %vm723, %v717, 0
        %v818 = vsel %vm723, %v718, 0
        %820 = vmatprep.subr.mxu0 0.0
        %821 = vmatpush1.msra.mxu0 %v719
        %822 = vmatprep.subr.mxu0 0.0
        %823 = vmatpush1.msra.mxu0 %v720
        %824 = vmatprep.subr.mxu0 0.0
        %825 = vmatpush1.msra.mxu0 %v721
        %826 = vmatprep.subr.mxu0 0.0
        %827 = vmatpush1.msra.mxu0 %v722
        %828 = vmatprep.subr.mxu0 0.0
        %829 = vmatpush1.msra.mxu0 0.0
        %830 = vmatprep.subr.mxu0 0.0
        %831 = vmatpush1.msra.mxu0 0.0
        %832 = vmatprep.subr.mxu0 0.0
        %833 = vmatpush1.msra.mxu0 0.0
        %834 = vmatprep.subr.mxu0 0.0
        %835 = vmatpush1.msra.mxu0 0.0
        %836 = vmatprep.subr.mxu0 0.0
        %837 = vmatpush1.msra.mxu0 0.0
        %838 = vmatprep.subr.mxu0 0.0
        %839 = vmatpush1.msra.mxu0 0.0
        %840 = vmatprep.subr.mxu0 0.0
        %841 = vmatpush1.msra.mxu0 0.0
        %842 = vmatprep.subr.mxu0 0.0
        %843 = vmatpush1.msra.mxu0 0.0
        %844 = vmatprep.subr.mxu0 0.0
        %845 = vmatpush1.msra.mxu0 0.0
        %846 = vmatprep.subr.mxu0 0.0
        %847 = vmatpush1.msra.mxu0 0.0
        %848 = vmatprep.subr.mxu0 0.0
        %849 = vmatpush1.msra.mxu0 0.0
        %850 = vmatprep.subr.mxu0 0.0
        %851 = vmatpush1.msra.mxu0 0.0
        %852 = vmatprep.subr.mxu0 0.0
        %853 = vmatpush1.msra.mxu0 0.0
        %854 = vmatprep.subr.mxu0 0.0
        %855 = vmatpush1.msra.mxu0 0.0
        %856 = vmatprep.subr.mxu0 0.0
        %857 = vmatpush1.msra.mxu0 0.0
        %858 = vmatprep.subr.mxu0 0.0
        %859 = vmatpush1.msra.mxu0 0.0
        %860 = vmatprep.subr.mxu0 0.0
        %861 = vmatpush1.msra.mxu0 0.0
        %862 = vmatprep.subr.mxu0 0.0
        %863 = vmatpush1.msra.mxu0 0.0
        %864 = vmatprep.subr.mxu0 0.0
        %865 = vmatpush1.msra.mxu0 0.0
        %866 = vmatprep.subr.mxu0 0.0
        %867 = vmatpush1.msra.mxu0 0.0
        %868 = vmatprep.subr.mxu0 0.0
        %869 = vmatpush1.msra.mxu0 0.0
        %870 = vmatprep.subr.mxu0 0.0
        %871 = vmatpush1.msra.mxu0 0.0
        %872 = vmatprep.subr.mxu0 0.0
        %873 = vmatpush1.msra.mxu0 0.0
        %874 = vmatprep.subr.mxu0 0.0
        %875 = vmatpush1.msra.mxu0 0.0
        %876 = vmatprep.subr.mxu0 0.0
        %877 = vmatpush1.msra.mxu0 0.0
        %878 = vmatprep.subr.mxu0 0.0
        %879 = vmatpush1.msra.mxu0 0.0
        %880 = vmatprep.subr.mxu0 0.0
        %881 = vmatpush1.msra.mxu0 0.0
        %882 = vmatprep.subr.mxu0 0.0
        %883 = vmatpush1.msra.mxu0 0.0
        %884 = vmatprep.mubr.f32.mxu0 0.0
        %885 = vmatmul.mubr.f32.gmra.mrb[0].mxu0 %v725
        %v886 = vpop.f32.mrb[0].mxu0
        %v887 = vadd.f32 0.0, %v886
        %v888 = vpop.f32.mrb[0].mxu0
        %889 = vmatprep.mubr.f32.mxu0 0.0
        %890 = vmatmul.mubr.f32.gmra.mrb[0].mxu0 %v728
        %v891 = vpop.f32.mrb[0].mxu0
        %v892 = vadd.f32 0.0, %v891
        %v893 = vpop.f32.mrb[0].mxu0
        %894 = vmatprep.mubr.f32.mxu0 0.0
        %895 = vmatmul.mubr.f32.gmra.mrb[0].mxu0 %v731
        %v896 = vpop.f32.mrb[0].mxu0
        %v897 = vadd.f32 0.0, %v896
        %v898 = vpop.f32.mrb[0].mxu0
        %899 = vmatprep.mubr.f32.mxu0 0.0
        %900 = vmatmul.mubr.f32.gmra.mrb[0].mxu0 %v734
        %v901 = vpop.f32.mrb[0].mxu0
        %v902 = vadd.f32 0.0, %v901
        %v903 = vpop.f32.mrb[0].mxu0
        %904 = vmatprep.mubr.f32.mxu0 0.0
        %905 = vmatmul.mubr.f32.gmra.mrb[0].mxu0 %v737
        %v906 = vpop.f32.mrb[0].mxu0
        %v907 = vadd.f32 0.0, %v906
        %v908 = vpop.f32.mrb[0].mxu0
        %909 = vmatprep.mubr.f32.mxu0 0.0
        %910 = vmatmul.mubr.f32.gmra.mrb[0].mxu0 %v740
        %v911 = vpop.f32.mrb[0].mxu0
        %v912 = vadd.f32 0.0, %v911
        %v913 = vpop.f32.mrb[0].mxu0
        %914 = vmatprep.mubr.f32.mxu0 0.0
        %915 = vmatmul.mubr.f32.gmra.mrb[0].mxu0 %v743
        %v916 = vpop.f32.mrb[0].mxu0
        %v917 = vadd.f32 0.0, %v916
        %v918 = vpop.f32.mrb[0].mxu0
        %919 = vmatprep.mubr.f32.mxu0 0.0
        %920 = vmatmul.mubr.f32.gmra.mrb[0].mxu0 %v746
        %v921 = vpop.f32.mrb[0].mxu0
        %v922 = vadd.f32 0.0, %v921
        %v923 = vpop.f32.mrb[0].mxu0
        %924 = vmatprep.mubr.f32.mxu0 0.0
        %925 = vmatmul.mubr.f32.gmra.mrb[0].mxu0 %v749
        %v926 = vpop.f32.mrb[0].mxu0
        %v927 = vadd.f32 0.0, %v926
        %v928 = vpop.f32.mrb[0].mxu0
        %929 = vmatprep.mubr.f32.mxu0 0.0
        %930 = vmatmul.mubr.f32.gmra.mrb[0].mxu0 %v752
        %v931 = vpop.f32.mrb[0].mxu0
        %v932 = vadd.f32 0.0, %v931
        %v933 = vpop.f32.mrb[0].mxu0
        %934 = vmatprep.mubr.f32.mxu0 0.0
        %935 = vmatmul.mubr.f32.gmra.mrb[0].mxu0 %v755
        %v936 = vpop.f32.mrb[0].mxu0
        %v937 = vadd.f32 0.0, %v936
        %v938 = vpop.f32.mrb[0].mxu0
        %939 = vmatprep.mubr.f32.mxu0 0.0
        %940 = vmatmul.mubr.f32.gmra.mrb[0].mxu0 %v758
        %v941 = vpop.f32.mrb[0].mxu0
        %v942 = vadd.f32 0.0, %v941
        %v943 = vpop.f32.mrb[0].mxu0
        %944 = vmatprep.mubr.f32.mxu0 0.0
        %945 = vmatmul.mubr.f32.gmra.mrb[0].mxu0 %v761
        %v946 = vpop.f32.mrb[0].mxu0
        %v947 = vadd.f32 0.0, %v946
        %v948 = vpop.f32.mrb[0].mxu0
        %949 = vmatprep.mubr.f32.mxu0 0.0
        %950 = vmatmul.mubr.f32.gmra.mrb[0].mxu0 %v764
        %v951 = vpop.f32.mrb[0].mxu0
        %v952 = vadd.f32 0.0, %v951
        %v953 = vpop.f32.mrb[0].mxu0
        %954 = vmatprep.mubr.f32.mxu0 0.0
        %955 = vmatmul.mubr.f32.gmra.mrb[0].mxu0 %v767
        %v956 = vpop.f32.mrb[0].mxu0
        %v957 = vadd.f32 0.0, %v956
        %v958 = vpop.f32.mrb[0].mxu0
        %959 = vmatprep.mubr.f32.mxu0 0.0
        %960 = vmatmul.mubr.f32.gmra.mrb[0].mxu0 %v770
        %v961 = vpop.f32.mrb[0].mxu0
        %v962 = vadd.f32 0.0, %v961
        %v963 = vpop.f32.mrb[0].mxu0
        %964 = vmatprep.mubr.f32.mxu0 0.0
        %965 = vmatmul.mubr.f32.gmra.mrb[0].mxu0 %v773
        %v966 = vpop.f32.mrb[0].mxu0
        %v967 = vadd.f32 0.0, %v966
        %v968 = vpop.f32.mrb[0].mxu0
        %969 = vmatprep.mubr.f32.mxu0 0.0
        %970 = vmatmul.mubr.f32.gmra.mrb[0].mxu0 %v776
        %v971 = vpop.f32.mrb[0].mxu0
        %v972 = vadd.f32 0.0, %v971
        %v973 = vpop.f32.mrb[0].mxu0
        %974 = vmatprep.mubr.f32.mxu0 0.0
        %975 = vmatmul.mubr.f32.gmra.mrb[0].mxu0 %v779
        %v976 = vpop.f32.mrb[0].mxu0
        %v977 = vadd.f32 0.0, %v976
        %v978 = vpop.f32.mrb[0].mxu0
        %979 = vmatprep.mubr.f32.mxu0 0.0
        %980 = vmatmul.mubr.f32.gmra.mrb[0].mxu0 %v782
        %v981 = vpop.f32.mrb[0].mxu0
        %v982 = vadd.f32 0.0, %v981
        %v983 = vpop.f32.mrb[0].mxu0
        %984 = vmatprep.mubr.f32.mxu0 0.0
        %985 = vmatmul.mubr.f32.gmra.mrb[0].mxu0 %v785
        %v986 = vpop.f32.mrb[0].mxu0
        %v987 = vadd.f32 0.0, %v986
        %v988 = vpop.f32.mrb[0].mxu0
        %989 = vmatprep.mubr.f32.mxu0 0.0
        %990 = vmatmul.mubr.f32.gmra.mrb[0].mxu0 %v788
        %v991 = vpop.f32.mrb[0].mxu0
        %v992 = vadd.f32 0.0, %v991
        %v993 = vpop.f32.mrb[0].mxu0
        %994 = vmatprep.mubr.f32.mxu0 0.0
        %995 = vmatmul.mubr.f32.gmra.mrb[0].mxu0 %v791
        %v996 = vpop.f32.mrb[0].mxu0
        %v997 = vadd.f32 0.0, %v996
        %v998 = vpop.f32.mrb[0].mxu0
        %999 = vmatprep.mubr.f32.mxu0 0.0
        %1000 = vmatmul.mubr.f32.gmra.mrb[0].mxu0 %v794
        %v1001 = vpop.f32.mrb[0].mxu0
        %v1002 = vadd.f32 0.0, %v1001
        %v1003 = vpop.f32.mrb[0].mxu0
        %1004 = vmatprep.mubr.f32.mxu0 0.0
        %1005 = vmatmul.mubr.f32.gmra.mrb[0].mxu0 %v797
        %v1006 = vpop.f32.mrb[0].mxu0
        %v1007 = vadd.f32 0.0, %v1006
        %v1008 = vpop.f32.mrb[0].mxu0
        %1009 = vmatprep.mubr.f32.mxu0 0.0
        %1010 = vmatmul.mubr.f32.gmra.mrb[0].mxu0 %v800
        %v1011 = vpop.f32.mrb[0].mxu0
        %v1012 = vadd.f32 0.0, %v1011
        %v1013 = vpop.f32.mrb[0].mxu0
        %1014 = vmatprep.mubr.f32.mxu0 0.0
        %1015 = vmatmul.mubr.f32.gmra.mrb[0].mxu0 %v803
        %v1016 = vpop.f32.mrb[0].mxu0
        %v1017 = vadd.f32 0.0, %v1016
        %v1018 = vpop.f32.mrb[0].mxu0
        %1019 = vmatprep.mubr.f32.mxu0 0.0
        %1020 = vmatmul.mubr.f32.gmra.mrb[0].mxu0 %v806
        %v1021 = vpop.f32.mrb[0].mxu0
        %v1022 = vadd.f32 0.0, %v1021
        %v1023 = vpop.f32.mrb[0].mxu0
        %1024 = vmatprep.mubr.f32.mxu0 0.0
        %1025 = vmatmul.mubr.f32.gmra.mrb[0].mxu0 %v809
        %v1026 = vpop.f32.mrb[0].mxu0
        %v1027 = vadd.f32 0.0, %v1026
        %v1028 = vpop.f32.mrb[0].mxu0
        %1029 = vmatprep.mubr.f32.mxu0 0.0
        %1030 = vmatmul.mubr.f32.gmra.mrb[0].mxu0 %v812
        %v1031 = vpop.f32.mrb[0].mxu0
        %v1032 = vadd.f32 0.0, %v1031
        %v1033 = vpop.f32.mrb[0].mxu0
        %1034 = vmatprep.mubr.f32.mxu0 0.0
        %1035 = vmatmul.mubr.f32.gmra.mrb[0].mxu0 %v815
        %v1036 = vpop.f32.mrb[0].mxu0
        %v1037 = vadd.f32 0.0, %v1036
        %v1038 = vpop.f32.mrb[0].mxu0
        %1039 = vmatprep.mubr.f32.mxu0 0.0
        %1040 = vmatmul.mubr.f32.gmra.mrb[0].mxu0 %v818
        %v1041 = vpop.f32.mrb[0].mxu0
        %v1042 = vadd.f32 0.0, %v1041
        %v1043 = vpop.f32.mrb[0].mxu0
        %1044 = vdwg.mxu0
        %vm1045 = vcmask 130048
        %v1047 = vsel %vm1045, %v653, 0
        %v1050 = vsel %vm1045, %v654, 0
        %v1053 = vsel %vm1045, %v655, 0
        %v1056 = vsel %vm1045, %v656, 0
        %v1059 = vsel %vm1045, %v657, 0
        %v1062 = vsel %vm1045, %v658, 0
        %v1065 = vsel %vm1045, %v659, 0
        %v1068 = vsel %vm1045, %v660, 0
        %v1071 = vsel %vm1045, %v661, 0
        %v1074 = vsel %vm1045, %v662, 0
        %v1077 = vsel %vm1045, %v663, 0
        %v1080 = vsel %vm1045, %v664, 0
        %v1083 = vsel %vm1045, %v665, 0
        %v1086 = vsel %vm1045, %v666, 0
        %v1089 = vsel %vm1045, %v667, 0
        %v1092 = vsel %vm1045, %v668, 0
        %v1095 = vsel %vm1045, %v669, 0
        %v1098 = vsel %vm1045, %v670, 0
        %v1101 = vsel %vm1045, %v671, 0
        %v1104 = vsel %vm1045, %v672, 0
        %v1107 = vsel %vm1045, %v673, 0
        %v1110 = vsel %vm1045, %v674, 0
        %v1113 = vsel %vm1045, %v675, 0
        %v1116 = vsel %vm1045, %v676, 0
        %v1119 = vsel %vm1045, %v677, 0
        %v1122 = vsel %vm1045, %v678, 0
        %v1125 = vsel %vm1045, %v679, 0
        %v1128 = vsel %vm1045, %v680, 0
        %v1131 = vsel %vm1045, %v681, 0
        %v1134 = vsel %vm1045, %v682, 0
        %v1137 = vsel %vm1045, %v683, 0
        %v1140 = vsel %vm1045, %v684, 0
        %1142 = vmatprep.subr.mxu0 0.0
        %1143 = vmatpush1.msra.mxu0 %v685
        %1144 = vmatprep.subr.mxu0 0.0
        %1145 = vmatpush1.msra.mxu0 %v686
        %1146 = vmatprep.subr.mxu0 0.0
        %1147 = vmatpush1.msra.mxu0 0.0
        %1148 = vmatprep.subr.mxu0 0.0
        %1149 = vmatpush1.msra.mxu0 0.0
        %1150 = vmatprep.subr.mxu0 0.0
        %1151 = vmatpush1.msra.mxu0 0.0
        %1152 = vmatprep.subr.mxu0 0.0
        %1153 = vmatpush1.msra.mxu0 0.0
        %1154 = vmatprep.subr.mxu0 0.0
        %1155 = vmatpush1.msra.mxu0 0.0
        %1156 = vmatprep.subr.mxu0 0.0
        %1157 = vmatpush1.msra.mxu0 0.0
        %1158 = vmatprep.subr.mxu0 0.0
        %1159 = vmatpush1.msra.mxu0 0.0
        %1160 = vmatprep.subr.mxu0 0.0
        %1161 = vmatpush1.msra.mxu0 0.0
        %1162 = vmatprep.subr.mxu0 0.0
        %1163 = vmatpush1.msra.mxu0 0.0
        %1164 = vmatprep.subr.mxu0 0.0
        %1165 = vmatpush1.msra.mxu0 0.0
        %1166 = vmatprep.subr.mxu0 0.0
        %1167 = vmatpush1.msra.mxu0 0.0
        %1168 = vmatprep.subr.mxu0 0.0
        %1169 = vmatpush1.msra.mxu0 0.0
        %1170 = vmatprep.subr.mxu0 0.0
        %1171 = vmatpush1.msra.mxu0 0.0
        %1172 = vmatprep.subr.mxu0 0.0
        %1173 = vmatpush1.msra.mxu0 0.0
        %1174 = vmatprep.subr.mxu0 0.0
        %1175 = vmatpush1.msra.mxu0 0.0
        %1176 = vmatprep.subr.mxu0 0.0
        %1177 = vmatpush1.msra.mxu0 0.0
        %1178 = vmatprep.subr.mxu0 0.0
        %1179 = vmatpush1.msra.mxu0 0.0
        %1180 = vmatprep.subr.mxu0 0.0
        %1181 = vmatpush1.msra.mxu0 0.0
        %1182 = vmatprep.subr.mxu0 0.0
        %1183 = vmatpush1.msra.mxu0 0.0
        %1184 = vmatprep.subr.mxu0 0.0
        %1185 = vmatpush1.msra.mxu0 0.0
        %1186 = vmatprep.subr.mxu0 0.0
        %1187 = vmatpush1.msra.mxu0 0.0
        %1188 = vmatprep.subr.mxu0 0.0
        %1189 = vmatpush1.msra.mxu0 0.0
        %1190 = vmatprep.subr.mxu0 0.0
        %1191 = vmatpush1.msra.mxu0 0.0
        %1192 = vmatprep.subr.mxu0 0.0
        %1193 = vmatpush1.msra.mxu0 0.0
        %1194 = vmatprep.subr.mxu0 0.0
        %1195 = vmatpush1.msra.mxu0 0.0
        %1196 = vmatprep.subr.mxu0 0.0
        %1197 = vmatpush1.msra.mxu0 0.0
        %1198 = vmatprep.subr.mxu0 0.0
        %1199 = vmatpush1.msra.mxu0 0.0
        %1200 = vmatprep.subr.mxu0 0.0
        %1201 = vmatpush1.msra.mxu0 0.0
        %1202 = vmatprep.subr.mxu0 0.0
        %1203 = vmatpush1.msra.mxu0 0.0
        %1204 = vmatprep.subr.mxu0 0.0
        %1205 = vmatpush1.msra.mxu0 0.0
        %1206 = vmatprep.mubr.f32.mxu0 0.0
        %1207 = vmatmul.mubr.f32.gmra.mrb[0].mxu0 %v1047
        %v1208 = vpop.f32.mrb[0].mxu0
        %v1209 = vadd.f32 %v887, %v1208
        %v1210 = vpop.f32.mrb[0].mxu0
        %1211 = vmatprep.mubr.f32.mxu0 0.0
        %1212 = vmatmul.mubr.f32.gmra.mrb[0].mxu0 %v1050
        %v1213 = vpop.f32.mrb[0].mxu0
        %v1214 = vadd.f32 %v892, %v1213
        %v1215 = vpop.f32.mrb[0].mxu0
        %1216 = vmatprep.mubr.f32.mxu0 0.0
        %1217 = vmatmul.mubr.f32.gmra.mrb[0].mxu0 %v1053
        %v1218 = vpop.f32.mrb[0].mxu0
        %v1219 = vadd.f32 %v897, %v1218
        %v1220 = vpop.f32.mrb[0].mxu0
        %1221 = vmatprep.mubr.f32.mxu0 0.0
        %1222 = vmatmul.mubr.f32.gmra.mrb[0].mxu0 %v1056
        %v1223 = vpop.f32.mrb[0].mxu0
        %v1224 = vadd.f32 %v902, %v1223
        %v1225 = vpop.f32.mrb[0].mxu0
        %1226 = vmatprep.mubr.f32.mxu0 0.0
        %1227 = vmatmul.mubr.f32.gmra.mrb[0].mxu0 %v1059
        %v1228 = vpop.f32.mrb[0].mxu0
        %v1229 = vadd.f32 %v907, %v1228
        %v1230 = vpop.f32.mrb[0].mxu0
        %1231 = vmatprep.mubr.f32.mxu0 0.0
        %1232 = vmatmul.mubr.f32.gmra.mrb[0].mxu0 %v1062
        %v1233 = vpop.f32.mrb[0].mxu0
        %v1234 = vadd.f32 %v912, %v1233
        %v1235 = vpop.f32.mrb[0].mxu0
        %1236 = vmatprep.mubr.f32.mxu0 0.0
        %1237 = vmatmul.mubr.f32.gmra.mrb[0].mxu0 %v1065
        %v1238 = vpop.f32.mrb[0].mxu0
        %v1239 = vadd.f32 %v917, %v1238
        %v1240 = vpop.f32.mrb[0].mxu0
        %1241 = vmatprep.mubr.f32.mxu0 0.0
        %1242 = vmatmul.mubr.f32.gmra.mrb[0].mxu0 %v1068
        %v1243 = vpop.f32.mrb[0].mxu0
        %v1244 = vadd.f32 %v922, %v1243
        %v1245 = vpop.f32.mrb[0].mxu0
        %1246 = vmatprep.mubr.f32.mxu0 0.0
        %1247 = vmatmul.mubr.f32.gmra.mrb[0].mxu0 %v1071
        %v1248 = vpop.f32.mrb[0].mxu0
        %v1249 = vadd.f32 %v927, %v1248
        %v1250 = vpop.f32.mrb[0].mxu0
        %1251 = vmatprep.mubr.f32.mxu0 0.0
        %1252 = vmatmul.mubr.f32.gmra.mrb[0].mxu0 %v1074
        %v1253 = vpop.f32.mrb[0].mxu0
        %v1254 = vadd.f32 %v932, %v1253
        %v1255 = vpop.f32.mrb[0].mxu0
        %1256 = vmatprep.mubr.f32.mxu0 0.0
        %1257 = vmatmul.mubr.f32.gmra.mrb[0].mxu0 %v1077
        %v1258 = vpop.f32.mrb[0].mxu0
        %v1259 = vadd.f32 %v937, %v1258
        %v1260 = vpop.f32.mrb[0].mxu0
        %1261 = vmatprep.mubr.f32.mxu0 0.0
        %1262 = vmatmul.mubr.f32.gmra.mrb[0].mxu0 %v1080
        %v1263 = vpop.f32.mrb[0].mxu0
        %v1264 = vadd.f32 %v942, %v1263
        %v1265 = vpop.f32.mrb[0].mxu0
        %1266 = vmatprep.mubr.f32.mxu0 0.0
        %1267 = vmatmul.mubr.f32.gmra.mrb[0].mxu0 %v1083
        %v1268 = vpop.f32.mrb[0].mxu0
        %v1269 = vadd.f32 %v947, %v1268
        %v1270 = vpop.f32.mrb[0].mxu0
        %1271 = vmatprep.mubr.f32.mxu0 0.0
        %1272 = vmatmul.mubr.f32.gmra.mrb[0].mxu0 %v1086
        %v1273 = vpop.f32.mrb[0].mxu0
        %v1274 = vadd.f32 %v952, %v1273
        %v1275 = vpop.f32.mrb[0].mxu0
        %1276 = vmatprep.mubr.f32.mxu0 0.0
        %1277 = vmatmul.mubr.f32.gmra.mrb[0].mxu0 %v1089
        %v1278 = vpop.f32.mrb[0].mxu0
        %v1279 = vadd.f32 %v957, %v1278
        %v1280 = vpop.f32.mrb[0].mxu0
        %1281 = vmatprep.mubr.f32.mxu0 0.0
        %1282 = vmatmul.mubr.f32.gmra.mrb[0].mxu0 %v1092
        %v1283 = vpop.f32.mrb[0].mxu0
        %v1284 = vadd.f32 %v962, %v1283
        %v1285 = vpop.f32.mrb[0].mxu0
        %1286 = vmatprep.mubr.f32.mxu0 0.0
        %1287 = vmatmul.mubr.f32.gmra.mrb[0].mxu0 %v1095
        %v1288 = vpop.f32.mrb[0].mxu0
        %v1289 = vadd.f32 %v967, %v1288
        %v1290 = vpop.f32.mrb[0].mxu0
        %1291 = vmatprep.mubr.f32.mxu0 0.0
        %1292 = vmatmul.mubr.f32.gmra.mrb[0].mxu0 %v1098
        %v1293 = vpop.f32.mrb[0].mxu0
        %v1294 = vadd.f32 %v972, %v1293
        %v1295 = vpop.f32.mrb[0].mxu0
        %1296 = vmatprep.mubr.f32.mxu0 0.0
        %1297 = vmatmul.mubr.f32.gmra.mrb[0].mxu0 %v1101
        %v1298 = vpop.f32.mrb[0].mxu0
        %v1299 = vadd.f32 %v977, %v1298
        %v1300 = vpop.f32.mrb[0].mxu0
        %1301 = vmatprep.mubr.f32.mxu0 0.0
        %1302 = vmatmul.mubr.f32.gmra.mrb[0].mxu0 %v1104
        %v1303 = vpop.f32.mrb[0].mxu0
        %v1304 = vadd.f32 %v982, %v1303
        %v1305 = vpop.f32.mrb[0].mxu0
        %1306 = vmatprep.mubr.f32.mxu0 0.0
        %1307 = vmatmul.mubr.f32.gmra.mrb[0].mxu0 %v1107
        %v1308 = vpop.f32.mrb[0].mxu0
        %v1309 = vadd.f32 %v987, %v1308
        %v1310 = vpop.f32.mrb[0].mxu0
        %1311 = vmatprep.mubr.f32.mxu0 0.0
        %1312 = vmatmul.mubr.f32.gmra.mrb[0].mxu0 %v1110
        %v1313 = vpop.f32.mrb[0].mxu0
        %v1314 = vadd.f32 %v992, %v1313
        %v1315 = vpop.f32.mrb[0].mxu0
        %1316 = vmatprep.mubr.f32.mxu0 0.0
        %1317 = vmatmul.mubr.f32.gmra.mrb[0].mxu0 %v1113
        %v1318 = vpop.f32.mrb[0].mxu0
        %v1319 = vadd.f32 %v997, %v1318
        %v1320 = vpop.f32.mrb[0].mxu0
        %1321 = vmatprep.mubr.f32.mxu0 0.0
        %1322 = vmatmul.mubr.f32.gmra.mrb[0].mxu0 %v1116
        %v1323 = vpop.f32.mrb[0].mxu0
        %v1324 = vadd.f32 %v1002, %v1323
        %v1325 = vpop.f32.mrb[0].mxu0
        %1326 = vmatprep.mubr.f32.mxu0 0.0
        %1327 = vmatmul.mubr.f32.gmra.mrb[0].mxu0 %v1119
        %v1328 = vpop.f32.mrb[0].mxu0
        %v1329 = vadd.f32 %v1007, %v1328
        %v1330 = vpop.f32.mrb[0].mxu0
        %1331 = vmatprep.mubr.f32.mxu0 0.0
        %1332 = vmatmul.mubr.f32.gmra.mrb[0].mxu0 %v1122
        %v1333 = vpop.f32.mrb[0].mxu0
        %v1334 = vadd.f32 %v1012, %v1333
        %v1335 = vpop.f32.mrb[0].mxu0
        %1336 = vmatprep.mubr.f32.mxu0 0.0
        %1337 = vmatmul.mubr.f32.gmra.mrb[0].mxu0 %v1125
        %v1338 = vpop.f32.mrb[0].mxu0
        %v1339 = vadd.f32 %v1017, %v1338
        %v1340 = vpop.f32.mrb[0].mxu0
        %1341 = vmatprep.mubr.f32.mxu0 0.0
        %1342 = vmatmul.mubr.f32.gmra.mrb[0].mxu0 %v1128
        %v1343 = vpop.f32.mrb[0].mxu0
        %v1344 = vadd.f32 %v1022, %v1343
        %v1345 = vpop.f32.mrb[0].mxu0
        %1346 = vmatprep.mubr.f32.mxu0 0.0
        %1347 = vmatmul.mubr.f32.gmra.mrb[0].mxu0 %v1131
        %v1348 = vpop.f32.mrb[0].mxu0
        %v1349 = vadd.f32 %v1027, %v1348
        %v1350 = vpop.f32.mrb[0].mxu0
        %1351 = vmatprep.mubr.f32.mxu0 0.0
        %1352 = vmatmul.mubr.f32.gmra.mrb[0].mxu0 %v1134
        %v1353 = vpop.f32.mrb[0].mxu0
        %v1354 = vadd.f32 %v1032, %v1353
        %v1355 = vpop.f32.mrb[0].mxu0
        %1356 = vmatprep.mubr.f32.mxu0 0.0
        %1357 = vmatmul.mubr.f32.gmra.mrb[0].mxu0 %v1137
        %v1358 = vpop.f32.mrb[0].mxu0
        %v1359 = vadd.f32 %v1037, %v1358
        %v1360 = vpop.f32.mrb[0].mxu0
        %1361 = vmatprep.mubr.f32.mxu0 0.0
        %1362 = vmatmul.mubr.f32.gmra.mrb[0].mxu0 %v1140
        %v1363 = vpop.f32.mrb[0].mxu0
        %v1364 = vadd.f32 %v1042, %v1363
        %v1365 = vpop.f32.mrb[0].mxu0
        %1366 = vdwg.mxu0
        %v1367 = vld [vmem:[%s5] sm:$0x1]
        %v1369 = vlaneseq
        %v1370 = vshrl.u32 %v1369, 7
        %v1371 = vsub.s32 0, %v1370
        %v1372 = vrot.slane %v1367, %v1371
        %v1374 = vadd.f32 %v1209, %v1372
        %v1375 = vadd.f32 %v1214, %v1372
        %v1376 = vadd.f32 %v1219, %v1372
        %v1377 = vadd.f32 %v1224, %v1372
        %v1378 = vadd.f32 %v1229, %v1372
        %v1379 = vadd.f32 %v1234, %v1372
        %v1380 = vadd.f32 %v1239, %v1372
        %v1381 = vadd.f32 %v1244, %v1372
        %v1382 = vadd.f32 %v1249, %v1372
        %v1383 = vadd.f32 %v1254, %v1372
        %v1384 = vadd.f32 %v1259, %v1372
        %v1385 = vadd.f32 %v1264, %v1372
        %v1386 = vadd.f32 %v1269, %v1372
        %v1387 = vadd.f32 %v1274, %v1372
        %v1388 = vadd.f32 %v1279, %v1372
        %v1389 = vadd.f32 %v1284, %v1372
        %v1390 = vadd.f32 %v1289, %v1372
        %v1391 = vadd.f32 %v1294, %v1372
        %v1392 = vadd.f32 %v1299, %v1372
        %v1393 = vadd.f32 %v1304, %v1372
        %v1394 = vadd.f32 %v1309, %v1372
        %v1395 = vadd.f32 %v1314, %v1372
        %v1396 = vadd.f32 %v1319, %v1372
        %v1397 = vadd.f32 %v1324, %v1372
        %v1398 = vadd.f32 %v1329, %v1372
        %v1399 = vadd.f32 %v1334, %v1372
        %v1400 = vadd.f32 %v1339, %v1372
        %v1401 = vadd.f32 %v1344, %v1372
        %v1402 = vadd.f32 %v1349, %v1372
        %v1403 = vadd.f32 %v1354, %v1372
        %v1404 = vadd.f32 %v1359, %v1372
        %v1405 = vadd.f32 %v1364, %v1372
        %v1406 = vxor.u32 %v1374, 2147483648
        %v1407 = vxor.u32 %v1375, 2147483648
        %v1408 = vxor.u32 %v1376, 2147483648
        %v1409 = vxor.u32 %v1377, 2147483648
        %v1410 = vxor.u32 %v1378, 2147483648
        %v1411 = vxor.u32 %v1379, 2147483648
        %v1412 = vxor.u32 %v1380, 2147483648
        %v1413 = vxor.u32 %v1381, 2147483648
        %v1414 = vxor.u32 %v1382, 2147483648
        %v1415 = vxor.u32 %v1383, 2147483648
        %v1416 = vxor.u32 %v1384, 2147483648
        %v1417 = vxor.u32 %v1385, 2147483648
        %v1418 = vxor.u32 %v1386, 2147483648
        %v1419 = vxor.u32 %v1387, 2147483648
        %v1420 = vxor.u32 %v1388, 2147483648
        %v1421 = vxor.u32 %v1389, 2147483648
        %v1422 = vxor.u32 %v1390, 2147483648
        %v1423 = vxor.u32 %v1391, 2147483648
        %v1424 = vxor.u32 %v1392, 2147483648
        %v1425 = vxor.u32 %v1393, 2147483648
        %v1426 = vxor.u32 %v1394, 2147483648
        %v1427 = vxor.u32 %v1395, 2147483648
        %v1428 = vxor.u32 %v1396, 2147483648
        %v1429 = vxor.u32 %v1397, 2147483648
        %v1430 = vxor.u32 %v1398, 2147483648
        %v1431 = vxor.u32 %v1399, 2147483648
        %v1432 = vxor.u32 %v1400, 2147483648
        %v1433 = vxor.u32 %v1401, 2147483648
        %v1434 = vxor.u32 %v1402, 2147483648
        %v1435 = vxor.u32 %v1403, 2147483648
        %v1436 = vxor.u32 %v1404, 2147483648
        %v1437 = vxor.u32 %v1405, 2147483648
        %v1438 = vmul.f32 %v1406, 1.442695
        %v1439 = vpow.pop %v1438
        %v1440 = vmul.f32 %v1407, 1.442695
        %v1441 = vpow.pop %v1440
        %v1442 = vmul.f32 %v1408, 1.442695
        %v1443 = vpow.pop %v1442
        %v1444 = vmul.f32 %v1409, 1.442695
        %v1445 = vpow.pop %v1444
        %v1446 = vmul.f32 %v1410, 1.442695
        %v1447 = vpow.pop %v1446
        %v1448 = vmul.f32 %v1411, 1.442695
        %v1449 = vpow.pop %v1448
        %v1450 = vmul.f32 %v1412, 1.442695
        %v1451 = vpow.pop %v1450
        %v1452 = vmul.f32 %v1413, 1.442695
        %v1453 = vpow.pop %v1452
        %v1454 = vmul.f32 %v1414, 1.442695
        %v1455 = vpow.pop %v1454
        %v1456 = vmul.f32 %v1415, 1.442695
        %v1457 = vpow.pop %v1456
        %v1458 = vmul.f32 %v1416, 1.442695
        %v1459 = vpow.pop %v1458
        %v1460 = vmul.f32 %v1417, 1.442695
        %v1461 = vpow.pop %v1460
        %v1462 = vmul.f32 %v1418, 1.442695
        %v1463 = vpow.pop %v1462
        %v1464 = vmul.f32 %v1419, 1.442695
        %v1465 = vpow.pop %v1464
        %v1466 = vmul.f32 %v1420, 1.442695
        %v1467 = vpow.pop %v1466
        %v1468 = vmul.f32 %v1421, 1.442695
        %v1469 = vpow.pop %v1468
        %v1470 = vmul.f32 %v1422, 1.442695
        %v1471 = vpow.pop %v1470
        %v1472 = vmul.f32 %v1423, 1.442695
        %v1473 = vpow.pop %v1472
        %v1474 = vmul.f32 %v1424, 1.442695
        %v1475 = vpow.pop %v1474
        %v1476 = vmul.f32 %v1425, 1.442695
        %v1477 = vpow.pop %v1476
        %v1478 = vmul.f32 %v1426, 1.442695
        %v1479 = vpow.pop %v1478
        %v1480 = vmul.f32 %v1427, 1.442695
        %v1481 = vpow.pop %v1480
        %v1482 = vmul.f32 %v1428, 1.442695
        %v1483 = vpow.pop %v1482
        %v1484 = vmul.f32 %v1429, 1.442695
        %v1485 = vpow.pop %v1484
        %v1486 = vmul.f32 %v1430, 1.442695
        %v1487 = vpow.pop %v1486
        %v1488 = vmul.f32 %v1431, 1.442695
        %v1489 = vpow.pop %v1488
        %v1490 = vmul.f32 %v1432, 1.442695
        %v1491 = vpow.pop %v1490
        %v1492 = vmul.f32 %v1433, 1.442695
        %v1493 = vpow.pop %v1492
        %v1494 = vmul.f32 %v1434, 1.442695
        %v1495 = vpow.pop %v1494
        %v1496 = vmul.f32 %v1435, 1.442695
        %v1497 = vpow.pop %v1496
        %v1498 = vmul.f32 %v1436, 1.442695
        %v1499 = vpow.pop %v1498
        %v1500 = vmul.f32 %v1437, 1.442695
        %v1501 = vpow.pop %v1500
        %v1502 = vadd.f32 %v1439, 1.0
        %v1503 = vadd.f32 %v1441, 1.0
        %v1504 = vadd.f32 %v1443, 1.0
        %v1505 = vadd.f32 %v1445, 1.0
        %v1506 = vadd.f32 %v1447, 1.0
        %v1507 = vadd.f32 %v1449, 1.0
        %v1508 = vadd.f32 %v1451, 1.0
        %v1509 = vadd.f32 %v1453, 1.0
        %v1510 = vadd.f32 %v1455, 1.0
        %v1511 = vadd.f32 %v1457, 1.0
        %v1512 = vadd.f32 %v1459, 1.0
        %v1513 = vadd.f32 %v1461, 1.0
        %v1514 = vadd.f32 %v1463, 1.0
        %v1515 = vadd.f32 %v1465, 1.0
        %v1516 = vadd.f32 %v1467, 1.0
        %v1517 = vadd.f32 %v1469, 1.0
        %v1518 = vadd.f32 %v1471, 1.0
        %v1519 = vadd.f32 %v1473, 1.0
        %v1520 = vadd.f32 %v1475, 1.0
        %v1521 = vadd.f32 %v1477, 1.0
        %v1522 = vadd.f32 %v1479, 1.0
        %v1523 = vadd.f32 %v1481, 1.0
        %v1524 = vadd.f32 %v1483, 1.0
        %v1525 = vadd.f32 %v1485, 1.0
        %v1526 = vadd.f32 %v1487, 1.0
        %v1527 = vadd.f32 %v1489, 1.0
        %v1528 = vadd.f32 %v1491, 1.0
        %v1529 = vadd.f32 %v1493, 1.0
        %v1530 = vadd.f32 %v1495, 1.0
        %v1531 = vadd.f32 %v1497, 1.0
        %v1532 = vadd.f32 %v1499, 1.0
        %v1533 = vadd.f32 %v1501, 1.0
        %v1534 = vrcp.pop %v1502
        %v1535 = vmul.f32 1.0, %v1534
        %v1536 = vrcp.pop %v1503
        %v1537 = vmul.f32 1.0, %v1536
        %v1538 = vrcp.pop %v1504
        %v1539 = vmul.f32 1.0, %v1538
        %v1540 = vrcp.pop %v1505
        %v1541 = vmul.f32 1.0, %v1540
        %v1542 = vrcp.pop %v1506
        %v1543 = vmul.f32 1.0, %v1542
        %v1544 = vrcp.pop %v1507
        %v1545 = vmul.f32 1.0, %v1544
        %v1546 = vrcp.pop %v1508
        %v1547 = vmul.f32 1.0, %v1546
        %v1548 = vrcp.pop %v1509
        %v1549 = vmul.f32 1.0, %v1548
        %v1550 = vrcp.pop %v1510
        %v1551 = vmul.f32 1.0, %v1550
        %v1552 = vrcp.pop %v1511
        %v1553 = vmul.f32 1.0, %v1552
        %v1554 = vrcp.pop %v1512
        %v1555 = vmul.f32 1.0, %v1554
        %v1556 = vrcp.pop %v1513
        %v1557 = vmul.f32 1.0, %v1556
        %v1558 = vrcp.pop %v1514
        %v1559 = vmul.f32 1.0, %v1558
        %v1560 = vrcp.pop %v1515
        %v1561 = vmul.f32 1.0, %v1560
        %v1562 = vrcp.pop %v1516
        %v1563 = vmul.f32 1.0, %v1562
        %v1564 = vrcp.pop %v1517
        %v1565 = vmul.f32 1.0, %v1564
        %v1566 = vrcp.pop %v1518
        %v1567 = vmul.f32 1.0, %v1566
        %v1568 = vrcp.pop %v1519
        %v1569 = vmul.f32 1.0, %v1568
        %v1570 = vrcp.pop %v1520
        %v1571 = vmul.f32 1.0, %v1570
        %v1572 = vrcp.pop %v1521
        %v1573 = vmul.f32 1.0, %v1572
        %v1574 = vrcp.pop %v1522
        %v1575 = vmul.f32 1.0, %v1574
        %v1576 = vrcp.pop %v1523
        %v1577 = vmul.f32 1.0, %v1576
        %v1578 = vrcp.pop %v1524
        %v1579 = vmul.f32 1.0, %v1578
        %v1580 = vrcp.pop %v1525
        %v1581 = vmul.f32 1.0, %v1580
        %v1582 = vrcp.pop %v1526
        %v1583 = vmul.f32 1.0, %v1582
        %v1584 = vrcp.pop %v1527
        %v1585 = vmul.f32 1.0, %v1584
        %v1586 = vrcp.pop %v1528
        %v1587 = vmul.f32 1.0, %v1586
        %v1588 = vrcp.pop %v1529
        %v1589 = vmul.f32 1.0, %v1588
        %v1590 = vrcp.pop %v1530
        %v1591 = vmul.f32 1.0, %v1590
        %v1592 = vrcp.pop %v1531
        %v1593 = vmul.f32 1.0, %v1592
        %v1594 = vrcp.pop %v1532
        %v1595 = vmul.f32 1.0, %v1594
        %v1596 = vrcp.pop %v1533
        %v1597 = vmul.f32 1.0, %v1596
        %v1598 = vtanh.pop %v1374
        %v1599 = vtanh.pop %v1375
        %v1600 = vtanh.pop %v1376
        %v1601 = vtanh.pop %v1377
        %v1602 = vtanh.pop %v1378
        %v1603 = vtanh.pop %v1379
        %v1604 = vtanh.pop %v1380
        %v1605 = vtanh.pop %v1381
        %v1606 = vtanh.pop %v1382
        %v1607 = vtanh.pop %v1383
        %v1608 = vtanh.pop %v1384
        %v1609 = vtanh.pop %v1385
        %v1610 = vtanh.pop %v1386
        %v1611 = vtanh.pop %v1387
        %v1612 = vtanh.pop %v1388
        %v1613 = vtanh.pop %v1389
        %v1614 = vtanh.pop %v1390
        %v1615 = vtanh.pop %v1391
        %v1616 = vtanh.pop %v1392
        %v1617 = vtanh.pop %v1393
        %v1618 = vtanh.pop %v1394
        %v1619 = vtanh.pop %v1395
        %v1620 = vtanh.pop %v1396
        %v1621 = vtanh.pop %v1397
        %v1622 = vtanh.pop %v1398
        %v1623 = vtanh.pop %v1399
        %v1624 = vtanh.pop %v1400
        %v1625 = vtanh.pop %v1401
        %v1626 = vtanh.pop %v1402
        %v1627 = vtanh.pop %v1403
        %v1628 = vtanh.pop %v1404
        %v1629 = vtanh.pop %v1405
        %1662 = vrot.lane.b32.xlu0 %v1598, 64
        %v1663 = vpop.permute.xlu0 %1662
        %1664 = vrot.lane.b32.xlu0 %v1599, 64
        %v1665 = vpop.permute.xlu0 %1664
        %1666 = vrot.lane.b32.xlu0 %v1600, 64
        %v1667 = vpop.permute.xlu0 %1666
        %1668 = vrot.lane.b32.xlu0 %v1601, 64
        %v1669 = vpop.permute.xlu0 %1668
        %1670 = vrot.lane.b32.xlu0 %v1602, 64
        %v1671 = vpop.permute.xlu0 %1670
        %1672 = vrot.lane.b32.xlu0 %v1603, 64
        %v1673 = vpop.permute.xlu0 %1672
        %1674 = vrot.lane.b32.xlu0 %v1604, 64
        %v1675 = vpop.permute.xlu0 %1674
        %1676 = vrot.lane.b32.xlu0 %v1605, 64
        %v1677 = vpop.permute.xlu0 %1676
        %1678 = vrot.lane.b32.xlu0 %v1606, 64
        %v1679 = vpop.permute.xlu0 %1678
        %1680 = vrot.lane.b32.xlu0 %v1607, 64
        %v1681 = vpop.permute.xlu0 %1680
        %1682 = vrot.lane.b32.xlu0 %v1608, 64
        %v1683 = vpop.permute.xlu0 %1682
        %1684 = vrot.lane.b32.xlu0 %v1609, 64
        %v1685 = vpop.permute.xlu0 %1684
        %1686 = vrot.lane.b32.xlu0 %v1610, 64
        %v1687 = vpop.permute.xlu0 %1686
        %1688 = vrot.lane.b32.xlu0 %v1611, 64
        %v1689 = vpop.permute.xlu0 %1688
        %1690 = vrot.lane.b32.xlu0 %v1612, 64
        %v1691 = vpop.permute.xlu0 %1690
        %1692 = vrot.lane.b32.xlu0 %v1613, 64
        %v1693 = vpop.permute.xlu0 %1692
        %1694 = vrot.lane.b32.xlu0 %v1614, 64
        %v1695 = vpop.permute.xlu0 %1694
        %1696 = vrot.lane.b32.xlu0 %v1615, 64
        %v1697 = vpop.permute.xlu0 %1696
        %1698 = vrot.lane.b32.xlu0 %v1616, 64
        %v1699 = vpop.permute.xlu0 %1698
        %1700 = vrot.lane.b32.xlu0 %v1617, 64
        %v1701 = vpop.permute.xlu0 %1700
        %1702 = vrot.lane.b32.xlu0 %v1618, 64
        %v1703 = vpop.permute.xlu0 %1702
        %1704 = vrot.lane.b32.xlu0 %v1619, 64
        %v1705 = vpop.permute.xlu0 %1704
        %1706 = vrot.lane.b32.xlu0 %v1620, 64
        %v1707 = vpop.permute.xlu0 %1706
        %1708 = vrot.lane.b32.xlu0 %v1621, 64
        %v1709 = vpop.permute.xlu0 %1708
        %1710 = vrot.lane.b32.xlu0 %v1622, 64
        %v1711 = vpop.permute.xlu0 %1710
        %1712 = vrot.lane.b32.xlu0 %v1623, 64
        %v1713 = vpop.permute.xlu0 %1712
        %1714 = vrot.lane.b32.xlu0 %v1624, 64
        %v1715 = vpop.permute.xlu0 %1714
        %1716 = vrot.lane.b32.xlu0 %v1625, 64
        %v1717 = vpop.permute.xlu0 %1716
        %1718 = vrot.lane.b32.xlu0 %v1626, 64
        %v1719 = vpop.permute.xlu0 %1718
        %1720 = vrot.lane.b32.xlu0 %v1627, 64
        %v1721 = vpop.permute.xlu0 %1720
        %1722 = vrot.lane.b32.xlu0 %v1628, 64
        %v1723 = vpop.permute.xlu0 %1722
        %1724 = vrot.lane.b32.xlu0 %v1629, 64
        %v1725 = vpop.permute.xlu0 %1724
        %v1758 = vmul.f32 %v1535, %v1663
        %v1759 = vmul.f32 %v1537, %v1665
        %v1760 = vmul.f32 %v1539, %v1667
        %v1761 = vmul.f32 %v1541, %v1669
        %v1762 = vmul.f32 %v1543, %v1671
        %v1763 = vmul.f32 %v1545, %v1673
        %v1764 = vmul.f32 %v1547, %v1675
        %v1765 = vmul.f32 %v1549, %v1677
        %v1766 = vmul.f32 %v1551, %v1679
        %v1767 = vmul.f32 %v1553, %v1681
        %v1768 = vmul.f32 %v1555, %v1683
        %v1769 = vmul.f32 %v1557, %v1685
        %v1770 = vmul.f32 %v1559, %v1687
        %v1771 = vmul.f32 %v1561, %v1689
        %v1772 = vmul.f32 %v1563, %v1691
        %v1773 = vmul.f32 %v1565, %v1693
        %v1774 = vmul.f32 %v1567, %v1695
        %v1775 = vmul.f32 %v1569, %v1697
        %v1776 = vmul.f32 %v1571, %v1699
        %v1777 = vmul.f32 %v1573, %v1701
        %v1778 = vmul.f32 %v1575, %v1703
        %v1779 = vmul.f32 %v1577, %v1705
        %v1780 = vmul.f32 %v1579, %v1707
        %v1781 = vmul.f32 %v1581, %v1709
        %v1782 = vmul.f32 %v1583, %v1711
        %v1783 = vmul.f32 %v1585, %v1713
        %v1784 = vmul.f32 %v1587, %v1715
        %v1785 = vmul.f32 %v1589, %v1717
        %v1786 = vmul.f32 %v1591, %v1719
        %v1787 = vmul.f32 %v1593, %v1721
        %v1788 = vmul.f32 %v1595, %v1723
        %v1789 = vmul.f32 %v1597, %v1725
        %v1790 = vld [vmem:[%s6] sm:$0xff]
        %v1791 = vld [vmem:[%s6 + $0x8] sm:$0xff]
        %v1792 = vld [vmem:[%s6 + $0x10] sm:$0xff]
        %v1793 = vld [vmem:[%s6 + $0x18] sm:$0xff]
        %v1794 = vld [vmem:[%s582] sm:$0xff]
        %v1795 = vld [vmem:[%s582 + $0x8] sm:$0xff]
        %v1796 = vld [vmem:[%s582 + $0x10] sm:$0xff]
        %v1797 = vld [vmem:[%s582 + $0x18] sm:$0xff]
        %v1798 = vld [vmem:[%s582 + $0x20] sm:$0xff]
        %v1799 = vld [vmem:[%s582 + $0x28] sm:$0xff]
        %v1800 = vld [vmem:[%s582 + $0x30] sm:$0xff]
        %v1801 = vld [vmem:[%s582 + $0x38] sm:$0xff]
        %v1802 = vld [vmem:[%s582 + $0x40] sm:$0xff]
        %v1803 = vld [vmem:[%s582 + $0x48] sm:$0xff]
        %v1804 = vld [vmem:[%s582 + $0x50] sm:$0xff]
        %v1805 = vld [vmem:[%s582 + $0x58] sm:$0xff]
        %v1806 = vld [vmem:[%s582 + $0x60] sm:$0xff]
        %v1807 = vld [vmem:[%s582 + $0x68] sm:$0xff]
        %v1808 = vld [vmem:[%s582 + $0x70] sm:$0xff]
        %v1809 = vld [vmem:[%s582 + $0x78] sm:$0xff]
        %v1810 = vld [vmem:[%s582 + $0x80] sm:$0xff]
        %v1811 = vld [vmem:[%s582 + $0x88] sm:$0xff]
        %v1812 = vld [vmem:[%s582 + $0x90] sm:$0xff]
        %v1813 = vld [vmem:[%s582 + $0x98] sm:$0xff]
        %v1814 = vld [vmem:[%s582 + $0xa0] sm:$0xff]
        %v1815 = vld [vmem:[%s582 + $0xa8] sm:$0xff]
        %v1816 = vld [vmem:[%s582 + $0xb0] sm:$0xff]
        %v1817 = vld [vmem:[%s582 + $0xb8] sm:$0xff]
        %v1818 = vld [vmem:[%s582 + $0xc0] sm:$0xff]
        %v1819 = vld [vmem:[%s582 + $0xc8] sm:$0xff]
        %v1820 = vld [vmem:[%s582 + $0xd0] sm:$0xff]
        %v1821 = vld [vmem:[%s582 + $0xd8] sm:$0xff]
        %v1822 = vld [vmem:[%s582 + $0xe0] sm:$0xff]
        %v1823 = vld [vmem:[%s582 + $0xe8] sm:$0xff]
        %v1824 = vld [vmem:[%s582 + $0xf0] sm:$0xff]
        %v1825 = vld [vmem:[%s582 + $0xf8] sm:$0xff]
        %v1827 = vsel %vm723, %v1794, 0
        %v1830 = vsel %vm723, %v1795, 0
        %v1833 = vsel %vm723, %v1796, 0
        %v1836 = vsel %vm723, %v1797, 0
        %v1839 = vsel %vm723, %v1798, 0
        %v1842 = vsel %vm723, %v1799, 0
        %v1845 = vsel %vm723, %v1800, 0
        %v1848 = vsel %vm723, %v1801, 0
        %v1851 = vsel %vm723, %v1802, 0
        %v1854 = vsel %vm723, %v1803, 0
        %v1857 = vsel %vm723, %v1804, 0
        %v1860 = vsel %vm723, %v1805, 0
        %v1863 = vsel %vm723, %v1806, 0
        %v1866 = vsel %vm723, %v1807, 0
        %v1869 = vsel %vm723, %v1808, 0
        %v1872 = vsel %vm723, %v1809, 0
        %v1875 = vsel %vm723, %v1810, 0
        %v1878 = vsel %vm723, %v1811, 0
        %v1881 = vsel %vm723, %v1812, 0
        %v1884 = vsel %vm723, %v1813, 0
        %v1887 = vsel %vm723, %v1814, 0
        %v1890 = vsel %vm723, %v1815, 0
        %v1893 = vsel %vm723, %v1816, 0
        %v1896 = vsel %vm723, %v1817, 0
        %v1899 = vsel %vm723, %v1818, 0
        %v1902 = vsel %vm723, %v1819, 0
        %v1905 = vsel %vm723, %v1820, 0
        %v1908 = vsel %vm723, %v1821, 0
        %v1911 = vsel %vm723, %v1822, 0
        %v1914 = vsel %vm723, %v1823, 0
        %v1917 = vsel %vm723, %v1824, 0
        %v1920 = vsel %vm723, %v1825, 0
        %1922 = vmatprep.subr.mxu0 0.0
        %1923 = vmatpush1.msra.mxu0 %v1790
        %1924 = vmatprep.subr.mxu0 0.0
        %1925 = vmatpush1.msra.mxu0 %v1791
        %1926 = vmatprep.subr.mxu0 0.0
        %1927 = vmatpush1.msra.mxu0 %v1792
        %1928 = vmatprep.subr.mxu0 0.0
        %1929 = vmatpush1.msra.mxu0 %v1793
        %1930 = vmatprep.subr.mxu0 0.0
        %1931 = vmatpush1.msra.mxu0 0.0
        %1932 = vmatprep.subr.mxu0 0.0
        %1933 = vmatpush1.msra.mxu0 0.0
        %1934 = vmatprep.subr.mxu0 0.0
        %1935 = vmatpush1.msra.mxu0 0.0
        %1936 = vmatprep.subr.mxu0 0.0
        %1937 = vmatpush1.msra.mxu0 0.0
        %1938 = vmatprep.subr.mxu0 0.0
        %1939 = vmatpush1.msra.mxu0 0.0
        %1940 = vmatprep.subr.mxu0 0.0
        %1941 = vmatpush1.msra.mxu0 0.0
        %1942 = vmatprep.subr.mxu0 0.0
        %1943 = vmatpush1.msra.mxu0 0.0
        %1944 = vmatprep.subr.mxu0 0.0
        %1945 = vmatpush1.msra.mxu0 0.0
        %1946 = vmatprep.subr.mxu0 0.0
        %1947 = vmatpush1.msra.mxu0 0.0
        %1948 = vmatprep.subr.mxu0 0.0
        %1949 = vmatpush1.msra.mxu0 0.0
        %1950 = vmatprep.subr.mxu0 0.0
        %1951 = vmatpush1.msra.mxu0 0.0
        %1952 = vmatprep.subr.mxu0 0.0
        %1953 = vmatpush1.msra.mxu0 0.0
        %1954 = vmatprep.subr.mxu0 0.0
        %1955 = vmatpush1.msra.mxu0 0.0
        %1956 = vmatprep.subr.mxu0 0.0
        %1957 = vmatpush1.msra.mxu0 0.0
        %1958 = vmatprep.subr.mxu0 0.0
        %1959 = vmatpush1.msra.mxu0 0.0
        %1960 = vmatprep.subr.mxu0 0.0
        %1961 = vmatpush1.msra.mxu0 0.0
        %1962 = vmatprep.subr.mxu0 0.0
        %1963 = vmatpush1.msra.mxu0 0.0
        %1964 = vmatprep.subr.mxu0 0.0
        %1965 = vmatpush1.msra.mxu0 0.0
        %1966 = vmatprep.subr.mxu0 0.0
        %1967 = vmatpush1.msra.mxu0 0.0
        %1968 = vmatprep.subr.mxu0 0.0
        %1969 = vmatpush1.msra.mxu0 0.0
        %1970 = vmatprep.subr.mxu0 0.0
        %1971 = vmatpush1.msra.mxu0 0.0
        %1972 = vmatprep.subr.mxu0 0.0
        %1973 = vmatpush1.msra.mxu0 0.0
        %1974 = vmatprep.subr.mxu0 0.0
        %1975 = vmatpush1.msra.mxu0 0.0
        %1976 = vmatprep.subr.mxu0 0.0
        %1977 = vmatpush1.msra.mxu0 0.0
        %1978 = vmatprep.subr.mxu0 0.0
        %1979 = vmatpush1.msra.mxu0 0.0
        %1980 = vmatprep.subr.mxu0 0.0
        %1981 = vmatpush1.msra.mxu0 0.0
        %1982 = vmatprep.subr.mxu0 0.0
        %1983 = vmatpush1.msra.mxu0 0.0
        %1984 = vmatprep.subr.mxu0 0.0
        %1985 = vmatpush1.msra.mxu0 0.0
        %1986 = vmatprep.mubr.f32.mxu0 0.0
        %1987 = vmatmul.mubr.f32.gmra.mrb[0].mxu0 %v1827
        %v1988 = vpop.f32.mrb[0].mxu0
        %v1989 = vadd.f32 0.0, %v1988
        %v1990 = vpop.f32.mrb[0].mxu0
        %1991 = vmatprep.mubr.f32.mxu0 0.0
        %1992 = vmatmul.mubr.f32.gmra.mrb[0].mxu0 %v1830
        %v1993 = vpop.f32.mrb[0].mxu0
        %v1994 = vadd.f32 0.0, %v1993
        %v1995 = vpop.f32.mrb[0].mxu0
        %1996 = vmatprep.mubr.f32.mxu0 0.0
        %1997 = vmatmul.mubr.f32.gmra.mrb[0].mxu0 %v1833
        %v1998 = vpop.f32.mrb[0].mxu0
        %v1999 = vadd.f32 0.0, %v1998
        %v2000 = vpop.f32.mrb[0].mxu0
        %2001 = vmatprep.mubr.f32.mxu0 0.0
        %2002 = vmatmul.mubr.f32.gmra.mrb[0].mxu0 %v1836
        %v2003 = vpop.f32.mrb[0].mxu0
        %v2004 = vadd.f32 0.0, %v2003
        %v2005 = vpop.f32.mrb[0].mxu0
        %2006 = vmatprep.mubr.f32.mxu0 0.0
        %2007 = vmatmul.mubr.f32.gmra.mrb[0].mxu0 %v1839
        %v2008 = vpop.f32.mrb[0].mxu0
        %v2009 = vadd.f32 0.0, %v2008
        %v2010 = vpop.f32.mrb[0].mxu0
        %2011 = vmatprep.mubr.f32.mxu0 0.0
        %2012 = vmatmul.mubr.f32.gmra.mrb[0].mxu0 %v1842
        %v2013 = vpop.f32.mrb[0].mxu0
        %v2014 = vadd.f32 0.0, %v2013
        %v2015 = vpop.f32.mrb[0].mxu0
        %2016 = vmatprep.mubr.f32.mxu0 0.0
        %2017 = vmatmul.mubr.f32.gmra.mrb[0].mxu0 %v1845
        %v2018 = vpop.f32.mrb[0].mxu0
        %v2019 = vadd.f32 0.0, %v2018
        %v2020 = vpop.f32.mrb[0].mxu0
        %2021 = vmatprep.mubr.f32.mxu0 0.0
        %2022 = vmatmul.mubr.f32.gmra.mrb[0].mxu0 %v1848
        %v2023 = vpop.f32.mrb[0].mxu0
        %v2024 = vadd.f32 0.0, %v2023
        %v2025 = vpop.f32.mrb[0].mxu0
        %2026 = vmatprep.mubr.f32.mxu0 0.0
        %2027 = vmatmul.mubr.f32.gmra.mrb[0].mxu0 %v1851
        %v2028 = vpop.f32.mrb[0].mxu0
        %v2029 = vadd.f32 0.0, %v2028
        %v2030 = vpop.f32.mrb[0].mxu0
        %2031 = vmatprep.mubr.f32.mxu0 0.0
        %2032 = vmatmul.mubr.f32.gmra.mrb[0].mxu0 %v1854
        %v2033 = vpop.f32.mrb[0].mxu0
        %v2034 = vadd.f32 0.0, %v2033
        %v2035 = vpop.f32.mrb[0].mxu0
        %2036 = vmatprep.mubr.f32.mxu0 0.0
        %2037 = vmatmul.mubr.f32.gmra.mrb[0].mxu0 %v1857
        %v2038 = vpop.f32.mrb[0].mxu0
        %v2039 = vadd.f32 0.0, %v2038
        %v2040 = vpop.f32.mrb[0].mxu0
        %2041 = vmatprep.mubr.f32.mxu0 0.0
        %2042 = vmatmul.mubr.f32.gmra.mrb[0].mxu0 %v1860
        %v2043 = vpop.f32.mrb[0].mxu0
        %v2044 = vadd.f32 0.0, %v2043
        %v2045 = vpop.f32.mrb[0].mxu0
        %2046 = vmatprep.mubr.f32.mxu0 0.0
        %2047 = vmatmul.mubr.f32.gmra.mrb[0].mxu0 %v1863
        %v2048 = vpop.f32.mrb[0].mxu0
        %v2049 = vadd.f32 0.0, %v2048
        %v2050 = vpop.f32.mrb[0].mxu0
        %2051 = vmatprep.mubr.f32.mxu0 0.0
        %2052 = vmatmul.mubr.f32.gmra.mrb[0].mxu0 %v1866
        %v2053 = vpop.f32.mrb[0].mxu0
        %v2054 = vadd.f32 0.0, %v2053
        %v2055 = vpop.f32.mrb[0].mxu0
        %2056 = vmatprep.mubr.f32.mxu0 0.0
        %2057 = vmatmul.mubr.f32.gmra.mrb[0].mxu0 %v1869
        %v2058 = vpop.f32.mrb[0].mxu0
        %v2059 = vadd.f32 0.0, %v2058
        %v2060 = vpop.f32.mrb[0].mxu0
        %2061 = vmatprep.mubr.f32.mxu0 0.0
        %2062 = vmatmul.mubr.f32.gmra.mrb[0].mxu0 %v1872
        %v2063 = vpop.f32.mrb[0].mxu0
        %v2064 = vadd.f32 0.0, %v2063
        %v2065 = vpop.f32.mrb[0].mxu0
        %2066 = vmatprep.mubr.f32.mxu0 0.0
        %2067 = vmatmul.mubr.f32.gmra.mrb[0].mxu0 %v1875
        %v2068 = vpop.f32.mrb[0].mxu0
        %v2069 = vadd.f32 0.0, %v2068
        %v2070 = vpop.f32.mrb[0].mxu0
        %2071 = vmatprep.mubr.f32.mxu0 0.0
        %2072 = vmatmul.mubr.f32.gmra.mrb[0].mxu0 %v1878
        %v2073 = vpop.f32.mrb[0].mxu0
        %v2074 = vadd.f32 0.0, %v2073
        %v2075 = vpop.f32.mrb[0].mxu0
        %2076 = vmatprep.mubr.f32.mxu0 0.0
        %2077 = vmatmul.mubr.f32.gmra.mrb[0].mxu0 %v1881
        %v2078 = vpop.f32.mrb[0].mxu0
        %v2079 = vadd.f32 0.0, %v2078
        %v2080 = vpop.f32.mrb[0].mxu0
        %2081 = vmatprep.mubr.f32.mxu0 0.0
        %2082 = vmatmul.mubr.f32.gmra.mrb[0].mxu0 %v1884
        %v2083 = vpop.f32.mrb[0].mxu0
        %v2084 = vadd.f32 0.0, %v2083
        %v2085 = vpop.f32.mrb[0].mxu0
        %2086 = vmatprep.mubr.f32.mxu0 0.0
        %2087 = vmatmul.mubr.f32.gmra.mrb[0].mxu0 %v1887
        %v2088 = vpop.f32.mrb[0].mxu0
        %v2089 = vadd.f32 0.0, %v2088
        %v2090 = vpop.f32.mrb[0].mxu0
        %2091 = vmatprep.mubr.f32.mxu0 0.0
        %2092 = vmatmul.mubr.f32.gmra.mrb[0].mxu0 %v1890
        %v2093 = vpop.f32.mrb[0].mxu0
        %v2094 = vadd.f32 0.0, %v2093
        %v2095 = vpop.f32.mrb[0].mxu0
        %2096 = vmatprep.mubr.f32.mxu0 0.0
        %2097 = vmatmul.mubr.f32.gmra.mrb[0].mxu0 %v1893
        %v2098 = vpop.f32.mrb[0].mxu0
        %v2099 = vadd.f32 0.0, %v2098
        %v2100 = vpop.f32.mrb[0].mxu0
        %2101 = vmatprep.mubr.f32.mxu0 0.0
        %2102 = vmatmul.mubr.f32.gmra.mrb[0].mxu0 %v1896
        %v2103 = vpop.f32.mrb[0].mxu0
        %v2104 = vadd.f32 0.0, %v2103
        %v2105 = vpop.f32.mrb[0].mxu0
        %2106 = vmatprep.mubr.f32.mxu0 0.0
        %2107 = vmatmul.mubr.f32.gmra.mrb[0].mxu0 %v1899
        %v2108 = vpop.f32.mrb[0].mxu0
        %v2109 = vadd.f32 0.0, %v2108
        %v2110 = vpop.f32.mrb[0].mxu0
        %2111 = vmatprep.mubr.f32.mxu0 0.0
        %2112 = vmatmul.mubr.f32.gmra.mrb[0].mxu0 %v1902
        %v2113 = vpop.f32.mrb[0].mxu0
        %v2114 = vadd.f32 0.0, %v2113
        %v2115 = vpop.f32.mrb[0].mxu0
        %2116 = vmatprep.mubr.f32.mxu0 0.0
        %2117 = vmatmul.mubr.f32.gmra.mrb[0].mxu0 %v1905
        %v2118 = vpop.f32.mrb[0].mxu0
        %v2119 = vadd.f32 0.0, %v2118
        %v2120 = vpop.f32.mrb[0].mxu0
        %2121 = vmatprep.mubr.f32.mxu0 0.0
        %2122 = vmatmul.mubr.f32.gmra.mrb[0].mxu0 %v1908
        %v2123 = vpop.f32.mrb[0].mxu0
        %v2124 = vadd.f32 0.0, %v2123
        %v2125 = vpop.f32.mrb[0].mxu0
        %2126 = vmatprep.mubr.f32.mxu0 0.0
        %2127 = vmatmul.mubr.f32.gmra.mrb[0].mxu0 %v1911
        %v2128 = vpop.f32.mrb[0].mxu0
        %v2129 = vadd.f32 0.0, %v2128
        %v2130 = vpop.f32.mrb[0].mxu0
        %2131 = vmatprep.mubr.f32.mxu0 0.0
        %2132 = vmatmul.mubr.f32.gmra.mrb[0].mxu0 %v1914
        %v2133 = vpop.f32.mrb[0].mxu0
        %v2134 = vadd.f32 0.0, %v2133
        %v2135 = vpop.f32.mrb[0].mxu0
        %2136 = vmatprep.mubr.f32.mxu0 0.0
        %2137 = vmatmul.mubr.f32.gmra.mrb[0].mxu0 %v1917
        %v2138 = vpop.f32.mrb[0].mxu0
        %v2139 = vadd.f32 0.0, %v2138
        %v2140 = vpop.f32.mrb[0].mxu0
        %2141 = vmatprep.mubr.f32.mxu0 0.0
        %2142 = vmatmul.mubr.f32.gmra.mrb[0].mxu0 %v1920
        %v2143 = vpop.f32.mrb[0].mxu0
        %v2144 = vadd.f32 0.0, %v2143
        %v2145 = vpop.f32.mrb[0].mxu0
        %2146 = vdwg.mxu0
        %2179 = vrot.lane.b32.xlu0 %v1989, 96
        %v2180 = vpop.permute.xlu0 %2179
        %2181 = vrot.lane.b32.xlu0 %v1994, 96
        %v2182 = vpop.permute.xlu0 %2181
        %2183 = vrot.lane.b32.xlu0 %v1999, 96
        %v2184 = vpop.permute.xlu0 %2183
        %2185 = vrot.lane.b32.xlu0 %v2004, 96
        %v2186 = vpop.permute.xlu0 %2185
        %2187 = vrot.lane.b32.xlu0 %v2009, 96
        %v2188 = vpop.permute.xlu0 %2187
        %2189 = vrot.lane.b32.xlu0 %v2014, 96
        %v2190 = vpop.permute.xlu0 %2189
        %2191 = vrot.lane.b32.xlu0 %v2019, 96
        %v2192 = vpop.permute.xlu0 %2191
        %2193 = vrot.lane.b32.xlu0 %v2024, 96
        %v2194 = vpop.permute.xlu0 %2193
        %2195 = vrot.lane.b32.xlu0 %v2029, 96
        %v2196 = vpop.permute.xlu0 %2195
        %2197 = vrot.lane.b32.xlu0 %v2034, 96
        %v2198 = vpop.permute.xlu0 %2197
        %2199 = vrot.lane.b32.xlu0 %v2039, 96
        %v2200 = vpop.permute.xlu0 %2199
        %2201 = vrot.lane.b32.xlu0 %v2044, 96
        %v2202 = vpop.permute.xlu0 %2201
        %2203 = vrot.lane.b32.xlu0 %v2049, 96
        %v2204 = vpop.permute.xlu0 %2203
        %2205 = vrot.lane.b32.xlu0 %v2054, 96
        %v2206 = vpop.permute.xlu0 %2205
        %2207 = vrot.lane.b32.xlu0 %v2059, 96
        %v2208 = vpop.permute.xlu0 %2207
        %2209 = vrot.lane.b32.xlu0 %v2064, 96
        %v2210 = vpop.permute.xlu0 %2209
        %2211 = vrot.lane.b32.xlu0 %v2069, 96
        %v2212 = vpop.permute.xlu0 %2211
        %2213 = vrot.lane.b32.xlu0 %v2074, 96
        %v2214 = vpop.permute.xlu0 %2213
        %2215 = vrot.lane.b32.xlu0 %v2079, 96
        %v2216 = vpop.permute.xlu0 %2215
        %2217 = vrot.lane.b32.xlu0 %v2084, 96
        %v2218 = vpop.permute.xlu0 %2217
        %2219 = vrot.lane.b32.xlu0 %v2089, 96
        %v2220 = vpop.permute.xlu0 %2219
        %2221 = vrot.lane.b32.xlu0 %v2094, 96
        %v2222 = vpop.permute.xlu0 %2221
        %2223 = vrot.lane.b32.xlu0 %v2099, 96
        %v2224 = vpop.permute.xlu0 %2223
        %2225 = vrot.lane.b32.xlu0 %v2104, 96
        %v2226 = vpop.permute.xlu0 %2225
        %2227 = vrot.lane.b32.xlu0 %v2109, 96
        %v2228 = vpop.permute.xlu0 %2227
        %2229 = vrot.lane.b32.xlu0 %v2114, 96
        %v2230 = vpop.permute.xlu0 %2229
        %2231 = vrot.lane.b32.xlu0 %v2119, 96
        %v2232 = vpop.permute.xlu0 %2231
        %2233 = vrot.lane.b32.xlu0 %v2124, 96
        %v2234 = vpop.permute.xlu0 %2233
        %2235 = vrot.lane.b32.xlu0 %v2129, 96
        %v2236 = vpop.permute.xlu0 %2235
        %2237 = vrot.lane.b32.xlu0 %v2134, 96
        %v2238 = vpop.permute.xlu0 %2237
        %2239 = vrot.lane.b32.xlu0 %v2139, 96
        %v2240 = vpop.permute.xlu0 %2239
        %2241 = vrot.lane.b32.xlu0 %v2144, 96
        %v2242 = vpop.permute.xlu0 %2241
        %v2275 = vmul.f32 %v1374, %v2180
        %v2276 = vmul.f32 %v1375, %v2182
        %v2277 = vmul.f32 %v1376, %v2184
        %v2278 = vmul.f32 %v1377, %v2186
        %v2279 = vmul.f32 %v1378, %v2188
        %v2280 = vmul.f32 %v1379, %v2190
        %v2281 = vmul.f32 %v1380, %v2192
        %v2282 = vmul.f32 %v1381, %v2194
        %v2283 = vmul.f32 %v1382, %v2196
        %v2284 = vmul.f32 %v1383, %v2198
        %v2285 = vmul.f32 %v1384, %v2200
        %v2286 = vmul.f32 %v1385, %v2202
        %v2287 = vmul.f32 %v1386, %v2204
        %v2288 = vmul.f32 %v1387, %v2206
        %v2289 = vmul.f32 %v1388, %v2208
        %v2290 = vmul.f32 %v1389, %v2210
        %v2291 = vmul.f32 %v1390, %v2212
        %v2292 = vmul.f32 %v1391, %v2214
        %v2293 = vmul.f32 %v1392, %v2216
        %v2294 = vmul.f32 %v1393, %v2218
        %v2295 = vmul.f32 %v1394, %v2220
        %v2296 = vmul.f32 %v1395, %v2222
        %v2297 = vmul.f32 %v1396, %v2224
        %v2298 = vmul.f32 %v1397, %v2226
        %v2299 = vmul.f32 %v1398, %v2228
        %v2300 = vmul.f32 %v1399, %v2230
        %v2301 = vmul.f32 %v1400, %v2232
        %v2302 = vmul.f32 %v1401, %v2234
        %v2303 = vmul.f32 %v1402, %v2236
        %v2304 = vmul.f32 %v1403, %v2238
        %v2305 = vmul.f32 %v1404, %v2240
        %v2306 = vmul.f32 %v1405, %v2242
        %v2307 = vxor.u32 %v2275, 2147483648
        %v2308 = vxor.u32 %v2276, 2147483648
        %v2309 = vxor.u32 %v2277, 2147483648
        %v2310 = vxor.u32 %v2278, 2147483648
        %v2311 = vxor.u32 %v2279, 2147483648
        %v2312 = vxor.u32 %v2280, 2147483648
        %v2313 = vxor.u32 %v2281, 2147483648
        %v2314 = vxor.u32 %v2282, 2147483648
        %v2315 = vxor.u32 %v2283, 2147483648
        %v2316 = vxor.u32 %v2284, 2147483648
        %v2317 = vxor.u32 %v2285, 2147483648
        %v2318 = vxor.u32 %v2286, 2147483648
        %v2319 = vxor.u32 %v2287, 2147483648
        %v2320 = vxor.u32 %v2288, 2147483648
        %v2321 = vxor.u32 %v2289, 2147483648
        %v2322 = vxor.u32 %v2290, 2147483648
        %v2323 = vxor.u32 %v2291, 2147483648
        %v2324 = vxor.u32 %v2292, 2147483648
        %v2325 = vxor.u32 %v2293, 2147483648
        %v2326 = vxor.u32 %v2294, 2147483648
        %v2327 = vxor.u32 %v2295, 2147483648
        %v2328 = vxor.u32 %v2296, 2147483648
        %v2329 = vxor.u32 %v2297, 2147483648
        %v2330 = vxor.u32 %v2298, 2147483648
        %v2331 = vxor.u32 %v2299, 2147483648
        %v2332 = vxor.u32 %v2300, 2147483648
        %v2333 = vxor.u32 %v2301, 2147483648
        %v2334 = vxor.u32 %v2302, 2147483648
        %v2335 = vxor.u32 %v2303, 2147483648
        %v2336 = vxor.u32 %v2304, 2147483648
        %v2337 = vxor.u32 %v2305, 2147483648
        %v2338 = vxor.u32 %v2306, 2147483648
        %v2339 = vmul.f32 %v2307, 1.442695
        %v2340 = vpow.pop %v2339
        %v2341 = vmul.f32 %v2308, 1.442695
        %v2342 = vpow.pop %v2341
        %v2343 = vmul.f32 %v2309, 1.442695
        %v2344 = vpow.pop %v2343
        %v2345 = vmul.f32 %v2310, 1.442695
        %v2346 = vpow.pop %v2345
        %v2347 = vmul.f32 %v2311, 1.442695
        %v2348 = vpow.pop %v2347
        %v2349 = vmul.f32 %v2312, 1.442695
        %v2350 = vpow.pop %v2349
        %v2351 = vmul.f32 %v2313, 1.442695
        %v2352 = vpow.pop %v2351
        %v2353 = vmul.f32 %v2314, 1.442695
        %v2354 = vpow.pop %v2353
        %v2355 = vmul.f32 %v2315, 1.442695
        %v2356 = vpow.pop %v2355
        %v2357 = vmul.f32 %v2316, 1.442695
        %v2358 = vpow.pop %v2357
        %v2359 = vmul.f32 %v2317, 1.442695
        %v2360 = vpow.pop %v2359
        %v2361 = vmul.f32 %v2318, 1.442695
        %v2362 = vpow.pop %v2361
        %v2363 = vmul.f32 %v2319, 1.442695
        %v2364 = vpow.pop %v2363
        %v2365 = vmul.f32 %v2320, 1.442695
        %v2366 = vpow.pop %v2365
        %v2367 = vmul.f32 %v2321, 1.442695
        %v2368 = vpow.pop %v2367
        %v2369 = vmul.f32 %v2322, 1.442695
        %v2370 = vpow.pop %v2369
        %v2371 = vmul.f32 %v2323, 1.442695
        %v2372 = vpow.pop %v2371
        %v2373 = vmul.f32 %v2324, 1.442695
        %v2374 = vpow.pop %v2373
        %v2375 = vmul.f32 %v2325, 1.442695
        %v2376 = vpow.pop %v2375
        %v2377 = vmul.f32 %v2326, 1.442695
        %v2378 = vpow.pop %v2377
        %v2379 = vmul.f32 %v2327, 1.442695
        %v2380 = vpow.pop %v2379
        %v2381 = vmul.f32 %v2328, 1.442695
        %v2382 = vpow.pop %v2381
        %v2383 = vmul.f32 %v2329, 1.442695
        %v2384 = vpow.pop %v2383
        %v2385 = vmul.f32 %v2330, 1.442695
        %v2386 = vpow.pop %v2385
        %v2387 = vmul.f32 %v2331, 1.442695
        %v2388 = vpow.pop %v2387
        %v2389 = vmul.f32 %v2332, 1.442695
        %v2390 = vpow.pop %v2389
        %v2391 = vmul.f32 %v2333, 1.442695
        %v2392 = vpow.pop %v2391
        %v2393 = vmul.f32 %v2334, 1.442695
        %v2394 = vpow.pop %v2393
        %v2395 = vmul.f32 %v2335, 1.442695
        %v2396 = vpow.pop %v2395
        %v2397 = vmul.f32 %v2336, 1.442695
        %v2398 = vpow.pop %v2397
        %v2399 = vmul.f32 %v2337, 1.442695
        %v2400 = vpow.pop %v2399
        %v2401 = vmul.f32 %v2338, 1.442695
        %v2402 = vpow.pop %v2401
        %v2403 = vadd.f32 %v2340, 1.0
        %v2404 = vadd.f32 %v2342, 1.0
        %v2405 = vadd.f32 %v2344, 1.0
        %v2406 = vadd.f32 %v2346, 1.0
        %v2407 = vadd.f32 %v2348, 1.0
        %v2408 = vadd.f32 %v2350, 1.0
        %v2409 = vadd.f32 %v2352, 1.0
        %v2410 = vadd.f32 %v2354, 1.0
        %v2411 = vadd.f32 %v2356, 1.0
        %v2412 = vadd.f32 %v2358, 1.0
        %v2413 = vadd.f32 %v2360, 1.0
        %v2414 = vadd.f32 %v2362, 1.0
        %v2415 = vadd.f32 %v2364, 1.0
        %v2416 = vadd.f32 %v2366, 1.0
        %v2417 = vadd.f32 %v2368, 1.0
        %v2418 = vadd.f32 %v2370, 1.0
        %v2419 = vadd.f32 %v2372, 1.0
        %v2420 = vadd.f32 %v2374, 1.0
        %v2421 = vadd.f32 %v2376, 1.0
        %v2422 = vadd.f32 %v2378, 1.0
        %v2423 = vadd.f32 %v2380, 1.0
        %v2424 = vadd.f32 %v2382, 1.0
        %v2425 = vadd.f32 %v2384, 1.0
        %v2426 = vadd.f32 %v2386, 1.0
        %v2427 = vadd.f32 %v2388, 1.0
        %v2428 = vadd.f32 %v2390, 1.0
        %v2429 = vadd.f32 %v2392, 1.0
        %v2430 = vadd.f32 %v2394, 1.0
        %v2431 = vadd.f32 %v2396, 1.0
        %v2432 = vadd.f32 %v2398, 1.0
        %v2433 = vadd.f32 %v2400, 1.0
        %v2434 = vadd.f32 %v2402, 1.0
        %v2435 = vrcp.pop %v2403
        %v2436 = vmul.f32 1.0, %v2435
        %v2437 = vrcp.pop %v2404
        %v2438 = vmul.f32 1.0, %v2437
        %v2439 = vrcp.pop %v2405
        %v2440 = vmul.f32 1.0, %v2439
        %v2441 = vrcp.pop %v2406
        %v2442 = vmul.f32 1.0, %v2441
        %v2443 = vrcp.pop %v2407
        %v2444 = vmul.f32 1.0, %v2443
        %v2445 = vrcp.pop %v2408
        %v2446 = vmul.f32 1.0, %v2445
        %v2447 = vrcp.pop %v2409
        %v2448 = vmul.f32 1.0, %v2447
        %v2449 = vrcp.pop %v2410
        %v2450 = vmul.f32 1.0, %v2449
        %v2451 = vrcp.pop %v2411
        %v2452 = vmul.f32 1.0, %v2451
        %v2453 = vrcp.pop %v2412
        %v2454 = vmul.f32 1.0, %v2453
        %v2455 = vrcp.pop %v2413
        %v2456 = vmul.f32 1.0, %v2455
        %v2457 = vrcp.pop %v2414
        %v2458 = vmul.f32 1.0, %v2457
        %v2459 = vrcp.pop %v2415
        %v2460 = vmul.f32 1.0, %v2459
        %v2461 = vrcp.pop %v2416
        %v2462 = vmul.f32 1.0, %v2461
        %v2463 = vrcp.pop %v2417
        %v2464 = vmul.f32 1.0, %v2463
        %v2465 = vrcp.pop %v2418
        %v2466 = vmul.f32 1.0, %v2465
        %v2467 = vrcp.pop %v2419
        %v2468 = vmul.f32 1.0, %v2467
        %v2469 = vrcp.pop %v2420
        %v2470 = vmul.f32 1.0, %v2469
        %v2471 = vrcp.pop %v2421
        %v2472 = vmul.f32 1.0, %v2471
        %v2473 = vrcp.pop %v2422
        %v2474 = vmul.f32 1.0, %v2473
        %v2475 = vrcp.pop %v2423
        %v2476 = vmul.f32 1.0, %v2475
        %v2477 = vrcp.pop %v2424
        %v2478 = vmul.f32 1.0, %v2477
        %v2479 = vrcp.pop %v2425
        %v2480 = vmul.f32 1.0, %v2479
        %v2481 = vrcp.pop %v2426
        %v2482 = vmul.f32 1.0, %v2481
        %v2483 = vrcp.pop %v2427
        %v2484 = vmul.f32 1.0, %v2483
        %v2485 = vrcp.pop %v2428
        %v2486 = vmul.f32 1.0, %v2485
        %v2487 = vrcp.pop %v2429
        %v2488 = vmul.f32 1.0, %v2487
        %v2489 = vrcp.pop %v2430
        %v2490 = vmul.f32 1.0, %v2489
        %v2491 = vrcp.pop %v2431
        %v2492 = vmul.f32 1.0, %v2491
        %v2493 = vrcp.pop %v2432
        %v2494 = vmul.f32 1.0, %v2493
        %v2495 = vrcp.pop %v2433
        %v2496 = vmul.f32 1.0, %v2495
        %v2497 = vrcp.pop %v2434
        %v2498 = vmul.f32 1.0, %v2497
        %2531 = vrot.lane.b32.xlu0 %v2436, 32
        %v2532 = vpop.permute.xlu0 %2531
        %2533 = vrot.lane.b32.xlu0 %v2438, 32
        %v2534 = vpop.permute.xlu0 %2533
        %2535 = vrot.lane.b32.xlu0 %v2440, 32
        %v2536 = vpop.permute.xlu0 %2535
        %2537 = vrot.lane.b32.xlu0 %v2442, 32
        %v2538 = vpop.permute.xlu0 %2537
        %2539 = vrot.lane.b32.xlu0 %v2444, 32
        %v2540 = vpop.permute.xlu0 %2539
        %2541 = vrot.lane.b32.xlu0 %v2446, 32
        %v2542 = vpop.permute.xlu0 %2541
        %2543 = vrot.lane.b32.xlu0 %v2448, 32
        %v2544 = vpop.permute.xlu0 %2543
        %2545 = vrot.lane.b32.xlu0 %v2450, 32
        %v2546 = vpop.permute.xlu0 %2545
        %2547 = vrot.lane.b32.xlu0 %v2452, 32
        %v2548 = vpop.permute.xlu0 %2547
        %2549 = vrot.lane.b32.xlu0 %v2454, 32
        %v2550 = vpop.permute.xlu0 %2549
        %2551 = vrot.lane.b32.xlu0 %v2456, 32
        %v2552 = vpop.permute.xlu0 %2551
        %2553 = vrot.lane.b32.xlu0 %v2458, 32
        %v2554 = vpop.permute.xlu0 %2553
        %2555 = vrot.lane.b32.xlu0 %v2460, 32
        %v2556 = vpop.permute.xlu0 %2555
        %2557 = vrot.lane.b32.xlu0 %v2462, 32
        %v2558 = vpop.permute.xlu0 %2557
        %2559 = vrot.lane.b32.xlu0 %v2464, 32
        %v2560 = vpop.permute.xlu0 %2559
        %2561 = vrot.lane.b32.xlu0 %v2466, 32
        %v2562 = vpop.permute.xlu0 %2561
        %2563 = vrot.lane.b32.xlu0 %v2468, 32
        %v2564 = vpop.permute.xlu0 %2563
        %2565 = vrot.lane.b32.xlu0 %v2470, 32
        %v2566 = vpop.permute.xlu0 %2565
        %2567 = vrot.lane.b32.xlu0 %v2472, 32
        %v2568 = vpop.permute.xlu0 %2567
        %2569 = vrot.lane.b32.xlu0 %v2474, 32
        %v2570 = vpop.permute.xlu0 %2569
        %2571 = vrot.lane.b32.xlu0 %v2476, 32
        %v2572 = vpop.permute.xlu0 %2571
        %2573 = vrot.lane.b32.xlu0 %v2478, 32
        %v2574 = vpop.permute.xlu0 %2573
        %2575 = vrot.lane.b32.xlu0 %v2480, 32
        %v2576 = vpop.permute.xlu0 %2575
        %2577 = vrot.lane.b32.xlu0 %v2482, 32
        %v2578 = vpop.permute.xlu0 %2577
        %2579 = vrot.lane.b32.xlu0 %v2484, 32
        %v2580 = vpop.permute.xlu0 %2579
        %2581 = vrot.lane.b32.xlu0 %v2486, 32
        %v2582 = vpop.permute.xlu0 %2581
        %2583 = vrot.lane.b32.xlu0 %v2488, 32
        %v2584 = vpop.permute.xlu0 %2583
        %2585 = vrot.lane.b32.xlu0 %v2490, 32
        %v2586 = vpop.permute.xlu0 %2585
        %2587 = vrot.lane.b32.xlu0 %v2492, 32
        %v2588 = vpop.permute.xlu0 %2587
        %2589 = vrot.lane.b32.xlu0 %v2494, 32
        %v2590 = vpop.permute.xlu0 %2589
        %2591 = vrot.lane.b32.xlu0 %v2496, 32
        %v2592 = vpop.permute.xlu0 %2591
        %2593 = vrot.lane.b32.xlu0 %v2498, 32
        %v2594 = vpop.permute.xlu0 %2593
        %v2627 = vadd.f32 %v1758, %v2532
        %v2628 = vadd.f32 %v1759, %v2534
        %v2629 = vadd.f32 %v1760, %v2536
        %v2630 = vadd.f32 %v1761, %v2538
        %v2631 = vadd.f32 %v1762, %v2540
        %v2632 = vadd.f32 %v1763, %v2542
        %v2633 = vadd.f32 %v1764, %v2544
        %v2634 = vadd.f32 %v1765, %v2546
        %v2635 = vadd.f32 %v1766, %v2548
        %v2636 = vadd.f32 %v1767, %v2550
        %v2637 = vadd.f32 %v1768, %v2552
        %v2638 = vadd.f32 %v1769, %v2554
        %v2639 = vadd.f32 %v1770, %v2556
        %v2640 = vadd.f32 %v1771, %v2558
        %v2641 = vadd.f32 %v1772, %v2560
        %v2642 = vadd.f32 %v1773, %v2562
        %v2643 = vadd.f32 %v1774, %v2564
        %v2644 = vadd.f32 %v1775, %v2566
        %v2645 = vadd.f32 %v1776, %v2568
        %v2646 = vadd.f32 %v1777, %v2570
        %v2647 = vadd.f32 %v1778, %v2572
        %v2648 = vadd.f32 %v1779, %v2574
        %v2649 = vadd.f32 %v1780, %v2576
        %v2650 = vadd.f32 %v1781, %v2578
        %v2651 = vadd.f32 %v1782, %v2580
        %v2652 = vadd.f32 %v1783, %v2582
        %v2653 = vadd.f32 %v1784, %v2584
        %v2654 = vadd.f32 %v1785, %v2586
        %v2655 = vadd.f32 %v1786, %v2588
        %v2656 = vadd.f32 %v1787, %v2590
        %v2657 = vadd.f32 %v1788, %v2592
        %v2658 = vadd.f32 %v1789, %v2594
        %s2659 = scalar_lea.vmem %s582, 256 [#allocation2]
        %v2660 = vld [vmem:[%s2659] sm:$0xff]
        %v2661 = vld [vmem:[%s2659 + $0x8] sm:$0xff]
        %v2662 = vld [vmem:[%s2659 + $0x10] sm:$0xff]
        %v2663 = vld [vmem:[%s2659 + $0x18] sm:$0xff]
        %v2664 = vld [vmem:[%s2659 + $0x20] sm:$0xff]
        %v2665 = vld [vmem:[%s2659 + $0x28] sm:$0xff]
        %v2666 = vld [vmem:[%s2659 + $0x30] sm:$0xff]
        %v2667 = vld [vmem:[%s2659 + $0x38] sm:$0xff]
        %v2668 = vld [vmem:[%s2659 + $0x40] sm:$0xff]
        %v2669 = vld [vmem:[%s2659 + $0x48] sm:$0xff]
        %v2670 = vld [vmem:[%s2659 + $0x50] sm:$0xff]
        %v2671 = vld [vmem:[%s2659 + $0x58] sm:$0xff]
        %v2672 = vld [vmem:[%s2659 + $0x60] sm:$0xff]
        %v2673 = vld [vmem:[%s2659 + $0x68] sm:$0xff]
        %v2674 = vld [vmem:[%s2659 + $0x70] sm:$0xff]
        %v2675 = vld [vmem:[%s2659 + $0x78] sm:$0xff]
        %v2676 = vld [vmem:[%s2659 + $0x80] sm:$0xff]
        %v2677 = vld [vmem:[%s2659 + $0x88] sm:$0xff]
        %v2678 = vld [vmem:[%s2659 + $0x90] sm:$0xff]
        %v2679 = vld [vmem:[%s2659 + $0x98] sm:$0xff]
        %v2680 = vld [vmem:[%s2659 + $0xa0] sm:$0xff]
        %v2681 = vld [vmem:[%s2659 + $0xa8] sm:$0xff]
        %v2682 = vld [vmem:[%s2659 + $0xb0] sm:$0xff]
        %v2683 = vld [vmem:[%s2659 + $0xb8] sm:$0xff]
        %v2684 = vld [vmem:[%s2659 + $0xc0] sm:$0xff]
        %v2685 = vld [vmem:[%s2659 + $0xc8] sm:$0xff]
        %v2686 = vld [vmem:[%s2659 + $0xd0] sm:$0xff]
        %v2687 = vld [vmem:[%s2659 + $0xd8] sm:$0xff]
        %v2688 = vld [vmem:[%s2659 + $0xe0] sm:$0xff]
        %v2689 = vld [vmem:[%s2659 + $0xe8] sm:$0xff]
        %v2690 = vld [vmem:[%s2659 + $0xf0] sm:$0xff]
        %v2691 = vld [vmem:[%s2659 + $0xf8] sm:$0xff]
        %v2693 = vsel %vm723, %v2660, 0
        %v2696 = vsel %vm723, %v2661, 0
        %v2699 = vsel %vm723, %v2662, 0
        %v2702 = vsel %vm723, %v2663, 0
        %v2705 = vsel %vm723, %v2664, 0
        %v2708 = vsel %vm723, %v2665, 0
        %v2711 = vsel %vm723, %v2666, 0
        %v2714 = vsel %vm723, %v2667, 0
        %v2717 = vsel %vm723, %v2668, 0
        %v2720 = vsel %vm723, %v2669, 0
        %v2723 = vsel %vm723, %v2670, 0
        %v2726 = vsel %vm723, %v2671, 0
        %v2729 = vsel %vm723, %v2672, 0
        %v2732 = vsel %vm723, %v2673, 0
        %v2735 = vsel %vm723, %v2674, 0
        %v2738 = vsel %vm723, %v2675, 0
        %v2741 = vsel %vm723, %v2676, 0
        %v2744 = vsel %vm723, %v2677, 0
        %v2747 = vsel %vm723, %v2678, 0
        %v2750 = vsel %vm723, %v2679, 0
        %v2753 = vsel %vm723, %v2680, 0
        %v2756 = vsel %vm723, %v2681, 0
        %v2759 = vsel %vm723, %v2682, 0
        %v2762 = vsel %vm723, %v2683, 0
        %v2765 = vsel %vm723, %v2684, 0
        %v2768 = vsel %vm723, %v2685, 0
        %v2771 = vsel %vm723, %v2686, 0
        %v2774 = vsel %vm723, %v2687, 0
        %v2777 = vsel %vm723, %v2688, 0
        %v2780 = vsel %vm723, %v2689, 0
        %v2783 = vsel %vm723, %v2690, 0
        %v2786 = vsel %vm723, %v2691, 0
        %2788 = vmatprep.subr.mxu0 0.0
        %2789 = vmatpush1.msra.mxu0 %v1790
        %2790 = vmatprep.subr.mxu0 0.0
        %2791 = vmatpush1.msra.mxu0 %v1791
        %2792 = vmatprep.subr.mxu0 0.0
        %2793 = vmatpush1.msra.mxu0 %v1792
        %2794 = vmatprep.subr.mxu0 0.0
        %2795 = vmatpush1.msra.mxu0 %v1793
        %2796 = vmatprep.subr.mxu0 0.0
        %2797 = vmatpush1.msra.mxu0 0.0
        %2798 = vmatprep.subr.mxu0 0.0
        %2799 = vmatpush1.msra.mxu0 0.0
        %2800 = vmatprep.subr.mxu0 0.0
        %2801 = vmatpush1.msra.mxu0 0.0
        %2802 = vmatprep.subr.mxu0 0.0
        %2803 = vmatpush1.msra.mxu0 0.0
        %2804 = vmatprep.subr.mxu0 0.0
        %2805 = vmatpush1.msra.mxu0 0.0
        %2806 = vmatprep.subr.mxu0 0.0
        %2807 = vmatpush1.msra.mxu0 0.0
        %2808 = vmatprep.subr.mxu0 0.0
        %2809 = vmatpush1.msra.mxu0 0.0
        %2810 = vmatprep.subr.mxu0 0.0
        %2811 = vmatpush1.msra.mxu0 0.0
        %2812 = vmatprep.subr.mxu0 0.0
        %2813 = vmatpush1.msra.mxu0 0.0
        %2814 = vmatprep.subr.mxu0 0.0
        %2815 = vmatpush1.msra.mxu0 0.0
        %2816 = vmatprep.subr.mxu0 0.0
        %2817 = vmatpush1.msra.mxu0 0.0
        %2818 = vmatprep.subr.mxu0 0.0
        %2819 = vmatpush1.msra.mxu0 0.0
        %2820 = vmatprep.subr.mxu0 0.0
        %2821 = vmatpush1.msra.mxu0 0.0
        %2822 = vmatprep.subr.mxu0 0.0
        %2823 = vmatpush1.msra.mxu0 0.0
        %2824 = vmatprep.subr.mxu0 0.0
        %2825 = vmatpush1.msra.mxu0 0.0
        %2826 = vmatprep.subr.mxu0 0.0
        %2827 = vmatpush1.msra.mxu0 0.0
        %2828 = vmatprep.subr.mxu0 0.0
        %2829 = vmatpush1.msra.mxu0 0.0
        %2830 = vmatprep.subr.mxu0 0.0
        %2831 = vmatpush1.msra.mxu0 0.0
        %2832 = vmatprep.subr.mxu0 0.0
        %2833 = vmatpush1.msra.mxu0 0.0
        %2834 = vmatprep.subr.mxu0 0.0
        %2835 = vmatpush1.msra.mxu0 0.0
        %2836 = vmatprep.subr.mxu0 0.0
        %2837 = vmatpush1.msra.mxu0 0.0
        %2838 = vmatprep.subr.mxu0 0.0
        %2839 = vmatpush1.msra.mxu0 0.0
        %2840 = vmatprep.subr.mxu0 0.0
        %2841 = vmatpush1.msra.mxu0 0.0
        %2842 = vmatprep.subr.mxu0 0.0
        %2843 = vmatpush1.msra.mxu0 0.0
        %2844 = vmatprep.subr.mxu0 0.0
        %2845 = vmatpush1.msra.mxu0 0.0
        %2846 = vmatprep.subr.mxu0 0.0
        %2847 = vmatpush1.msra.mxu0 0.0
        %2848 = vmatprep.subr.mxu0 0.0
        %2849 = vmatpush1.msra.mxu0 0.0
        %2850 = vmatprep.subr.mxu0 0.0
        %2851 = vmatpush1.msra.mxu0 0.0
        %2852 = vmatprep.mubr.f32.mxu0 0.0
        %2853 = vmatmul.mubr.f32.gmra.mrb[0].mxu0 %v2693
        %v2854 = vpop.f32.mrb[0].mxu0
        %v2855 = vadd.f32 0.0, %v2854
        %v2856 = vpop.f32.mrb[0].mxu0
        %2857 = vmatprep.mubr.f32.mxu0 0.0
        %2858 = vmatmul.mubr.f32.gmra.mrb[0].mxu0 %v2696
        %v2859 = vpop.f32.mrb[0].mxu0
        %v2860 = vadd.f32 0.0, %v2859
        %v2861 = vpop.f32.mrb[0].mxu0
        %2862 = vmatprep.mubr.f32.mxu0 0.0
        %2863 = vmatmul.mubr.f32.gmra.mrb[0].mxu0 %v2699
        %v2864 = vpop.f32.mrb[0].mxu0
        %v2865 = vadd.f32 0.0, %v2864
        %v2866 = vpop.f32.mrb[0].mxu0
        %2867 = vmatprep.mubr.f32.mxu0 0.0
        %2868 = vmatmul.mubr.f32.gmra.mrb[0].mxu0 %v2702
        %v2869 = vpop.f32.mrb[0].mxu0
        %v2870 = vadd.f32 0.0, %v2869
        %v2871 = vpop.f32.mrb[0].mxu0
        %2872 = vmatprep.mubr.f32.mxu0 0.0
        %2873 = vmatmul.mubr.f32.gmra.mrb[0].mxu0 %v2705
        %v2874 = vpop.f32.mrb[0].mxu0
        %v2875 = vadd.f32 0.0, %v2874
        %v2876 = vpop.f32.mrb[0].mxu0
        %2877 = vmatprep.mubr.f32.mxu0 0.0
        %2878 = vmatmul.mubr.f32.gmra.mrb[0].mxu0 %v2708
        %v2879 = vpop.f32.mrb[0].mxu0
        %v2880 = vadd.f32 0.0, %v2879
        %v2881 = vpop.f32.mrb[0].mxu0
        %2882 = vmatprep.mubr.f32.mxu0 0.0
        %2883 = vmatmul.mubr.f32.gmra.mrb[0].mxu0 %v2711
        %v2884 = vpop.f32.mrb[0].mxu0
        %v2885 = vadd.f32 0.0, %v2884
        %v2886 = vpop.f32.mrb[0].mxu0
        %2887 = vmatprep.mubr.f32.mxu0 0.0
        %2888 = vmatmul.mubr.f32.gmra.mrb[0].mxu0 %v2714
        %v2889 = vpop.f32.mrb[0].mxu0
        %v2890 = vadd.f32 0.0, %v2889
        %v2891 = vpop.f32.mrb[0].mxu0
        %2892 = vmatprep.mubr.f32.mxu0 0.0
        %2893 = vmatmul.mubr.f32.gmra.mrb[0].mxu0 %v2717
        %v2894 = vpop.f32.mrb[0].mxu0
        %v2895 = vadd.f32 0.0, %v2894
        %v2896 = vpop.f32.mrb[0].mxu0
        %2897 = vmatprep.mubr.f32.mxu0 0.0
        %2898 = vmatmul.mubr.f32.gmra.mrb[0].mxu0 %v2720
        %v2899 = vpop.f32.mrb[0].mxu0
        %v2900 = vadd.f32 0.0, %v2899
        %v2901 = vpop.f32.mrb[0].mxu0
        %2902 = vmatprep.mubr.f32.mxu0 0.0
        %2903 = vmatmul.mubr.f32.gmra.mrb[0].mxu0 %v2723
        %v2904 = vpop.f32.mrb[0].mxu0
        %v2905 = vadd.f32 0.0, %v2904
        %v2906 = vpop.f32.mrb[0].mxu0
        %2907 = vmatprep.mubr.f32.mxu0 0.0
        %2908 = vmatmul.mubr.f32.gmra.mrb[0].mxu0 %v2726
        %v2909 = vpop.f32.mrb[0].mxu0
        %v2910 = vadd.f32 0.0, %v2909
        %v2911 = vpop.f32.mrb[0].mxu0
        %2912 = vmatprep.mubr.f32.mxu0 0.0
        %2913 = vmatmul.mubr.f32.gmra.mrb[0].mxu0 %v2729
        %v2914 = vpop.f32.mrb[0].mxu0
        %v2915 = vadd.f32 0.0, %v2914
        %v2916 = vpop.f32.mrb[0].mxu0
        %2917 = vmatprep.mubr.f32.mxu0 0.0
        %2918 = vmatmul.mubr.f32.gmra.mrb[0].mxu0 %v2732
        %v2919 = vpop.f32.mrb[0].mxu0
        %v2920 = vadd.f32 0.0, %v2919
        %v2921 = vpop.f32.mrb[0].mxu0
        %2922 = vmatprep.mubr.f32.mxu0 0.0
        %2923 = vmatmul.mubr.f32.gmra.mrb[0].mxu0 %v2735
        %v2924 = vpop.f32.mrb[0].mxu0
        %v2925 = vadd.f32 0.0, %v2924
        %v2926 = vpop.f32.mrb[0].mxu0
        %2927 = vmatprep.mubr.f32.mxu0 0.0
        %2928 = vmatmul.mubr.f32.gmra.mrb[0].mxu0 %v2738
        %v2929 = vpop.f32.mrb[0].mxu0
        %v2930 = vadd.f32 0.0, %v2929
        %v2931 = vpop.f32.mrb[0].mxu0
        %2932 = vmatprep.mubr.f32.mxu0 0.0
        %2933 = vmatmul.mubr.f32.gmra.mrb[0].mxu0 %v2741
        %v2934 = vpop.f32.mrb[0].mxu0
        %v2935 = vadd.f32 0.0, %v2934
        %v2936 = vpop.f32.mrb[0].mxu0
        %2937 = vmatprep.mubr.f32.mxu0 0.0
        %2938 = vmatmul.mubr.f32.gmra.mrb[0].mxu0 %v2744
        %v2939 = vpop.f32.mrb[0].mxu0
        %v2940 = vadd.f32 0.0, %v2939
        %v2941 = vpop.f32.mrb[0].mxu0
        %2942 = vmatprep.mubr.f32.mxu0 0.0
        %2943 = vmatmul.mubr.f32.gmra.mrb[0].mxu0 %v2747
        %v2944 = vpop.f32.mrb[0].mxu0
        %v2945 = vadd.f32 0.0, %v2944
        %v2946 = vpop.f32.mrb[0].mxu0
        %2947 = vmatprep.mubr.f32.mxu0 0.0
        %2948 = vmatmul.mubr.f32.gmra.mrb[0].mxu0 %v2750
        %v2949 = vpop.f32.mrb[0].mxu0
        %v2950 = vadd.f32 0.0, %v2949
        %v2951 = vpop.f32.mrb[0].mxu0
        %2952 = vmatprep.mubr.f32.mxu0 0.0
        %2953 = vmatmul.mubr.f32.gmra.mrb[0].mxu0 %v2753
        %v2954 = vpop.f32.mrb[0].mxu0
        %v2955 = vadd.f32 0.0, %v2954
        %v2956 = vpop.f32.mrb[0].mxu0
        %2957 = vmatprep.mubr.f32.mxu0 0.0
        %2958 = vmatmul.mubr.f32.gmra.mrb[0].mxu0 %v2756
        %v2959 = vpop.f32.mrb[0].mxu0
        %v2960 = vadd.f32 0.0, %v2959
        %v2961 = vpop.f32.mrb[0].mxu0
        %2962 = vmatprep.mubr.f32.mxu0 0.0
        %2963 = vmatmul.mubr.f32.gmra.mrb[0].mxu0 %v2759
        %v2964 = vpop.f32.mrb[0].mxu0
        %v2965 = vadd.f32 0.0, %v2964
        %v2966 = vpop.f32.mrb[0].mxu0
        %2967 = vmatprep.mubr.f32.mxu0 0.0
        %2968 = vmatmul.mubr.f32.gmra.mrb[0].mxu0 %v2762
        %v2969 = vpop.f32.mrb[0].mxu0
        %v2970 = vadd.f32 0.0, %v2969
        %v2971 = vpop.f32.mrb[0].mxu0
        %2972 = vmatprep.mubr.f32.mxu0 0.0
        %2973 = vmatmul.mubr.f32.gmra.mrb[0].mxu0 %v2765
        %v2974 = vpop.f32.mrb[0].mxu0
        %v2975 = vadd.f32 0.0, %v2974
        %v2976 = vpop.f32.mrb[0].mxu0
        %2977 = vmatprep.mubr.f32.mxu0 0.0
        %2978 = vmatmul.mubr.f32.gmra.mrb[0].mxu0 %v2768
        %v2979 = vpop.f32.mrb[0].mxu0
        %v2980 = vadd.f32 0.0, %v2979
        %v2981 = vpop.f32.mrb[0].mxu0
        %2982 = vmatprep.mubr.f32.mxu0 0.0
        %2983 = vmatmul.mubr.f32.gmra.mrb[0].mxu0 %v2771
        %v2984 = vpop.f32.mrb[0].mxu0
        %v2985 = vadd.f32 0.0, %v2984
        %v2986 = vpop.f32.mrb[0].mxu0
        %2987 = vmatprep.mubr.f32.mxu0 0.0
        %2988 = vmatmul.mubr.f32.gmra.mrb[0].mxu0 %v2774
        %v2989 = vpop.f32.mrb[0].mxu0
        %v2990 = vadd.f32 0.0, %v2989
        %v2991 = vpop.f32.mrb[0].mxu0
        %2992 = vmatprep.mubr.f32.mxu0 0.0
        %2993 = vmatmul.mubr.f32.gmra.mrb[0].mxu0 %v2777
        %v2994 = vpop.f32.mrb[0].mxu0
        %v2995 = vadd.f32 0.0, %v2994
        %v2996 = vpop.f32.mrb[0].mxu0
        %2997 = vmatprep.mubr.f32.mxu0 0.0
        %2998 = vmatmul.mubr.f32.gmra.mrb[0].mxu0 %v2780
        %v2999 = vpop.f32.mrb[0].mxu0
        %v3000 = vadd.f32 0.0, %v2999
        %v3001 = vpop.f32.mrb[0].mxu0
        %3002 = vmatprep.mubr.f32.mxu0 0.0
        %3003 = vmatmul.mubr.f32.gmra.mrb[0].mxu0 %v2783
        %v3004 = vpop.f32.mrb[0].mxu0
        %v3005 = vadd.f32 0.0, %v3004
        %v3006 = vpop.f32.mrb[0].mxu0
        %3007 = vmatprep.mubr.f32.mxu0 0.0
        %3008 = vmatmul.mubr.f32.gmra.mrb[0].mxu0 %v2786
        %v3009 = vpop.f32.mrb[0].mxu0
        %v3010 = vadd.f32 0.0, %v3009
        %v3011 = vpop.f32.mrb[0].mxu0
        %3012 = vdwg.mxu0
        %3045 = vrot.lane.b32.xlu0 %v2855, 96
        %v3046 = vpop.permute.xlu0 %3045
        %3047 = vrot.lane.b32.xlu0 %v2860, 96
        %v3048 = vpop.permute.xlu0 %3047
        %3049 = vrot.lane.b32.xlu0 %v2865, 96
        %v3050 = vpop.permute.xlu0 %3049
        %3051 = vrot.lane.b32.xlu0 %v2870, 96
        %v3052 = vpop.permute.xlu0 %3051
        %3053 = vrot.lane.b32.xlu0 %v2875, 96
        %v3054 = vpop.permute.xlu0 %3053
        %3055 = vrot.lane.b32.xlu0 %v2880, 96
        %v3056 = vpop.permute.xlu0 %3055
        %3057 = vrot.lane.b32.xlu0 %v2885, 96
        %v3058 = vpop.permute.xlu0 %3057
        %3059 = vrot.lane.b32.xlu0 %v2890, 96
        %v3060 = vpop.permute.xlu0 %3059
        %3061 = vrot.lane.b32.xlu0 %v2895, 96
        %v3062 = vpop.permute.xlu0 %3061
        %3063 = vrot.lane.b32.xlu0 %v2900, 96
        %v3064 = vpop.permute.xlu0 %3063
        %3065 = vrot.lane.b32.xlu0 %v2905, 96
        %v3066 = vpop.permute.xlu0 %3065
        %3067 = vrot.lane.b32.xlu0 %v2910, 96
        %v3068 = vpop.permute.xlu0 %3067
        %3069 = vrot.lane.b32.xlu0 %v2915, 96
        %v3070 = vpop.permute.xlu0 %3069
        %3071 = vrot.lane.b32.xlu0 %v2920, 96
        %v3072 = vpop.permute.xlu0 %3071
        %3073 = vrot.lane.b32.xlu0 %v2925, 96
        %v3074 = vpop.permute.xlu0 %3073
        %3075 = vrot.lane.b32.xlu0 %v2930, 96
        %v3076 = vpop.permute.xlu0 %3075
        %3077 = vrot.lane.b32.xlu0 %v2935, 96
        %v3078 = vpop.permute.xlu0 %3077
        %3079 = vrot.lane.b32.xlu0 %v2940, 96
        %v3080 = vpop.permute.xlu0 %3079
        %3081 = vrot.lane.b32.xlu0 %v2945, 96
        %v3082 = vpop.permute.xlu0 %3081
        %3083 = vrot.lane.b32.xlu0 %v2950, 96
        %v3084 = vpop.permute.xlu0 %3083
        %3085 = vrot.lane.b32.xlu0 %v2955, 96
        %v3086 = vpop.permute.xlu0 %3085
        %3087 = vrot.lane.b32.xlu0 %v2960, 96
        %v3088 = vpop.permute.xlu0 %3087
        %3089 = vrot.lane.b32.xlu0 %v2965, 96
        %v3090 = vpop.permute.xlu0 %3089
        %3091 = vrot.lane.b32.xlu0 %v2970, 96
        %v3092 = vpop.permute.xlu0 %3091
        %3093 = vrot.lane.b32.xlu0 %v2975, 96
        %v3094 = vpop.permute.xlu0 %3093
        %3095 = vrot.lane.b32.xlu0 %v2980, 96
        %v3096 = vpop.permute.xlu0 %3095
        %3097 = vrot.lane.b32.xlu0 %v2985, 96
        %v3098 = vpop.permute.xlu0 %3097
        %3099 = vrot.lane.b32.xlu0 %v2990, 96
        %v3100 = vpop.permute.xlu0 %3099
        %3101 = vrot.lane.b32.xlu0 %v2995, 96
        %v3102 = vpop.permute.xlu0 %3101
        %3103 = vrot.lane.b32.xlu0 %v3000, 96
        %v3104 = vpop.permute.xlu0 %3103
        %3105 = vrot.lane.b32.xlu0 %v3005, 96
        %v3106 = vpop.permute.xlu0 %3105
        %3107 = vrot.lane.b32.xlu0 %v3010, 96
        %v3108 = vpop.permute.xlu0 %3107
        %v3141 = vmul.f32 %v1374, %v3046
        %v3142 = vmul.f32 %v1375, %v3048
        %v3143 = vmul.f32 %v1376, %v3050
        %v3144 = vmul.f32 %v1377, %v3052
        %v3145 = vmul.f32 %v1378, %v3054
        %v3146 = vmul.f32 %v1379, %v3056
        %v3147 = vmul.f32 %v1380, %v3058
        %v3148 = vmul.f32 %v1381, %v3060
        %v3149 = vmul.f32 %v1382, %v3062
        %v3150 = vmul.f32 %v1383, %v3064
        %v3151 = vmul.f32 %v1384, %v3066
        %v3152 = vmul.f32 %v1385, %v3068
        %v3153 = vmul.f32 %v1386, %v3070
        %v3154 = vmul.f32 %v1387, %v3072
        %v3155 = vmul.f32 %v1388, %v3074
        %v3156 = vmul.f32 %v1389, %v3076
        %v3157 = vmul.f32 %v1390, %v3078
        %v3158 = vmul.f32 %v1391, %v3080
        %v3159 = vmul.f32 %v1392, %v3082
        %v3160 = vmul.f32 %v1393, %v3084
        %v3161 = vmul.f32 %v1394, %v3086
        %v3162 = vmul.f32 %v1395, %v3088
        %v3163 = vmul.f32 %v1396, %v3090
        %v3164 = vmul.f32 %v1397, %v3092
        %v3165 = vmul.f32 %v1398, %v3094
        %v3166 = vmul.f32 %v1399, %v3096
        %v3167 = vmul.f32 %v1400, %v3098
        %v3168 = vmul.f32 %v1401, %v3100
        %v3169 = vmul.f32 %v1402, %v3102
        %v3170 = vmul.f32 %v1403, %v3104
        %v3171 = vmul.f32 %v1404, %v3106
        %v3172 = vmul.f32 %v1405, %v3108
        %v3173 = vxor.u32 %v3141, 2147483648
        %v3174 = vxor.u32 %v3142, 2147483648
        %v3175 = vxor.u32 %v3143, 2147483648
        %v3176 = vxor.u32 %v3144, 2147483648
        %v3177 = vxor.u32 %v3145, 2147483648
        %v3178 = vxor.u32 %v3146, 2147483648
        %v3179 = vxor.u32 %v3147, 2147483648
        %v3180 = vxor.u32 %v3148, 2147483648
        %v3181 = vxor.u32 %v3149, 2147483648
        %v3182 = vxor.u32 %v3150, 2147483648
        %v3183 = vxor.u32 %v3151, 2147483648
        %v3184 = vxor.u32 %v3152, 2147483648
        %v3185 = vxor.u32 %v3153, 2147483648
        %v3186 = vxor.u32 %v3154, 2147483648
        %v3187 = vxor.u32 %v3155, 2147483648
        %v3188 = vxor.u32 %v3156, 2147483648
        %v3189 = vxor.u32 %v3157, 2147483648
        %v3190 = vxor.u32 %v3158, 2147483648
        %v3191 = vxor.u32 %v3159, 2147483648
        %v3192 = vxor.u32 %v3160, 2147483648
        %v3193 = vxor.u32 %v3161, 2147483648
        %v3194 = vxor.u32 %v3162, 2147483648
        %v3195 = vxor.u32 %v3163, 2147483648
        %v3196 = vxor.u32 %v3164, 2147483648
        %v3197 = vxor.u32 %v3165, 2147483648
        %v3198 = vxor.u32 %v3166, 2147483648
        %v3199 = vxor.u32 %v3167, 2147483648
        %v3200 = vxor.u32 %v3168, 2147483648
        %v3201 = vxor.u32 %v3169, 2147483648
        %v3202 = vxor.u32 %v3170, 2147483648
        %v3203 = vxor.u32 %v3171, 2147483648
        %v3204 = vxor.u32 %v3172, 2147483648
        %v3205 = vmul.f32 %v3173, 1.442695
        %v3206 = vpow.pop %v3205
        %v3207 = vmul.f32 %v3174, 1.442695
        %v3208 = vpow.pop %v3207
        %v3209 = vmul.f32 %v3175, 1.442695
        %v3210 = vpow.pop %v3209
        %v3211 = vmul.f32 %v3176, 1.442695
        %v3212 = vpow.pop %v3211
        %v3213 = vmul.f32 %v3177, 1.442695
        %v3214 = vpow.pop %v3213
        %v3215 = vmul.f32 %v3178, 1.442695
        %v3216 = vpow.pop %v3215
        %v3217 = vmul.f32 %v3179, 1.442695
        %v3218 = vpow.pop %v3217
        %v3219 = vmul.f32 %v3180, 1.442695
        %v3220 = vpow.pop %v3219
        %v3221 = vmul.f32 %v3181, 1.442695
        %v3222 = vpow.pop %v3221
        %v3223 = vmul.f32 %v3182, 1.442695
        %v3224 = vpow.pop %v3223
        %v3225 = vmul.f32 %v3183, 1.442695
        %v3226 = vpow.pop %v3225
        %v3227 = vmul.f32 %v3184, 1.442695
        %v3228 = vpow.pop %v3227
        %v3229 = vmul.f32 %v3185, 1.442695
        %v3230 = vpow.pop %v3229
        %v3231 = vmul.f32 %v3186, 1.442695
        %v3232 = vpow.pop %v3231
        %v3233 = vmul.f32 %v3187, 1.442695
        %v3234 = vpow.pop %v3233
        %v3235 = vmul.f32 %v3188, 1.442695
        %v3236 = vpow.pop %v3235
        %v3237 = vmul.f32 %v3189, 1.442695
        %v3238 = vpow.pop %v3237
        %v3239 = vmul.f32 %v3190, 1.442695
        %v3240 = vpow.pop %v3239
        %v3241 = vmul.f32 %v3191, 1.442695
        %v3242 = vpow.pop %v3241
        %v3243 = vmul.f32 %v3192, 1.442695
        %v3244 = vpow.pop %v3243
        %v3245 = vmul.f32 %v3193, 1.442695
        %v3246 = vpow.pop %v3245
        %v3247 = vmul.f32 %v3194, 1.442695
        %v3248 = vpow.pop %v3247
        %v3249 = vmul.f32 %v3195, 1.442695
        %v3250 = vpow.pop %v3249
        %v3251 = vmul.f32 %v3196, 1.442695
        %v3252 = vpow.pop %v3251
        %v3253 = vmul.f32 %v3197, 1.442695
        %v3254 = vpow.pop %v3253
        %v3255 = vmul.f32 %v3198, 1.442695
        %v3256 = vpow.pop %v3255
        %v3257 = vmul.f32 %v3199, 1.442695
        %v3258 = vpow.pop %v3257
        %v3259 = vmul.f32 %v3200, 1.442695
        %v3260 = vpow.pop %v3259
        %v3261 = vmul.f32 %v3201, 1.442695
        %v3262 = vpow.pop %v3261
        %v3263 = vmul.f32 %v3202, 1.442695
        %v3264 = vpow.pop %v3263
        %v3265 = vmul.f32 %v3203, 1.442695
        %v3266 = vpow.pop %v3265
        %v3267 = vmul.f32 %v3204, 1.442695
        %v3268 = vpow.pop %v3267
        %v3269 = vadd.f32 %v3206, 1.0
        %v3270 = vadd.f32 %v3208, 1.0
        %v3271 = vadd.f32 %v3210, 1.0
        %v3272 = vadd.f32 %v3212, 1.0
        %v3273 = vadd.f32 %v3214, 1.0
        %v3274 = vadd.f32 %v3216, 1.0
        %v3275 = vadd.f32 %v3218, 1.0
        %v3276 = vadd.f32 %v3220, 1.0
        %v3277 = vadd.f32 %v3222, 1.0
        %v3278 = vadd.f32 %v3224, 1.0
        %v3279 = vadd.f32 %v3226, 1.0
        %v3280 = vadd.f32 %v3228, 1.0
        %v3281 = vadd.f32 %v3230, 1.0
        %v3282 = vadd.f32 %v3232, 1.0
        %v3283 = vadd.f32 %v3234, 1.0
        %v3284 = vadd.f32 %v3236, 1.0
        %v3285 = vadd.f32 %v3238, 1.0
        %v3286 = vadd.f32 %v3240, 1.0
        %v3287 = vadd.f32 %v3242, 1.0
        %v3288 = vadd.f32 %v3244, 1.0
        %v3289 = vadd.f32 %v3246, 1.0
        %v3290 = vadd.f32 %v3248, 1.0
        %v3291 = vadd.f32 %v3250, 1.0
        %v3292 = vadd.f32 %v3252, 1.0
        %v3293 = vadd.f32 %v3254, 1.0
        %v3294 = vadd.f32 %v3256, 1.0
        %v3295 = vadd.f32 %v3258, 1.0
        %v3296 = vadd.f32 %v3260, 1.0
        %v3297 = vadd.f32 %v3262, 1.0
        %v3298 = vadd.f32 %v3264, 1.0
        %v3299 = vadd.f32 %v3266, 1.0
        %v3300 = vadd.f32 %v3268, 1.0
        %v3301 = vrcp.pop %v3269
        %v3302 = vmul.f32 1.0, %v3301
        %v3303 = vrcp.pop %v3270
        %v3304 = vmul.f32 1.0, %v3303
        %v3305 = vrcp.pop %v3271
        %v3306 = vmul.f32 1.0, %v3305
        %v3307 = vrcp.pop %v3272
        %v3308 = vmul.f32 1.0, %v3307
        %v3309 = vrcp.pop %v3273
        %v3310 = vmul.f32 1.0, %v3309
        %v3311 = vrcp.pop %v3274
        %v3312 = vmul.f32 1.0, %v3311
        %v3313 = vrcp.pop %v3275
        %v3314 = vmul.f32 1.0, %v3313
        %v3315 = vrcp.pop %v3276
        %v3316 = vmul.f32 1.0, %v3315
        %v3317 = vrcp.pop %v3277
        %v3318 = vmul.f32 1.0, %v3317
        %v3319 = vrcp.pop %v3278
        %v3320 = vmul.f32 1.0, %v3319
        %v3321 = vrcp.pop %v3279
        %v3322 = vmul.f32 1.0, %v3321
        %v3323 = vrcp.pop %v3280
        %v3324 = vmul.f32 1.0, %v3323
        %v3325 = vrcp.pop %v3281
        %v3326 = vmul.f32 1.0, %v3325
        %v3327 = vrcp.pop %v3282
        %v3328 = vmul.f32 1.0, %v3327
        %v3329 = vrcp.pop %v3283
        %v3330 = vmul.f32 1.0, %v3329
        %v3331 = vrcp.pop %v3284
        %v3332 = vmul.f32 1.0, %v3331
        %v3333 = vrcp.pop %v3285
        %v3334 = vmul.f32 1.0, %v3333
        %v3335 = vrcp.pop %v3286
        %v3336 = vmul.f32 1.0, %v3335
        %v3337 = vrcp.pop %v3287
        %v3338 = vmul.f32 1.0, %v3337
        %v3339 = vrcp.pop %v3288
        %v3340 = vmul.f32 1.0, %v3339
        %v3341 = vrcp.pop %v3289
        %v3342 = vmul.f32 1.0, %v3341
        %v3343 = vrcp.pop %v3290
        %v3344 = vmul.f32 1.0, %v3343
        %v3345 = vrcp.pop %v3291
        %v3346 = vmul.f32 1.0, %v3345
        %v3347 = vrcp.pop %v3292
        %v3348 = vmul.f32 1.0, %v3347
        %v3349 = vrcp.pop %v3293
        %v3350 = vmul.f32 1.0, %v3349
        %v3351 = vrcp.pop %v3294
        %v3352 = vmul.f32 1.0, %v3351
        %v3353 = vrcp.pop %v3295
        %v3354 = vmul.f32 1.0, %v3353
        %v3355 = vrcp.pop %v3296
        %v3356 = vmul.f32 1.0, %v3355
        %v3357 = vrcp.pop %v3297
        %v3358 = vmul.f32 1.0, %v3357
        %v3359 = vrcp.pop %v3298
        %v3360 = vmul.f32 1.0, %v3359
        %v3361 = vrcp.pop %v3299
        %v3362 = vmul.f32 1.0, %v3361
        %v3363 = vrcp.pop %v3300
        %v3364 = vmul.f32 1.0, %v3363
        %3397 = vrot.lane.b32.xlu0 %v3302, 32
        %v3398 = vpop.permute.xlu0 %3397
        %3399 = vrot.lane.b32.xlu0 %v3304, 32
        %v3400 = vpop.permute.xlu0 %3399
        %3401 = vrot.lane.b32.xlu0 %v3306, 32
        %v3402 = vpop.permute.xlu0 %3401
        %3403 = vrot.lane.b32.xlu0 %v3308, 32
        %v3404 = vpop.permute.xlu0 %3403
        %3405 = vrot.lane.b32.xlu0 %v3310, 32
        %v3406 = vpop.permute.xlu0 %3405
        %3407 = vrot.lane.b32.xlu0 %v3312, 32
        %v3408 = vpop.permute.xlu0 %3407
        %3409 = vrot.lane.b32.xlu0 %v3314, 32
        %v3410 = vpop.permute.xlu0 %3409
        %3411 = vrot.lane.b32.xlu0 %v3316, 32
        %v3412 = vpop.permute.xlu0 %3411
        %3413 = vrot.lane.b32.xlu0 %v3318, 32
        %v3414 = vpop.permute.xlu0 %3413
        %3415 = vrot.lane.b32.xlu0 %v3320, 32
        %v3416 = vpop.permute.xlu0 %3415
        %3417 = vrot.lane.b32.xlu0 %v3322, 32
        %v3418 = vpop.permute.xlu0 %3417
        %3419 = vrot.lane.b32.xlu0 %v3324, 32
        %v3420 = vpop.permute.xlu0 %3419
        %3421 = vrot.lane.b32.xlu0 %v3326, 32
        %v3422 = vpop.permute.xlu0 %3421
        %3423 = vrot.lane.b32.xlu0 %v3328, 32
        %v3424 = vpop.permute.xlu0 %3423
        %3425 = vrot.lane.b32.xlu0 %v3330, 32
        %v3426 = vpop.permute.xlu0 %3425
        %3427 = vrot.lane.b32.xlu0 %v3332, 32
        %v3428 = vpop.permute.xlu0 %3427
        %3429 = vrot.lane.b32.xlu0 %v3334, 32
        %v3430 = vpop.permute.xlu0 %3429
        %3431 = vrot.lane.b32.xlu0 %v3336, 32
        %v3432 = vpop.permute.xlu0 %3431
        %3433 = vrot.lane.b32.xlu0 %v3338, 32
        %v3434 = vpop.permute.xlu0 %3433
        %3435 = vrot.lane.b32.xlu0 %v3340, 32
        %v3436 = vpop.permute.xlu0 %3435
        %3437 = vrot.lane.b32.xlu0 %v3342, 32
        %v3438 = vpop.permute.xlu0 %3437
        %3439 = vrot.lane.b32.xlu0 %v3344, 32
        %v3440 = vpop.permute.xlu0 %3439
        %3441 = vrot.lane.b32.xlu0 %v3346, 32
        %v3442 = vpop.permute.xlu0 %3441
        %3443 = vrot.lane.b32.xlu0 %v3348, 32
        %v3444 = vpop.permute.xlu0 %3443
        %3445 = vrot.lane.b32.xlu0 %v3350, 32
        %v3446 = vpop.permute.xlu0 %3445
        %3447 = vrot.lane.b32.xlu0 %v3352, 32
        %v3448 = vpop.permute.xlu0 %3447
        %3449 = vrot.lane.b32.xlu0 %v3354, 32
        %v3450 = vpop.permute.xlu0 %3449
        %3451 = vrot.lane.b32.xlu0 %v3356, 32
        %v3452 = vpop.permute.xlu0 %3451
        %3453 = vrot.lane.b32.xlu0 %v3358, 32
        %v3454 = vpop.permute.xlu0 %3453
        %3455 = vrot.lane.b32.xlu0 %v3360, 32
        %v3456 = vpop.permute.xlu0 %3455
        %3457 = vrot.lane.b32.xlu0 %v3362, 32
        %v3458 = vpop.permute.xlu0 %3457
        %3459 = vrot.lane.b32.xlu0 %v3364, 32
        %v3460 = vpop.permute.xlu0 %3459
        %v3493 = vadd.f32 %v2627, %v3398
        %v3494 = vadd.f32 %v2628, %v3400
        %v3495 = vadd.f32 %v2629, %v3402
        %v3496 = vadd.f32 %v2630, %v3404
        %v3497 = vadd.f32 %v2631, %v3406
        %v3498 = vadd.f32 %v2632, %v3408
        %v3499 = vadd.f32 %v2633, %v3410
        %v3500 = vadd.f32 %v2634, %v3412
        %v3501 = vadd.f32 %v2635, %v3414
        %v3502 = vadd.f32 %v2636, %v3416
        %v3503 = vadd.f32 %v2637, %v3418
        %v3504 = vadd.f32 %v2638, %v3420
        %v3505 = vadd.f32 %v2639, %v3422
        %v3506 = vadd.f32 %v2640, %v3424
        %v3507 = vadd.f32 %v2641, %v3426
        %v3508 = vadd.f32 %v2642, %v3428
        %v3509 = vadd.f32 %v2643, %v3430
        %v3510 = vadd.f32 %v2644, %v3432
        %v3511 = vadd.f32 %v2645, %v3434
        %v3512 = vadd.f32 %v2646, %v3436
        %v3513 = vadd.f32 %v2647, %v3438
        %v3514 = vadd.f32 %v2648, %v3440
        %v3515 = vadd.f32 %v2649, %v3442
        %v3516 = vadd.f32 %v2650, %v3444
        %v3517 = vadd.f32 %v2651, %v3446
        %v3518 = vadd.f32 %v2652, %v3448
        %v3519 = vadd.f32 %v2653, %v3450
        %v3520 = vadd.f32 %v2654, %v3452
        %v3521 = vadd.f32 %v2655, %v3454
        %v3522 = vadd.f32 %v2656, %v3456
        %v3523 = vadd.f32 %v2657, %v3458
        %v3524 = vadd.f32 %v2658, %v3460
        %v3525 = vtanh.pop %v3493
        %v3526 = vtanh.pop %v3494
        %v3527 = vtanh.pop %v3495
        %v3528 = vtanh.pop %v3496
        %v3529 = vtanh.pop %v3497
        %v3530 = vtanh.pop %v3498
        %v3531 = vtanh.pop %v3499
        %v3532 = vtanh.pop %v3500
        %v3533 = vtanh.pop %v3501
        %v3534 = vtanh.pop %v3502
        %v3535 = vtanh.pop %v3503
        %v3536 = vtanh.pop %v3504
        %v3537 = vtanh.pop %v3505
        %v3538 = vtanh.pop %v3506
        %v3539 = vtanh.pop %v3507
        %v3540 = vtanh.pop %v3508
        %v3541 = vtanh.pop %v3509
        %v3542 = vtanh.pop %v3510
        %v3543 = vtanh.pop %v3511
        %v3544 = vtanh.pop %v3512
        %v3545 = vtanh.pop %v3513
        %v3546 = vtanh.pop %v3514
        %v3547 = vtanh.pop %v3515
        %v3548 = vtanh.pop %v3516
        %v3549 = vtanh.pop %v3517
        %v3550 = vtanh.pop %v3518
        %v3551 = vtanh.pop %v3519
        %v3552 = vtanh.pop %v3520
        %v3553 = vtanh.pop %v3521
        %v3554 = vtanh.pop %v3522
        %v3555 = vtanh.pop %v3523
        %v3556 = vtanh.pop %v3524
        %3589 = vrot.lane.b32.xlu0 %v3525, 32
        %v3590 = vpop.permute.xlu0 %3589
        %3591 = vrot.lane.b32.xlu0 %v3526, 32
        %v3592 = vpop.permute.xlu0 %3591
        %3593 = vrot.lane.b32.xlu0 %v3527, 32
        %v3594 = vpop.permute.xlu0 %3593
        %3595 = vrot.lane.b32.xlu0 %v3528, 32
        %v3596 = vpop.permute.xlu0 %3595
        %3597 = vrot.lane.b32.xlu0 %v3529, 32
        %v3598 = vpop.permute.xlu0 %3597
        %3599 = vrot.lane.b32.xlu0 %v3530, 32
        %v3600 = vpop.permute.xlu0 %3599
        %3601 = vrot.lane.b32.xlu0 %v3531, 32
        %v3602 = vpop.permute.xlu0 %3601
        %3603 = vrot.lane.b32.xlu0 %v3532, 32
        %v3604 = vpop.permute.xlu0 %3603
        %3605 = vrot.lane.b32.xlu0 %v3533, 32
        %v3606 = vpop.permute.xlu0 %3605
        %3607 = vrot.lane.b32.xlu0 %v3534, 32
        %v3608 = vpop.permute.xlu0 %3607
        %3609 = vrot.lane.b32.xlu0 %v3535, 32
        %v3610 = vpop.permute.xlu0 %3609
        %3611 = vrot.lane.b32.xlu0 %v3536, 32
        %v3612 = vpop.permute.xlu0 %3611
        %3613 = vrot.lane.b32.xlu0 %v3537, 32
        %v3614 = vpop.permute.xlu0 %3613
        %3615 = vrot.lane.b32.xlu0 %v3538, 32
        %v3616 = vpop.permute.xlu0 %3615
        %3617 = vrot.lane.b32.xlu0 %v3539, 32
        %v3618 = vpop.permute.xlu0 %3617
        %3619 = vrot.lane.b32.xlu0 %v3540, 32
        %v3620 = vpop.permute.xlu0 %3619
        %3621 = vrot.lane.b32.xlu0 %v3541, 32
        %v3622 = vpop.permute.xlu0 %3621
        %3623 = vrot.lane.b32.xlu0 %v3542, 32
        %v3624 = vpop.permute.xlu0 %3623
        %3625 = vrot.lane.b32.xlu0 %v3543, 32
        %v3626 = vpop.permute.xlu0 %3625
        %3627 = vrot.lane.b32.xlu0 %v3544, 32
        %v3628 = vpop.permute.xlu0 %3627
        %3629 = vrot.lane.b32.xlu0 %v3545, 32
        %v3630 = vpop.permute.xlu0 %3629
        %3631 = vrot.lane.b32.xlu0 %v3546, 32
        %v3632 = vpop.permute.xlu0 %3631
        %3633 = vrot.lane.b32.xlu0 %v3547, 32
        %v3634 = vpop.permute.xlu0 %3633
        %3635 = vrot.lane.b32.xlu0 %v3548, 32
        %v3636 = vpop.permute.xlu0 %3635
        %3637 = vrot.lane.b32.xlu0 %v3549, 32
        %v3638 = vpop.permute.xlu0 %3637
        %3639 = vrot.lane.b32.xlu0 %v3550, 32
        %v3640 = vpop.permute.xlu0 %3639
        %3641 = vrot.lane.b32.xlu0 %v3551, 32
        %v3642 = vpop.permute.xlu0 %3641
        %3643 = vrot.lane.b32.xlu0 %v3552, 32
        %v3644 = vpop.permute.xlu0 %3643
        %3645 = vrot.lane.b32.xlu0 %v3553, 32
        %v3646 = vpop.permute.xlu0 %3645
        %3647 = vrot.lane.b32.xlu0 %v3554, 32
        %v3648 = vpop.permute.xlu0 %3647
        %3649 = vrot.lane.b32.xlu0 %v3555, 32
        %v3650 = vpop.permute.xlu0 %3649
        %3651 = vrot.lane.b32.xlu0 %v3556, 32
        %v3652 = vpop.permute.xlu0 %3651
        %v3685 = vmul.f32 %v1535, %v3590
        %v3686 = vmul.f32 %v1537, %v3592
        %v3687 = vmul.f32 %v1539, %v3594
        %v3688 = vmul.f32 %v1541, %v3596
        %v3689 = vmul.f32 %v1543, %v3598
        %v3690 = vmul.f32 %v1545, %v3600
        %v3691 = vmul.f32 %v1547, %v3602
        %v3692 = vmul.f32 %v1549, %v3604
        %v3693 = vmul.f32 %v1551, %v3606
        %v3694 = vmul.f32 %v1553, %v3608
        %v3695 = vmul.f32 %v1555, %v3610
        %v3696 = vmul.f32 %v1557, %v3612
        %v3697 = vmul.f32 %v1559, %v3614
        %v3698 = vmul.f32 %v1561, %v3616
        %v3699 = vmul.f32 %v1563, %v3618
        %v3700 = vmul.f32 %v1565, %v3620
        %v3701 = vmul.f32 %v1567, %v3622
        %v3702 = vmul.f32 %v1569, %v3624
        %v3703 = vmul.f32 %v1571, %v3626
        %v3704 = vmul.f32 %v1573, %v3628
        %v3705 = vmul.f32 %v1575, %v3630
        %v3706 = vmul.f32 %v1577, %v3632
        %v3707 = vmul.f32 %v1579, %v3634
        %v3708 = vmul.f32 %v1581, %v3636
        %v3709 = vmul.f32 %v1583, %v3638
        %v3710 = vmul.f32 %v1585, %v3640
        %v3711 = vmul.f32 %v1587, %v3642
        %v3712 = vmul.f32 %v1589, %v3644
        %v3713 = vmul.f32 %v1591, %v3646
        %v3714 = vmul.f32 %v1593, %v3648
        %v3715 = vmul.f32 %v1595, %v3650
        %v3716 = vmul.f32 %v1597, %v3652
        %3717 = vst.msk [vmem:[%s645] sm:$0xff] %vm723, %v3493
        %3718 = vst.msk [vmem:[%s645 + $0x8] sm:$0xff] %vm723, %v3494
        %3719 = vst.msk [vmem:[%s645 + $0x10] sm:$0xff] %vm723, %v3495
        %3720 = vst.msk [vmem:[%s645 + $0x18] sm:$0xff] %vm723, %v3496
        %3721 = vst.msk [vmem:[%s645 + $0x20] sm:$0xff] %vm723, %v3497
        %3722 = vst.msk [vmem:[%s645 + $0x28] sm:$0xff] %vm723, %v3498
        %3723 = vst.msk [vmem:[%s645 + $0x30] sm:$0xff] %vm723, %v3499
        %3724 = vst.msk [vmem:[%s645 + $0x38] sm:$0xff] %vm723, %v3500
        %3725 = vst.msk [vmem:[%s645 + $0x40] sm:$0xff] %vm723, %v3501
        %3726 = vst.msk [vmem:[%s645 + $0x48] sm:$0xff] %vm723, %v3502
        %3727 = vst.msk [vmem:[%s645 + $0x50] sm:$0xff] %vm723, %v3503
        %3728 = vst.msk [vmem:[%s645 + $0x58] sm:$0xff] %vm723, %v3504
        %3729 = vst.msk [vmem:[%s645 + $0x60] sm:$0xff] %vm723, %v3505
        %3730 = vst.msk [vmem:[%s645 + $0x68] sm:$0xff] %vm723, %v3506
        %3731 = vst.msk [vmem:[%s645 + $0x70] sm:$0xff] %vm723, %v3507
        %3732 = vst.msk [vmem:[%s645 + $0x78] sm:$0xff] %vm723, %v3508
        %3733 = vst.msk [vmem:[%s645 + $0x80] sm:$0xff] %vm723, %v3509
        %3734 = vst.msk [vmem:[%s645 + $0x88] sm:$0xff] %vm723, %v3510
        %3735 = vst.msk [vmem:[%s645 + $0x90] sm:$0xff] %vm723, %v3511
        %3736 = vst.msk [vmem:[%s645 + $0x98] sm:$0xff] %vm723, %v3512
        %3737 = vst.msk [vmem:[%s645 + $0xa0] sm:$0xff] %vm723, %v3513
        %3738 = vst.msk [vmem:[%s645 + $0xa8] sm:$0xff] %vm723, %v3514
        %3739 = vst.msk [vmem:[%s645 + $0xb0] sm:$0xff] %vm723, %v3515
        %3740 = vst.msk [vmem:[%s645 + $0xb8] sm:$0xff] %vm723, %v3516
        %3741 = vst.msk [vmem:[%s645 + $0xc0] sm:$0xff] %vm723, %v3517
        %3742 = vst.msk [vmem:[%s645 + $0xc8] sm:$0xff] %vm723, %v3518
        %3743 = vst.msk [vmem:[%s645 + $0xd0] sm:$0xff] %vm723, %v3519
        %3744 = vst.msk [vmem:[%s645 + $0xd8] sm:$0xff] %vm723, %v3520
        %3745 = vst.msk [vmem:[%s645 + $0xe0] sm:$0xff] %vm723, %v3521
        %3746 = vst.msk [vmem:[%s645 + $0xe8] sm:$0xff] %vm723, %v3522
        %3747 = vst.msk [vmem:[%s645 + $0xf0] sm:$0xff] %vm723, %v3523
        %3748 = vst.msk [vmem:[%s645 + $0xf8] sm:$0xff] %vm723, %v3524
        %3781 = vrot.lane.b32.xlu0 %v3685, 96
        %v3782 = vpop.permute.xlu0 %3781
        %3783 = vrot.lane.b32.xlu0 %v3686, 96
        %v3784 = vpop.permute.xlu0 %3783
        %3785 = vrot.lane.b32.xlu0 %v3687, 96
        %v3786 = vpop.permute.xlu0 %3785
        %3787 = vrot.lane.b32.xlu0 %v3688, 96
        %v3788 = vpop.permute.xlu0 %3787
        %3789 = vrot.lane.b32.xlu0 %v3689, 96
        %v3790 = vpop.permute.xlu0 %3789
        %3791 = vrot.lane.b32.xlu0 %v3690, 96
        %v3792 = vpop.permute.xlu0 %3791
        %3793 = vrot.lane.b32.xlu0 %v3691, 96
        %v3794 = vpop.permute.xlu0 %3793
        %3795 = vrot.lane.b32.xlu0 %v3692, 96
        %v3796 = vpop.permute.xlu0 %3795
        %3797 = vrot.lane.b32.xlu0 %v3693, 96
        %v3798 = vpop.permute.xlu0 %3797
        %3799 = vrot.lane.b32.xlu0 %v3694, 96
        %v3800 = vpop.permute.xlu0 %3799
        %3801 = vrot.lane.b32.xlu0 %v3695, 96
        %v3802 = vpop.permute.xlu0 %3801
        %3803 = vrot.lane.b32.xlu0 %v3696, 96
        %v3804 = vpop.permute.xlu0 %3803
        %3805 = vrot.lane.b32.xlu0 %v3697, 96
        %v3806 = vpop.permute.xlu0 %3805
        %3807 = vrot.lane.b32.xlu0 %v3698, 96
        %v3808 = vpop.permute.xlu0 %3807
        %3809 = vrot.lane.b32.xlu0 %v3699, 96
        %v3810 = vpop.permute.xlu0 %3809
        %3811 = vrot.lane.b32.xlu0 %v3700, 96
        %v3812 = vpop.permute.xlu0 %3811
        %3813 = vrot.lane.b32.xlu0 %v3701, 96
        %v3814 = vpop.permute.xlu0 %3813
        %3815 = vrot.lane.b32.xlu0 %v3702, 96
        %v3816 = vpop.permute.xlu0 %3815
        %3817 = vrot.lane.b32.xlu0 %v3703, 96
        %v3818 = vpop.permute.xlu0 %3817
        %3819 = vrot.lane.b32.xlu0 %v3704, 96
        %v3820 = vpop.permute.xlu0 %3819
        %3821 = vrot.lane.b32.xlu0 %v3705, 96
        %v3822 = vpop.permute.xlu0 %3821
        %3823 = vrot.lane.b32.xlu0 %v3706, 96
        %v3824 = vpop.permute.xlu0 %3823
        %3825 = vrot.lane.b32.xlu0 %v3707, 96
        %v3826 = vpop.permute.xlu0 %3825
        %3827 = vrot.lane.b32.xlu0 %v3708, 96
        %v3828 = vpop.permute.xlu0 %3827
        %3829 = vrot.lane.b32.xlu0 %v3709, 96
        %v3830 = vpop.permute.xlu0 %3829
        %3831 = vrot.lane.b32.xlu0 %v3710, 96
        %v3832 = vpop.permute.xlu0 %3831
        %3833 = vrot.lane.b32.xlu0 %v3711, 96
        %v3834 = vpop.permute.xlu0 %3833
        %3835 = vrot.lane.b32.xlu0 %v3712, 96
        %v3836 = vpop.permute.xlu0 %3835
        %3837 = vrot.lane.b32.xlu0 %v3713, 96
        %v3838 = vpop.permute.xlu0 %3837
        %3839 = vrot.lane.b32.xlu0 %v3714, 96
        %v3840 = vpop.permute.xlu0 %3839
        %3841 = vrot.lane.b32.xlu0 %v3715, 96
        %v3842 = vpop.permute.xlu0 %3841
        %3843 = vrot.lane.b32.xlu0 %v3716, 96
        %v3844 = vpop.permute.xlu0 %3843
        %3877 = vst.msk [vmem:[%s651] sm:$0xff] %vm723, %v3782
        %3878 = vst.msk [vmem:[%s651 + $0x8] sm:$0xff] %vm723, %v3784
        %3879 = vst.msk [vmem:[%s651 + $0x10] sm:$0xff] %vm723, %v3786
        %3880 = vst.msk [vmem:[%s651 + $0x18] sm:$0xff] %vm723, %v3788
        %3881 = vst.msk [vmem:[%s651 + $0x20] sm:$0xff] %vm723, %v3790
        %3882 = vst.msk [vmem:[%s651 + $0x28] sm:$0xff] %vm723, %v3792
        %3883 = vst.msk [vmem:[%s651 + $0x30] sm:$0xff] %vm723, %v3794
        %3884 = vst.msk [vmem:[%s651 + $0x38] sm:$0xff] %vm723, %v3796
        %3885 = vst.msk [vmem:[%s651 + $0x40] sm:$0xff] %vm723, %v3798
        %3886 = vst.msk [vmem:[%s651 + $0x48] sm:$0xff] %vm723, %v3800
        %3887 = vst.msk [vmem:[%s651 + $0x50] sm:$0xff] %vm723, %v3802
        %3888 = vst.msk [vmem:[%s651 + $0x58] sm:$0xff] %vm723, %v3804
        %3889 = vst.msk [vmem:[%s651 + $0x60] sm:$0xff] %vm723, %v3806
        %3890 = vst.msk [vmem:[%s651 + $0x68] sm:$0xff] %vm723, %v3808
        %3891 = vst.msk [vmem:[%s651 + $0x70] sm:$0xff] %vm723, %v3810
        %3892 = vst.msk [vmem:[%s651 + $0x78] sm:$0xff] %vm723, %v3812
        %3893 = vst.msk [vmem:[%s651 + $0x80] sm:$0xff] %vm723, %v3814
        %3894 = vst.msk [vmem:[%s651 + $0x88] sm:$0xff] %vm723, %v3816
        %3895 = vst.msk [vmem:[%s651 + $0x90] sm:$0xff] %vm723, %v3818
        %3896 = vst.msk [vmem:[%s651 + $0x98] sm:$0xff] %vm723, %v3820
        %3897 = vst.msk [vmem:[%s651 + $0xa0] sm:$0xff] %vm723, %v3822
        %3898 = vst.msk [vmem:[%s651 + $0xa8] sm:$0xff] %vm723, %v3824
        %3899 = vst.msk [vmem:[%s651 + $0xb0] sm:$0xff] %vm723, %v3826
        %3900 = vst.msk [vmem:[%s651 + $0xb8] sm:$0xff] %vm723, %v3828
        %3901 = vst.msk [vmem:[%s651 + $0xc0] sm:$0xff] %vm723, %v3830
        %3902 = vst.msk [vmem:[%s651 + $0xc8] sm:$0xff] %vm723, %v3832
        %3903 = vst.msk [vmem:[%s651 + $0xd0] sm:$0xff] %vm723, %v3834
        %3904 = vst.msk [vmem:[%s651 + $0xd8] sm:$0xff] %vm723, %v3836
        %3905 = vst.msk [vmem:[%s651 + $0xe0] sm:$0xff] %vm723, %v3838
        %3906 = vst.msk [vmem:[%s651 + $0xe8] sm:$0xff] %vm723, %v3840
        %3907 = vst.msk [vmem:[%s651 + $0xf0] sm:$0xff] %vm723, %v3842
        %3908 = vst.msk [vmem:[%s651 + $0xf8] sm:$0xff] %vm723, %v3844
        %s3909 = smul.u32 32, %s20
        %p3910 = scmp.lt.s32.totalorder %s3909, 127
        %s3911 = scalar_select %p3910, %s3909, 127
        %s3912 = smul.addr %s3911, 8
        %s3913 = scalar_lea.vmem %s7, %s3912
        %s3914 = smul.u32 32, %s20
        %p3915 = scmp.lt.s32.totalorder %s3914, 127
        %s3916 = scalar_select %p3915, %s3914, 127
        %s3917 = smul.addr %s3916, 8
        %s3918 = scalar_lea.vmem %s8, %s3917
        // Predicated region
        $region87: #{lstm_cell_forward.1} parent=81 // pred_check
          %p3919 = pneg %p200
        $region88: #{lstm_cell_forward.1} parent=81 // pred_check_branch
          %3921 = sbr.rel (%p3919) target = $region90
        $region89: #{lstm_cell_forward.1} parent=81 // pred_region
          %s3922 = smul.u32 32, %s20
        $region90: #{lstm_cell_forward.1} parent=81 // pred_fallthru
          _
        // Predicated region
        $region91: #{lstm_cell_forward.1} parent=81 // pred_check
          %p3923 = pneg %p226
        $region92: #{lstm_cell_forward.1} parent=81 // pred_check_branch
          %3925 = sbr.rel (%p3923) target = $region94
        $region93: #{lstm_cell_forward.1} parent=81 // pred_region
          %s3926 = smul.u32 32, %s20
        $region94: #{lstm_cell_forward.1} parent=81 // pred_fallthru
          _
      $region82: #{lstm_cell_forward.1} parent=5 // pred_fallthru
        _
      %p3927 = scmp.le.s32.totalorder 2, %s15
      // Predicated region
      $region95: #{lstm_cell_forward.1} parent=5 // pred_check
        %p3928 = pneg %p3927
      $region96: #{lstm_cell_forward.1} parent=5 // pred_check_branch
        %3930 = sbr.rel (%p3928) target = $region98
      $region97: #{lstm_cell_forward.1} parent=5 // pred_region
        %s3931 = ssub.s32 %s15, 2
        // Predicated region
        $region99: #{lstm_cell_forward.1} parent=97 // pred_check
          %p3932 = pneg %p206
        $region100: #{lstm_cell_forward.1} parent=97 // pred_check_branch
          %3934 = sbr.rel (%p3932) target = $region102
        $region101: #{lstm_cell_forward.1} parent=97 // pred_region
          %s3935 = smul.u32 32, %s21
          %p3936 = scmp.lt.s32.totalorder %s3935, 127
          %s3937 = scalar_select %p3936, %s3935, 127
          %s3938 = smul.addr %s3937, 8
          %s3939 = scalar_lea.vmem %s7, %s3938
        $region102: #{lstm_cell_forward.1} parent=97 // pred_fallthru
          _
        // Predicated region
        $region103: #{lstm_cell_forward.1} parent=97 // pred_check
          %p3940 = pneg %p232
        $region104: #{lstm_cell_forward.1} parent=97 // pred_check_branch
          %3942 = sbr.rel (%p3940) target = $region106
        $region105: #{lstm_cell_forward.1} parent=97 // pred_region
          %s3943 = smul.u32 32, %s21
          %p3944 = scmp.lt.s32.totalorder %s3943, 127
          %s3945 = scalar_select %p3944, %s3943, 127
          %s3946 = smul.addr %s3945, 8
          %s3947 = scalar_lea.vmem %s8, %s3946
        $region106: #{lstm_cell_forward.1} parent=97 // pred_fallthru
          _
      $region98: #{lstm_cell_forward.1} parent=5 // pred_fallthru
        _
    $region6: #{lstm_cell_forward.1} parent=1 // loop_footer
      %s19 = sadd.s32 1, %s15
    $region7: #{lstm_cell_forward.1} parent=1 // loop_footer_branch
      %14 = sbr.rel target = $region3
    $region8: #{lstm_cell_forward.1} parent=1 // loop_exit
      _

</llo_original>
